<compile_context>
chip_gen: v5e
topology: v5e:2x2
jax: 0.10.0
libtpu: 0.0.40
codegen_flags: <defaults>
</compile_context>

<pallas_src>
import math

import jax
import jax.numpy as jnp
from jax.experimental import pallas as pl
from jax.experimental.pallas import tpu as pltpu


_NEG_INF = -1e9


def _layer_norm(x, gamma, beta, eps=1e-5):
    mean = jnp.mean(x, axis=-1, keepdims=True)
    ctr = x - mean
    var = jnp.mean(ctr * ctr, axis=-1, keepdims=True)
    return ctr * jax.lax.rsqrt(var + eps) * gamma + beta


def _erf(x):
    # Abramowitz & Stegun 7.1.26 (max abs err ~1.5e-7), built only from ops
    # guaranteed to lower in Mosaic (exp / mul / add / select).
    a1, a2, a3, a4, a5 = 0.254829592, -0.284496736, 1.421413741, -1.453152027, 1.061405429
    p = 0.3275911
    sgn = jnp.where(x >= 0.0, 1.0, -1.0)
    z = jnp.abs(x)
    t = 1.0 / (1.0 + p * z)
    poly = ((((a5 * t + a4) * t + a3) * t + a2) * t + a1) * t
    return sgn * (1.0 - poly * jnp.exp(-z * z))


def _gelu_exact(x):
    # Matches PyTorch F.gelu default (erf form), not the tanh approximation.
    return 0.5 * x * (1.0 + _erf(x * (1.0 / math.sqrt(2.0))))


def _make_kernel(n_heads, head_dim, pre_norm, activation, has_pos):
    if activation == "relu":
        act = lambda v: jnp.maximum(v, 0.0)
    elif activation == "gelu":
        act = _gelu_exact
    else:
        # TODO(synk): 'glu' halves the feature width; not supported here.
        raise NotImplementedError(f"activation {activation!r} not supported")

    scale = 1.0 / math.sqrt(head_dim)
    bf16 = jnp.bfloat16
    f32 = jnp.float32

    def kernel(*refs):
        it = iter(refs)
        xq_ref = next(it)            # (1, TQ, D)  query-tile rows of x
        xf_ref = next(it)            # (1, S,  D)  full sequence (keys / values)
        if has_pos:
            pq_ref = next(it)        # (1, TQ, D)
            pf_ref = next(it)        # (1, S,  D)
        mb_ref = next(it)            # (1, 1,  S)  additive key bias (0 / -1e9)
        (wq_ref, bq_ref, wk_ref, bk_ref, wv_ref, bv_ref, wo_ref, bo_ref,
         w1_ref, b1_ref, w2_ref, b2_ref, g1_ref, be1_ref, g2_ref, be2_ref) = [
            next(it) for _ in range(16)]
        out_ref = next(it)           # (1, TQ, D)

        xq = xq_ref[0]               # (TQ, D) f32
        xf = xf_ref[0]               # (S,  D) f32
        mb = mb_ref[0]               # (1,  S) f32

        skip = xq
        if pre_norm:
            g1 = g1_ref[...]
            b1n = be1_ref[...]
            xnq = _layer_norm(xq, g1, b1n)
            xnf = _layer_norm(xf, g1, b1n)
        else:
            xnq, xnf = xq, xf
        if has_pos:
            qkq = xnq + pq_ref[0]
            qkf = xnf + pf_ref[0]
        else:
            qkq, qkf = xnq, xnf

        # QKV projections: bf16 MXU inputs, f32 accumulation.
        q = jnp.dot(qkq.astype(bf16), wq_ref[...], preferred_element_type=f32) + bq_ref[...]
        k = jnp.dot(qkf.astype(bf16), wk_ref[...], preferred_element_type=f32) + bk_ref[...]
        v = jnp.dot(xnf.astype(bf16), wv_ref[...], preferred_element_type=f32) + bv_ref[...]

        q_b = (q * scale).astype(bf16)     # fold 1/sqrt(hd) into q (one mul, not per head)
        k_b = k.astype(bf16)
        v_b = v.astype(bf16)
        wo = wo_ref[...]                   # bf16 (D, D), loaded once
        tq = q.shape[0]
        s_len = k.shape[0]
        bias = jnp.broadcast_to(mb, (tq, s_len))   # mask broadcast hoisted out of head loop

        # Per-head attention accumulated straight into the output projection:
        # lane-dense (TQ, D) accumulator, no masked 64-lane scratch stores.
        acc = None
        for h in range(n_heads):
            lo = h * head_dim
            hi = lo + head_dim
            s = jnp.einsum("qd,kd->qk", q_b[:, lo:hi], k_b[:, lo:hi],
                           preferred_element_type=f32) + bias
            # f32, numerically stable softmax. Fully-masked rows become uniform
            # (PyTorch would NaN-propagate); acceptable for key-padding masks.
            s = s - jnp.max(s, axis=-1, keepdims=True)
            p = jnp.exp(s)
            p = p * pl.reciprocal(jnp.sum(p, axis=-1, keepdims=True), approx=True)
            oh = jnp.dot(p.astype(bf16), v_b[:, lo:hi], preferred_element_type=f32)
            contrib = jnp.dot(oh.astype(bf16), wo[lo:hi, :], preferred_element_type=f32)
            acc = contrib if acc is None else acc + contrib
        attn = acc + bo_ref[...]

        # Residual 1 (dropout1 = identity at inference).
        y = skip + attn
        if pre_norm:
            skip2 = y
            y2 = _layer_norm(y, g2_ref[...], be2_ref[...])
        else:
            y = _layer_norm(y, g1_ref[...], be1_ref[...])
            skip2 = y
            y2 = y

        # Feed-forward (internal dropout = identity at inference).
        hid = jnp.dot(y2.astype(bf16), w1_ref[...], preferred_element_type=f32) + b1_ref[...]
        hid = act(hid)
        ff = jnp.dot(hid.astype(bf16), w2_ref[...], preferred_element_type=f32) + b2_ref[...]

        out = skip2 + ff
        if not pre_norm:
            out = _layer_norm(out, g2_ref[...], be2_ref[...])
        out_ref[0] = out.astype(out_ref.dtype)

    return kernel


def act_encoder_layer(x, pos_embed, key_padding_mask, params, *,
                      n_heads, pre_norm=False, activation="relu",
                      out_dtype=jnp.float32, q_tile=256):
    """ACTEncoderLayer forward (inference: all dropouts are identity).

    x, pos_embed: (S, B, D) (PyTorch nn.MultiheadAttention layout); pos_embed
      may have batch dim 1 (batch-invariant, as in ACT) or be None.
    key_padding_mask: (B, S) bool, True = ignore that key (or None).
    params: math-layout weights (already transposed from torch):
      w_q/w_k/w_v/w_o (D,D), b_q/b_k/b_v/b_o (1,D)   <- MHA in_proj / out_proj
      w1 (D,Dff), b1 (1,Dff), w2 (Dff,D), b2 (1,D)   <- linear1 / linear2
      g1, bt1, g2, bt2 (1,D)                         <- norm1 / norm2
    """
    S, B, D = x.shape
    assert D % n_heads == 0, "dim_model must be divisible by n_heads"
    head_dim = D // n_heads
    dff = params["w1"].shape[1]

    # ---- query (sequence) tiling for grid axis 1 ---------------------------
    if S <= q_tile:
        tq, s_pad = S, S
    else:
        tq = max(8, (q_tile // 8) * 8)          # tile must be a multiple of 8
        s_pad = ((S + tq - 1) // tq) * tq
    nq = s_pad // tq
    pad = s_pad - S

    xb = jnp.transpose(x, (1, 0, 2)).astype(jnp.float32)          # (B, S, D)
    if pad:
        xb = jnp.pad(xb, ((0, 0), (0, pad), (0, 0)))

    has_pos = pos_embed is not None
    pos_const = False
    posb = None
    if has_pos:
        posb = jnp.transpose(pos_embed.astype(jnp.float32), (1, 0, 2))  # (Bp, S, D)
        if pad:
            posb = jnp.pad(posb, ((0, 0), (0, pad), (0, 0)))
        pos_const = posb.shape[0] == 1      # batch-invariant -> fetch once, VMEM-resident

    # Additive key bias; padded key rows are always masked out.
    if key_padding_mask is None:
        bias = jnp.zeros((B, S), jnp.float32)
    else:
        bias = jnp.where(key_padding_mask, _NEG_INF, 0.0).astype(jnp.float32)
    if pad:
        bias = jnp.pad(bias, ((0, 0), (0, pad)), constant_values=_NEG_INF)
    bias = bias.reshape(B, 1, s_pad)

    # Weights: matmul weights bf16 (MXU-native), biases / LN params f32.
    mxu_weights = {"w_q", "w_k", "w_v", "w_o", "w1", "w2"}
    names = ["w_q", "b_q", "w_k", "b_k", "w_v", "b_v", "w_o", "b_o",
             "w1", "b1", "w2", "b2", "g1", "bt1", "g2", "bt2"]
    weights = [params[n].astype(jnp.bfloat16 if n in mxu_weights else jnp.float32)
               for n in names]

    kernel = _make_kernel(n_heads, head_dim, pre_norm, activation, has_pos)

    x_tile = pl.BlockSpec((1, tq, D), lambda b, qi: (b, qi, 0))
    x_full = pl.BlockSpec((1, s_pad, D), lambda b, qi: (b, 0, 0))
    mask_spec = pl.BlockSpec((1, 1, s_pad), lambda b, qi: (b, 0, 0))

    inputs = [xb, xb]
    in_specs = [x_tile, x_full]
    if has_pos:
        if pos_const:
            in_specs += [pl.BlockSpec((1, tq, D), lambda b, qi: (0, qi, 0)),
                         pl.BlockSpec((1, s_pad, D), lambda b, qi: (0, 0, 0))]
        else:
            in_specs += [x_tile, x_full]
        inputs += [posb, posb]
    in_specs.append(mask_spec)
    inputs.append(bias)
    inputs += weights

    # Explicit VMEM budget: double-buffered activation blocks + resident
    # weights + an estimate of the in-kernel intermediates, with headroom.
    nbytes = lambda a: int(a.size) * a.dtype.itemsize
    blk = 4 * (tq * D + s_pad * D + (tq * D + s_pad * D if has_pos else 0) + s_pad + tq * D)
    wbytes = sum(nbytes(w) for w in weights)
    inter = 4 * (3 * s_pad * D + 2 * tq * s_pad + tq * dff + 8 * tq * D)
    vmem_limit = int(min(100 * 2**20, max(32 * 2**20, 2 * blk + 2 * wbytes + 2 * inter)))

    def build(single_buffer_weights):
        w_specs = []
        for w in weights:
            if single_buffer_weights:
                # Constant index_map -> fetched once; single-buffer to save VMEM.
                w_specs.append(pl.BlockSpec(w.shape, lambda b, qi: (0, 0),
                                            pipeline_mode=pl.Buffered(1)))
            else:
                w_specs.append(pl.BlockSpec(w.shape, lambda b, qi: (0, 0)))
        return pl.pallas_call(
            kernel,
            out_shape=jax.ShapeDtypeStruct((B, s_pad, D), out_dtype),
            grid=(B, nq),
            in_specs=in_specs + w_specs,
            out_specs=pl.BlockSpec((1, tq, D), lambda b, qi: (b, qi, 0)),
            compiler_params=pltpu.CompilerParams(
                dimension_semantics=("parallel", "parallel"),
                vmem_limit_bytes=vmem_limit),
        )

    try:
        out = build(True)(*inputs)
    except Exception:
        # Fallback for JAX/Mosaic builds without single-buffer pipeline_mode.
        out = build(False)(*inputs)

    out = out[:, :S, :]
    return jnp.transpose(out, (1, 0, 2))                          # back to (S, B, D)


# ----------------------- pure-JAX reference (for checking) -----------------------

def act_encoder_layer_ref(x, pos_embed, key_padding_mask, params, *,
                          n_heads, pre_norm=False, activation="relu"):
    S, B, D = x.shape
    hd = D // n_heads
    x = x.astype(jnp.float32)
    pos = jnp.zeros_like(x) if pos_embed is None else pos_embed.astype(jnp.float32)

    def ln(v, g, b, eps=1e-5):
        m = jnp.mean(v, axis=-1, keepdims=True)
        c = v - m
        var = jnp.mean(c * c, axis=-1, keepdims=True)
        return c * jax.lax.rsqrt(var + eps) * g + b

    skip = x
    xn = ln(x, params["g1"], params["bt1"]) if pre_norm else x
    qk = xn + pos
    q = qk @ params["w_q"] + params["b_q"]
    k = qk @ params["w_k"] + params["b_k"]
    v = xn @ params["w_v"] + params["b_v"]
    q = q.reshape(S, B, n_heads, hd)
    k = k.reshape(S, B, n_heads, hd)
    v = v.reshape(S, B, n_heads, hd)
    s = jnp.einsum("sbhd,tbhd->bhst", q, k) / math.sqrt(hd)
    if key_padding_mask is not None:
        s = s + jnp.where(key_padding_mask, _NEG_INF, 0.0)[:, None, None, :]
    p = jax.nn.softmax(s, axis=-1)
    o = jnp.einsum("bhst,tbhd->sbhd", p, v).reshape(S, B, D)
    o = o @ params["w_o"] + params["b_o"]
    y = skip + o
    if pre_norm:
        skip2 = y
        y2 = ln(y, params["g2"], params["bt2"])
    else:
        y = ln(y, params["g1"], params["bt1"])
        skip2 = y
        y2 = y
    h = y2 @ params["w1"] + params["b1"]
    h = jnp.maximum(h, 0.0) if activation == "relu" else jax.nn.gelu(h, approximate=False)
    h = h @ params["w2"] + params["b2"]
    out = skip2 + h
    if not pre_norm:
        out = ln(out, params["g2"], params["bt2"])
    return out


if __name__ == "__main__":
    key = jax.random.PRNGKey(0)

    def rnd(k, shape, scale=0.1):
        return jax.random.normal(k, shape, jnp.float32) * scale

    def make_params(k, D, DFF):
        ks = jax.random.split(k, 16)
        return {
            "w_q": rnd(ks[0], (D, D)), "b_q": rnd(ks[1], (1, D)),
            "w_k": rnd(ks[2], (D, D)), "b_k": rnd(ks[3], (1, D)),
            "w_v": rnd(ks[4], (D, D)), "b_v": rnd(ks[5], (1, D)),
            "w_o": rnd(ks[6], (D, D)), "b_o": rnd(ks[7], (1, D)),
            "w1": rnd(ks[8], (D, DFF)), "b1": rnd(ks[9], (1, DFF)),
            "w2": rnd(ks[10], (DFF, D)), "b2": rnd(ks[11], (1, D)),
            "g1": 1.0 + rnd(ks[12], (1, D), 0.02), "bt1": rnd(ks[13], (1, D), 0.02),
            "g2": 1.0 + rnd(ks[14], (1, D), 0.02), "bt2": rnd(ks[15], (1, D), 0.02),
        }

    D, H, DFF = 32, 4, 64
    k0, k1, k2, k3, k4 = jax.random.split(key, 5)

    # --- test 1: post-norm, relu, batch-invariant pos, key-padding mask -------
    S, B = 8, 2
    params = make_params(k0, D, DFF)
    x = jax.random.normal(k1, (S, B, D), jnp.float32)
    pos = rnd(k2, (S, 1, D), 0.5)                         # batch-invariant, as in ACT
    mask = jnp.broadcast_to(jnp.arange(S) >= (S - 2), (B, S))

    out = act_encoder_layer(x, pos, mask, params, n_heads=H,
                            pre_norm=False, activation="relu")
    jax.block_until_ready(out)
    ref = act_encoder_layer_ref(x, pos, mask, params, n_heads=H,
                                pre_norm=False, activation="relu")
    assert out.shape == (S, B, D)
    d1 = float(jnp.max(jnp.abs(out - ref)))
    # Tolerance covers bf16 MXU inputs (f32 accumulation) + approx reciprocal;
    # structural bugs would show O(0.1-1) errors on this unit-scale output.
    assert jnp.allclose(out, ref, atol=3e-2, rtol=3e-2), f"post-norm mismatch: {d1}"

    # --- test 2: pre-norm, exact gelu, no pos, multi-tile q grid + padding ----
    S2, B2 = 24, 1
    params2 = make_params(k3, D, DFF)
    x2 = jax.random.normal(k4, (S2, B2, D), jnp.float32)
    out2 = act_encoder_layer(x2, None, None, params2, n_heads=H,
                             pre_norm=True, activation="gelu", q_tile=16)
    jax.block_until_ready(out2)
    ref2 = act_encoder_layer_ref(x2, None, None, params2, n_heads=H,
                                 pre_norm=True, activation="gelu")
    assert out2.shape == (S2, B2, D)
    d2 = float(jnp.max(jnp.abs(out2 - ref2)))
    assert jnp.allclose(out2, ref2, atol=3e-2, rtol=3e-2), f"pre-norm mismatch: {d2}"

    print("KERNEL_OK")
</pallas_src>

<mosaic_0001>
module attributes {stable_mosaic.version = 11 : i64} {
  func.func @kernel(%arg0: i32, %arg1: i32, %arg2: memref<1x8x32xf32, #tpu.memory_space<vmem>>, %arg3: memref<1x8x32xf32, #tpu.memory_space<vmem>>, %arg4: memref<1x8x32xf32, #tpu.memory_space<vmem>>, %arg5: memref<1x8x32xf32, #tpu.memory_space<vmem>>, %arg6: memref<1x1x8xf32, #tpu.memory_space<vmem>>, %arg7: memref<32x32xbf16, #tpu.memory_space<vmem>>, %arg8: memref<1x32xf32, #tpu.memory_space<vmem>>, %arg9: memref<32x32xbf16, #tpu.memory_space<vmem>>, %arg10: memref<1x32xf32, #tpu.memory_space<vmem>>, %arg11: memref<32x32xbf16, #tpu.memory_space<vmem>>, %arg12: memref<1x32xf32, #tpu.memory_space<vmem>>, %arg13: memref<32x32xbf16, #tpu.memory_space<vmem>>, %arg14: memref<1x32xf32, #tpu.memory_space<vmem>>, %arg15: memref<32x64xbf16, #tpu.memory_space<vmem>>, %arg16: memref<1x64xf32, #tpu.memory_space<vmem>>, %arg17: memref<64x32xbf16, #tpu.memory_space<vmem>>, %arg18: memref<1x32xf32, #tpu.memory_space<vmem>>, %arg19: memref<1x32xf32, #tpu.memory_space<vmem>>, %arg20: memref<1x32xf32, #tpu.memory_space<vmem>>, %arg21: memref<1x32xf32, #tpu.memory_space<vmem>>, %arg22: memref<1x32xf32, #tpu.memory_space<vmem>>, %arg23: memref<1x8x32xf32, #tpu.memory_space<vmem>>) attributes {dimension_semantics = [#tpu.dimension_semantics<parallel>, #tpu.dimension_semantics<parallel>], iteration_bounds = array<i64: 2, 1>, scalar_prefetch = 0 : i64, scratch_operands = 0 : i64, tpu.core_type = #tpu.core_type<tc>, window_params = [{transform_indices = @transform_0, window_bounds = array<i64: 1, 8, 32>}, {transform_indices = @transform_1, window_bounds = array<i64: 1, 8, 32>}, {transform_indices = @transform_2, window_bounds = array<i64: 1, 8, 32>}, {pipeline_mode = #tpu.pipeline_mode<synchronous>, transform_indices = @transform_3, window_bounds = array<i64: 1, 8, 32>}, {transform_indices = @transform_4, window_bounds = array<i64: 1, 1, 8>}, {pipeline_mode = #tpu.pipeline_mode<synchronous>, transform_indices = @transform_5, window_bounds = array<i64: 32, 32>}, {pipeline_mode = #tpu.pipeline_mode<synchronous>, transform_indices = @transform_6, window_bounds = array<i64: 1, 32>}, {pipeline_mode = #tpu.pipeline_mode<synchronous>, transform_indices = @transform_7, window_bounds = array<i64: 32, 32>}, {pipeline_mode = #tpu.pipeline_mode<synchronous>, transform_indices = @transform_8, window_bounds = array<i64: 1, 32>}, {pipeline_mode = #tpu.pipeline_mode<synchronous>, transform_indices = @transform_9, window_bounds = array<i64: 32, 32>}, {pipeline_mode = #tpu.pipeline_mode<synchronous>, transform_indices = @transform_10, window_bounds = array<i64: 1, 32>}, {pipeline_mode = #tpu.pipeline_mode<synchronous>, transform_indices = @transform_11, window_bounds = array<i64: 32, 32>}, {pipeline_mode = #tpu.pipeline_mode<synchronous>, transform_indices = @transform_12, window_bounds = array<i64: 1, 32>}, {pipeline_mode = #tpu.pipeline_mode<synchronous>, transform_indices = @transform_13, window_bounds = array<i64: 32, 64>}, {pipeline_mode = #tpu.pipeline_mode<synchronous>, transform_indices = @transform_14, window_bounds = array<i64: 1, 64>}, {pipeline_mode = #tpu.pipeline_mode<synchronous>, transform_indices = @transform_15, window_bounds = array<i64: 64, 32>}, {pipeline_mode = #tpu.pipeline_mode<synchronous>, transform_indices = @transform_16, window_bounds = array<i64: 1, 32>}, {pipeline_mode = #tpu.pipeline_mode<synchronous>, transform_indices = @transform_17, window_bounds = array<i64: 1, 32>}, {pipeline_mode = #tpu.pipeline_mode<synchronous>, transform_indices = @transform_18, window_bounds = array<i64: 1, 32>}, {pipeline_mode = #tpu.pipeline_mode<synchronous>, transform_indices = @transform_19, window_bounds = array<i64: 1, 32>}, {pipeline_mode = #tpu.pipeline_mode<synchronous>, transform_indices = @transform_20, window_bounds = array<i64: 1, 32>}, {transform_indices = @transform_21, window_bounds = array<i64: 1, 8, 32>}]} {
    %c0 = arith.constant 0 : index
    %c0_0 = arith.constant 0 : index
    %c0_1 = arith.constant 0 : index
    %0 = vector.load %arg2[%c0, %c0_0, %c0_1] : memref<1x8x32xf32, #tpu.memory_space<vmem>>, vector<1x8x32xf32>
    %1 = vector.shape_cast %0 : vector<1x8x32xf32> to vector<8x32xf32>
    %c0_2 = arith.constant 0 : index
    %c0_3 = arith.constant 0 : index
    %c0_4 = arith.constant 0 : index
    %2 = vector.load %arg3[%c0_2, %c0_3, %c0_4] : memref<1x8x32xf32, #tpu.memory_space<vmem>>, vector<1x8x32xf32>
    %3 = vector.shape_cast %2 : vector<1x8x32xf32> to vector<8x32xf32>
    %c0_5 = arith.constant 0 : index
    %c0_6 = arith.constant 0 : index
    %c0_7 = arith.constant 0 : index
    %4 = vector.load %arg6[%c0_5, %c0_6, %c0_7] : memref<1x1x8xf32, #tpu.memory_space<vmem>>, vector<1x1x8xf32>
    %5 = vector.shape_cast %4 : vector<1x1x8xf32> to vector<1x8xf32>
    %c0_8 = arith.constant 0 : index
    %c0_9 = arith.constant 0 : index
    %c0_10 = arith.constant 0 : index
    %6 = vector.load %arg4[%c0_8, %c0_9, %c0_10] : memref<1x8x32xf32, #tpu.memory_space<vmem>>, vector<1x8x32xf32>
    %7 = vector.shape_cast %6 : vector<1x8x32xf32> to vector<8x32xf32>
    %8 = arith.addf %1, %7 : vector<8x32xf32>
    %c0_11 = arith.constant 0 : index
    %c0_12 = arith.constant 0 : index
    %c0_13 = arith.constant 0 : index
    %9 = vector.load %arg5[%c0_11, %c0_12, %c0_13] : memref<1x8x32xf32, #tpu.memory_space<vmem>>, vector<1x8x32xf32>
    %10 = vector.shape_cast %9 : vector<1x8x32xf32> to vector<8x32xf32>
    %11 = arith.addf %3, %10 : vector<8x32xf32>
    %12 = arith.truncf %8 : vector<8x32xf32> to vector<8x32xbf16>
    %c0_14 = arith.constant 0 : index
    %c0_15 = arith.constant 0 : index
    %13 = vector.load %arg7[%c0_14, %c0_15] : memref<32x32xbf16, #tpu.memory_space<vmem>>, vector<32x32xbf16>
    %cst = arith.constant dense<0.000000e+00> : vector<8x32xf32>
    %14 = tpu.matmul %12, %13, %cst {dimension_numbers = #tpu.dot_dimension_numbers<[1], [0], [0], [1], [0, 0, 1, 1], [], []>} : vector<8x32xbf16>, vector<32x32xbf16>, vector<8x32xf32> -> vector<8x32xf32>
    %c0_16 = arith.constant 0 : index
    %c0_17 = arith.constant 0 : index
    %15 = vector.load %arg8[%c0_16, %c0_17] : memref<1x32xf32, #tpu.memory_space<vmem>>, vector<1x32xf32>
    %16 = vector.broadcast %15 : vector<1x32xf32> to vector<8x32xf32>
    %17 = arith.addf %14, %16 : vector<8x32xf32>
    %18 = arith.truncf %11 : vector<8x32xf32> to vector<8x32xbf16>
    %c0_18 = arith.constant 0 : index
    %c0_19 = arith.constant 0 : index
    %19 = vector.load %arg9[%c0_18, %c0_19] : memref<32x32xbf16, #tpu.memory_space<vmem>>, vector<32x32xbf16>
    %cst_20 = arith.constant dense<0.000000e+00> : vector<8x32xf32>
    %20 = tpu.matmul %18, %19, %cst_20 {dimension_numbers = #tpu.dot_dimension_numbers<[1], [0], [0], [1], [0, 0, 1, 1], [], []>} : vector<8x32xbf16>, vector<32x32xbf16>, vector<8x32xf32> -> vector<8x32xf32>
    %c0_21 = arith.constant 0 : index
    %c0_22 = arith.constant 0 : index
    %21 = vector.load %arg10[%c0_21, %c0_22] : memref<1x32xf32, #tpu.memory_space<vmem>>, vector<1x32xf32>
    %22 = vector.broadcast %21 : vector<1x32xf32> to vector<8x32xf32>
    %23 = arith.addf %20, %22 : vector<8x32xf32>
    %24 = arith.truncf %3 : vector<8x32xf32> to vector<8x32xbf16>
    %c0_23 = arith.constant 0 : index
    %c0_24 = arith.constant 0 : index
    %25 = vector.load %arg11[%c0_23, %c0_24] : memref<32x32xbf16, #tpu.memory_space<vmem>>, vector<32x32xbf16>
    %cst_25 = arith.constant dense<0.000000e+00> : vector<8x32xf32>
    %26 = tpu.matmul %24, %25, %cst_25 {dimension_numbers = #tpu.dot_dimension_numbers<[1], [0], [0], [1], [0, 0, 1, 1], [], []>} : vector<8x32xbf16>, vector<32x32xbf16>, vector<8x32xf32> -> vector<8x32xf32>
    %c0_26 = arith.constant 0 : index
    %c0_27 = arith.constant 0 : index
    %27 = vector.load %arg12[%c0_26, %c0_27] : memref<1x32xf32, #tpu.memory_space<vmem>>, vector<1x32xf32>
    %28 = vector.broadcast %27 : vector<1x32xf32> to vector<8x32xf32>
    %29 = arith.addf %26, %28 : vector<8x32xf32>
    %cst_28 = arith.constant 0.353553385 : f32
    %30 = vector.broadcast %cst_28 : f32 to vector<8x32xf32>
    %31 = arith.mulf %17, %30 : vector<8x32xf32>
    %32 = arith.truncf %31 : vector<8x32xf32> to vector<8x32xbf16>
    %33 = arith.truncf %23 : vector<8x32xf32> to vector<8x32xbf16>
    %34 = arith.truncf %29 : vector<8x32xf32> to vector<8x32xbf16>
    %c0_29 = arith.constant 0 : index
    %c0_30 = arith.constant 0 : index
    %35 = vector.load %arg13[%c0_29, %c0_30] : memref<32x32xbf16, #tpu.memory_space<vmem>>, vector<32x32xbf16>
    %36 = vector.shape_cast %5 : vector<1x8xf32> to vector<1x8xf32>
    %37 = vector.broadcast %36 : vector<1x8xf32> to vector<8x8xf32>
    %38 = vector.extract_strided_slice %32 {offsets = [0, 0], sizes = [8, 8], strides = [1, 1]} : vector<8x32xbf16> to vector<8x8xbf16>
    %39 = vector.extract_strided_slice %33 {offsets = [0, 0], sizes = [8, 8], strides = [1, 1]} : vector<8x32xbf16> to vector<8x8xbf16>
    "tpu.trace_start"() <{level = 10 : i32, message = "qd,kd->qk"}> : () -> ()
    %cst_31 = arith.constant dense<0.000000e+00> : vector<8x8xf32>
    %40 = tpu.matmul %38, %39, %cst_31 {dimension_numbers = #tpu.dot_dimension_numbers<[1], [1], [0], [0], [0, 0, 1, 0], [], []>} : vector<8x8xbf16>, vector<8x8xbf16>, vector<8x8xf32> -> vector<8x8xf32>
    "tpu.trace_stop"() : () -> ()
    %41 = arith.addf %40, %37 : vector<8x8xf32>
    %cst_32 = arith.constant dense<0xFF800000> : vector<8xf32>
    %42 = vector.multi_reduction <maximumf>, %41, %cst_32 [1] : vector<8x8xf32> to vector<8xf32>
    %43 = vector.shape_cast %42 : vector<8xf32> to vector<8x1xf32>
    %44 = vector.broadcast %43 : vector<8x1xf32> to vector<8x8xf32>
    %45 = arith.subf %41, %44 : vector<8x8xf32>
    %46 = math.exp %45 : vector<8x8xf32>
    %cst_33 = arith.constant dense<0.000000e+00> : vector<8xf32>
    %47 = vector.multi_reduction <add>, %46, %cst_33 [1] : vector<8x8xf32> to vector<8xf32>
    %48 = vector.shape_cast %47 : vector<8xf32> to vector<8x1xf32>
    %49 = tpu.reciprocal %48 {approx = true} : vector<8x1xf32> -> vector<8x1xf32>
    %50 = vector.broadcast %49 : vector<8x1xf32> to vector<8x8xf32>
    %51 = arith.mulf %46, %50 : vector<8x8xf32>
    %52 = arith.truncf %51 : vector<8x8xf32> to vector<8x8xbf16>
    %53 = vector.extract_strided_slice %34 {offsets = [0, 0], sizes = [8, 8], strides = [1, 1]} : vector<8x32xbf16> to vector<8x8xbf16>
    %cst_34 = arith.constant dense<0.000000e+00> : vector<8x8xf32>
    %54 = tpu.matmul %52, %53, %cst_34 {dimension_numbers = #tpu.dot_dimension_numbers<[1], [0], [0], [1], [0, 0, 1, 1], [], []>} : vector<8x8xbf16>, vector<8x8xbf16>, vector<8x8xf32> -> vector<8x8xf32>
    %55 = arith.truncf %54 : vector<8x8xf32> to vector<8x8xbf16>
    %56 = vector.extract_strided_slice %35 {offsets = [0, 0], sizes = [8, 32], strides = [1, 1]} : vector<32x32xbf16> to vector<8x32xbf16>
    %cst_35 = arith.constant dense<0.000000e+00> : vector<8x32xf32>
    %57 = tpu.matmul %55, %56, %cst_35 {dimension_numbers = #tpu.dot_dimension_numbers<[1], [0], [0], [1], [0, 0, 1, 1], [], []>} : vector<8x8xbf16>, vector<8x32xbf16>, vector<8x32xf32> -> vector<8x32xf32>
    %58 = vector.extract_strided_slice %32 {offsets = [0, 8], sizes = [8, 8], strides = [1, 1]} : vector<8x32xbf16> to vector<8x8xbf16>
    %59 = vector.extract_strided_slice %33 {offsets = [0, 8], sizes = [8, 8], strides = [1, 1]} : vector<8x32xbf16> to vector<8x8xbf16>
    "tpu.trace_start"() <{level = 10 : i32, message = "qd,kd->qk"}> : () -> ()
    %cst_36 = arith.constant dense<0.000000e+00> : vector<8x8xf32>
    %60 = tpu.matmul %58, %59, %cst_36 {dimension_numbers = #tpu.dot_dimension_numbers<[1], [1], [0], [0], [0, 0, 1, 0], [], []>} : vector<8x8xbf16>, vector<8x8xbf16>, vector<8x8xf32> -> vector<8x8xf32>
    "tpu.trace_stop"() : () -> ()
    %61 = arith.addf %60, %37 : vector<8x8xf32>
    %cst_37 = arith.constant dense<0xFF800000> : vector<8xf32>
    %62 = vector.multi_reduction <maximumf>, %61, %cst_37 [1] : vector<8x8xf32> to vector<8xf32>
    %63 = vector.shape_cast %62 : vector<8xf32> to vector<8x1xf32>
    %64 = vector.broadcast %63 : vector<8x1xf32> to vector<8x8xf32>
    %65 = arith.subf %61, %64 : vector<8x8xf32>
    %66 = math.exp %65 : vector<8x8xf32>
    %cst_38 = arith.constant dense<0.000000e+00> : vector<8xf32>
    %67 = vector.multi_reduction <add>, %66, %cst_38 [1] : vector<8x8xf32> to vector<8xf32>
    %68 = vector.shape_cast %67 : vector<8xf32> to vector<8x1xf32>
    %69 = tpu.reciprocal %68 {approx = true} : vector<8x1xf32> -> vector<8x1xf32>
    %70 = vector.broadcast %69 : vector<8x1xf32> to vector<8x8xf32>
    %71 = arith.mulf %66, %70 : vector<8x8xf32>
    %72 = arith.truncf %71 : vector<8x8xf32> to vector<8x8xbf16>
    %73 = vector.extract_strided_slice %34 {offsets = [0, 8], sizes = [8, 8], strides = [1, 1]} : vector<8x32xbf16> to vector<8x8xbf16>
    %cst_39 = arith.constant dense<0.000000e+00> : vector<8x8xf32>
    %74 = tpu.matmul %72, %73, %cst_39 {dimension_numbers = #tpu.dot_dimension_numbers<[1], [0], [0], [1], [0, 0, 1, 1], [], []>} : vector<8x8xbf16>, vector<8x8xbf16>, vector<8x8xf32> -> vector<8x8xf32>
    %75 = arith.truncf %74 : vector<8x8xf32> to vector<8x8xbf16>
    %76 = vector.extract_strided_slice %35 {offsets = [8, 0], sizes = [8, 32], strides = [1, 1]} : vector<32x32xbf16> to vector<8x32xbf16>
    %cst_40 = arith.constant dense<0.000000e+00> : vector<8x32xf32>
    %77 = tpu.matmul %75, %76, %cst_40 {dimension_numbers = #tpu.dot_dimension_numbers<[1], [0], [0], [1], [0, 0, 1, 1], [], []>} : vector<8x8xbf16>, vector<8x32xbf16>, vector<8x32xf32> -> vector<8x32xf32>
    %78 = arith.addf %57, %77 : vector<8x32xf32>
    %79 = vector.extract_strided_slice %32 {offsets = [0, 16], sizes = [8, 8], strides = [1, 1]} : vector<8x32xbf16> to vector<8x8xbf16>
    %80 = vector.extract_strided_slice %33 {offsets = [0, 16], sizes = [8, 8], strides = [1, 1]} : vector<8x32xbf16> to vector<8x8xbf16>
    "tpu.trace_start"() <{level = 10 : i32, message = "qd,kd->qk"}> : () -> ()
    %cst_41 = arith.constant dense<0.000000e+00> : vector<8x8xf32>
    %81 = tpu.matmul %79, %80, %cst_41 {dimension_numbers = #tpu.dot_dimension_numbers<[1], [1], [0], [0], [0, 0, 1, 0], [], []>} : vector<8x8xbf16>, vector<8x8xbf16>, vector<8x8xf32> -> vector<8x8xf32>
    "tpu.trace_stop"() : () -> ()
    %82 = arith.addf %81, %37 : vector<8x8xf32>
    %cst_42 = arith.constant dense<0xFF800000> : vector<8xf32>
    %83 = vector.multi_reduction <maximumf>, %82, %cst_42 [1] : vector<8x8xf32> to vector<8xf32>
    %84 = vector.shape_cast %83 : vector<8xf32> to vector<8x1xf32>
    %85 = vector.broadcast %84 : vector<8x1xf32> to vector<8x8xf32>
    %86 = arith.subf %82, %85 : vector<8x8xf32>
    %87 = math.exp %86 : vector<8x8xf32>
    %cst_43 = arith.constant dense<0.000000e+00> : vector<8xf32>
    %88 = vector.multi_reduction <add>, %87, %cst_43 [1] : vector<8x8xf32> to vector<8xf32>
    %89 = vector.shape_cast %88 : vector<8xf32> to vector<8x1xf32>
    %90 = tpu.reciprocal %89 {approx = true} : vector<8x1xf32> -> vector<8x1xf32>
    %91 = vector.broadcast %90 : vector<8x1xf32> to vector<8x8xf32>
    %92 = arith.mulf %87, %91 : vector<8x8xf32>
    %93 = arith.truncf %92 : vector<8x8xf32> to vector<8x8xbf16>
    %94 = vector.extract_strided_slice %34 {offsets = [0, 16], sizes = [8, 8], strides = [1, 1]} : vector<8x32xbf16> to vector<8x8xbf16>
    %cst_44 = arith.constant dense<0.000000e+00> : vector<8x8xf32>
    %95 = tpu.matmul %93, %94, %cst_44 {dimension_numbers = #tpu.dot_dimension_numbers<[1], [0], [0], [1], [0, 0, 1, 1], [], []>} : vector<8x8xbf16>, vector<8x8xbf16>, vector<8x8xf32> -> vector<8x8xf32>
    %96 = arith.truncf %95 : vector<8x8xf32> to vector<8x8xbf16>
    %97 = vector.extract_strided_slice %35 {offsets = [16, 0], sizes = [8, 32], strides = [1, 1]} : vector<32x32xbf16> to vector<8x32xbf16>
    %cst_45 = arith.constant dense<0.000000e+00> : vector<8x32xf32>
    %98 = tpu.matmul %96, %97, %cst_45 {dimension_numbers = #tpu.dot_dimension_numbers<[1], [0], [0], [1], [0, 0, 1, 1], [], []>} : vector<8x8xbf16>, vector<8x32xbf16>, vector<8x32xf32> -> vector<8x32xf32>
    %99 = arith.addf %78, %98 : vector<8x32xf32>
    %100 = vector.extract_strided_slice %32 {offsets = [0, 24], sizes = [8, 8], strides = [1, 1]} : vector<8x32xbf16> to vector<8x8xbf16>
    %101 = vector.extract_strided_slice %33 {offsets = [0, 24], sizes = [8, 8], strides = [1, 1]} : vector<8x32xbf16> to vector<8x8xbf16>
    "tpu.trace_start"() <{level = 10 : i32, message = "qd,kd->qk"}> : () -> ()
    %cst_46 = arith.constant dense<0.000000e+00> : vector<8x8xf32>
    %102 = tpu.matmul %100, %101, %cst_46 {dimension_numbers = #tpu.dot_dimension_numbers<[1], [1], [0], [0], [0, 0, 1, 0], [], []>} : vector<8x8xbf16>, vector<8x8xbf16>, vector<8x8xf32> -> vector<8x8xf32>
    "tpu.trace_stop"() : () -> ()
    %103 = arith.addf %102, %37 : vector<8x8xf32>
    %cst_47 = arith.constant dense<0xFF800000> : vector<8xf32>
    %104 = vector.multi_reduction <maximumf>, %103, %cst_47 [1] : vector<8x8xf32> to vector<8xf32>
    %105 = vector.shape_cast %104 : vector<8xf32> to vector<8x1xf32>
    %106 = vector.broadcast %105 : vector<8x1xf32> to vector<8x8xf32>
    %107 = arith.subf %103, %106 : vector<8x8xf32>
    %108 = math.exp %107 : vector<8x8xf32>
    %cst_48 = arith.constant dense<0.000000e+00> : vector<8xf32>
    %109 = vector.multi_reduction <add>, %108, %cst_48 [1] : vector<8x8xf32> to vector<8xf32>
    %110 = vector.shape_cast %109 : vector<8xf32> to vector<8x1xf32>
    %111 = tpu.reciprocal %110 {approx = true} : vector<8x1xf32> -> vector<8x1xf32>
    %112 = vector.broadcast %111 : vector<8x1xf32> to vector<8x8xf32>
    %113 = arith.mulf %108, %112 : vector<8x8xf32>
    %114 = arith.truncf %113 : vector<8x8xf32> to vector<8x8xbf16>
    %115 = vector.extract_strided_slice %34 {offsets = [0, 24], sizes = [8, 8], strides = [1, 1]} : vector<8x32xbf16> to vector<8x8xbf16>
    %cst_49 = arith.constant dense<0.000000e+00> : vector<8x8xf32>
    %116 = tpu.matmul %114, %115, %cst_49 {dimension_numbers = #tpu.dot_dimension_numbers<[1], [0], [0], [1], [0, 0, 1, 1], [], []>} : vector<8x8xbf16>, vector<8x8xbf16>, vector<8x8xf32> -> vector<8x8xf32>
    %117 = arith.truncf %116 : vector<8x8xf32> to vector<8x8xbf16>
    %118 = vector.extract_strided_slice %35 {offsets = [24, 0], sizes = [8, 32], strides = [1, 1]} : vector<32x32xbf16> to vector<8x32xbf16>
    %cst_50 = arith.constant dense<0.000000e+00> : vector<8x32xf32>
    %119 = tpu.matmul %117, %118, %cst_50 {dimension_numbers = #tpu.dot_dimension_numbers<[1], [0], [0], [1], [0, 0, 1, 1], [], []>} : vector<8x8xbf16>, vector<8x32xbf16>, vector<8x32xf32> -> vector<8x32xf32>
    %120 = arith.addf %99, %119 : vector<8x32xf32>
    %c0_51 = arith.constant 0 : index
    %c0_52 = arith.constant 0 : index
    %121 = vector.load %arg14[%c0_51, %c0_52] : memref<1x32xf32, #tpu.memory_space<vmem>>, vector<1x32xf32>
    %122 = vector.broadcast %121 : vector<1x32xf32> to vector<8x32xf32>
    %123 = arith.addf %120, %122 : vector<8x32xf32>
    %124 = arith.addf %1, %123 : vector<8x32xf32>
    %c0_53 = arith.constant 0 : index
    %c0_54 = arith.constant 0 : index
    %125 = vector.load %arg19[%c0_53, %c0_54] : memref<1x32xf32, #tpu.memory_space<vmem>>, vector<1x32xf32>
    %c0_55 = arith.constant 0 : index
    %c0_56 = arith.constant 0 : index
    %126 = vector.load %arg20[%c0_55, %c0_56] : memref<1x32xf32, #tpu.memory_space<vmem>>, vector<1x32xf32>
    %cst_57 = arith.constant dense<0.000000e+00> : vector<8xf32>
    %127 = vector.multi_reduction <add>, %124, %cst_57 [1] : vector<8x32xf32> to vector<8xf32>
    %128 = vector.shape_cast %127 : vector<8xf32> to vector<8x1xf32>
    %cst_58 = arith.constant 3.200000e+01 : f32
    %129 = vector.broadcast %cst_58 : f32 to vector<8x1xf32>
    %130 = arith.divf %128, %129 : vector<8x1xf32>
    %131 = vector.broadcast %130 : vector<8x1xf32> to vector<8x32xf32>
    %132 = arith.subf %124, %131 : vector<8x32xf32>
    %133 = arith.mulf %132, %132 : vector<8x32xf32>
    %cst_59 = arith.constant dense<0.000000e+00> : vector<8xf32>
    %134 = vector.multi_reduction <add>, %133, %cst_59 [1] : vector<8x32xf32> to vector<8xf32>
    %135 = vector.shape_cast %134 : vector<8xf32> to vector<8x1xf32>
    %cst_60 = arith.constant 3.200000e+01 : f32
    %136 = vector.broadcast %cst_60 : f32 to vector<8x1xf32>
    %137 = arith.divf %135, %136 : vector<8x1xf32>
    %cst_61 = arith.constant 9.99999974E-6 : f32
    %138 = vector.broadcast %cst_61 : f32 to vector<8x1xf32>
    %139 = arith.addf %137, %138 : vector<8x1xf32>
    %140 = math.rsqrt %139 : vector<8x1xf32>
    %141 = vector.broadcast %140 : vector<8x1xf32> to vector<8x32xf32>
    %142 = arith.mulf %132, %141 : vector<8x32xf32>
    %143 = vector.broadcast %125 : vector<1x32xf32> to vector<8x32xf32>
    %144 = arith.mulf %142, %143 : vector<8x32xf32>
    %145 = vector.broadcast %126 : vector<1x32xf32> to vector<8x32xf32>
    %146 = arith.addf %144, %145 : vector<8x32xf32>
    %147 = arith.truncf %146 : vector<8x32xf32> to vector<8x32xbf16>
    %c0_62 = arith.constant 0 : index
    %c0_63 = arith.constant 0 : index
    %148 = vector.load %arg15[%c0_62, %c0_63] : memref<32x64xbf16, #tpu.memory_space<vmem>>, vector<32x64xbf16>
    %cst_64 = arith.constant dense<0.000000e+00> : vector<8x64xf32>
    %149 = tpu.matmul %147, %148, %cst_64 {dimension_numbers = #tpu.dot_dimension_numbers<[1], [0], [0], [1], [0, 0, 1, 1], [], []>} : vector<8x32xbf16>, vector<32x64xbf16>, vector<8x64xf32> -> vector<8x64xf32>
    %c0_65 = arith.constant 0 : index
    %c0_66 = arith.constant 0 : index
    %150 = vector.load %arg16[%c0_65, %c0_66] : memref<1x64xf32, #tpu.memory_space<vmem>>, vector<1x64xf32>
    %151 = vector.broadcast %150 : vector<1x64xf32> to vector<8x64xf32>
    %152 = arith.addf %149, %151 : vector<8x64xf32>
    %cst_67 = arith.constant 0.000000e+00 : f32
    %153 = vector.broadcast %cst_67 : f32 to vector<8x64xf32>
    %154 = arith.maximumf %152, %153 : vector<8x64xf32>
    %155 = arith.truncf %154 : vector<8x64xf32> to vector<8x64xbf16>
    %c0_68 = arith.constant 0 : index
    %c0_69 = arith.constant 0 : index
    %156 = vector.load %arg17[%c0_68, %c0_69] : memref<64x32xbf16, #tpu.memory_space<vmem>>, vector<64x32xbf16>
    %cst_70 = arith.constant dense<0.000000e+00> : vector<8x32xf32>
    %157 = tpu.matmul %155, %156, %cst_70 {dimension_numbers = #tpu.dot_dimension_numbers<[1], [0], [0], [1], [0, 0, 1, 1], [], []>} : vector<8x64xbf16>, vector<64x32xbf16>, vector<8x32xf32> -> vector<8x32xf32>
    %c0_71 = arith.constant 0 : index
    %c0_72 = arith.constant 0 : index
    %158 = vector.load %arg18[%c0_71, %c0_72] : memref<1x32xf32, #tpu.memory_space<vmem>>, vector<1x32xf32>
    %159 = vector.broadcast %158 : vector<1x32xf32> to vector<8x32xf32>
    %160 = arith.addf %157, %159 : vector<8x32xf32>
    %161 = arith.addf %146, %160 : vector<8x32xf32>
    %c0_73 = arith.constant 0 : index
    %c0_74 = arith.constant 0 : index
    %162 = vector.load %arg21[%c0_73, %c0_74] : memref<1x32xf32, #tpu.memory_space<vmem>>, vector<1x32xf32>
    %c0_75 = arith.constant 0 : index
    %c0_76 = arith.constant 0 : index
    %163 = vector.load %arg22[%c0_75, %c0_76] : memref<1x32xf32, #tpu.memory_space<vmem>>, vector<1x32xf32>
    %cst_77 = arith.constant dense<0.000000e+00> : vector<8xf32>
    %164 = vector.multi_reduction <add>, %161, %cst_77 [1] : vector<8x32xf32> to vector<8xf32>
    %165 = vector.shape_cast %164 : vector<8xf32> to vector<8x1xf32>
    %cst_78 = arith.constant 3.200000e+01 : f32
    %166 = vector.broadcast %cst_78 : f32 to vector<8x1xf32>
    %167 = arith.divf %165, %166 : vector<8x1xf32>
    %168 = vector.broadcast %167 : vector<8x1xf32> to vector<8x32xf32>
    %169 = arith.subf %161, %168 : vector<8x32xf32>
    %170 = arith.mulf %169, %169 : vector<8x32xf32>
    %cst_79 = arith.constant dense<0.000000e+00> : vector<8xf32>
    %171 = vector.multi_reduction <add>, %170, %cst_79 [1] : vector<8x32xf32> to vector<8xf32>
    %172 = vector.shape_cast %171 : vector<8xf32> to vector<8x1xf32>
    %cst_80 = arith.constant 3.200000e+01 : f32
    %173 = vector.broadcast %cst_80 : f32 to vector<8x1xf32>
    %174 = arith.divf %172, %173 : vector<8x1xf32>
    %cst_81 = arith.constant 9.99999974E-6 : f32
    %175 = vector.broadcast %cst_81 : f32 to vector<8x1xf32>
    %176 = arith.addf %174, %175 : vector<8x1xf32>
    %177 = math.rsqrt %176 : vector<8x1xf32>
    %178 = vector.broadcast %177 : vector<8x1xf32> to vector<8x32xf32>
    %179 = arith.mulf %169, %178 : vector<8x32xf32>
    %180 = vector.broadcast %162 : vector<1x32xf32> to vector<8x32xf32>
    %181 = arith.mulf %179, %180 : vector<8x32xf32>
    %182 = vector.broadcast %163 : vector<1x32xf32> to vector<8x32xf32>
    %183 = arith.addf %181, %182 : vector<8x32xf32>
    %c0_82 = arith.constant 0 : index
    %c0_83 = arith.constant 0 : index
    %c0_84 = arith.constant 0 : index
    %184 = vector.load %arg23[%c0_82, %c0_83, %c0_84] : memref<1x8x32xf32, #tpu.memory_space<vmem>>, vector<1x8x32xf32>
    %185 = vector.shape_cast %184 : vector<1x8x32xf32> to vector<8x32xf32>
    %186 = vector.shape_cast %183 : vector<8x32xf32> to vector<1x8x32xf32>
    tpu.vector_store %arg23[%c0_82, %c0_83, %c0_84], %186 {strides = array<i32>} : memref<1x8x32xf32, #tpu.memory_space<vmem>>, vector<1x8x32xf32>,
    return
  }
  func.func @transform_0(%arg0: i32, %arg1: i32) -> (i32, i32, i32) {
    %c0_i32 = arith.constant 0 : i32
    %c0_i32_0 = arith.constant 0 : i32
    return %arg0, %arg1, %c0_i32 : i32, i32, i32
  }
  func.func @transform_1(%arg0: i32, %arg1: i32) -> (i32, i32, i32) {
    %c0_i32 = arith.constant 0 : i32
    %c0_i32_0 = arith.constant 0 : i32
    %c0_i32_1 = arith.constant 0 : i32
    return %arg0, %c0_i32, %c0_i32_0 : i32, i32, i32
  }
  func.func @transform_2(%arg0: i32, %arg1: i32) -> (i32, i32, i32) {
    %c0_i32 = arith.constant 0 : i32
    %c0_i32_0 = arith.constant 0 : i32
    %c0_i32_1 = arith.constant 0 : i32
    return %c0_i32, %arg1, %c0_i32_0 : i32, i32, i32
  }
  func.func @transform_3(%arg0: i32, %arg1: i32) -> (i32, i32, i32) {
    %c0_i32 = arith.constant 0 : i32
    %c0_i32_0 = arith.constant 0 : i32
    %c0_i32_1 = arith.constant 0 : i32
    %c0_i32_2 = arith.constant 0 : i32
    return %c0_i32, %c0_i32_0, %c0_i32_1 : i32, i32, i32
  }
  func.func @transform_4(%arg0: i32, %arg1: i32) -> (i32, i32, i32) {
    %c0_i32 = arith.constant 0 : i32
    %c0_i32_0 = arith.constant 0 : i32
    %c0_i32_1 = arith.constant 0 : i32
    return %arg0, %c0_i32, %c0_i32_0 : i32, i32, i32
  }
  func.func @transform_5(%arg0: i32, %arg1: i32) -> (i32, i32) {
    %c0_i32 = arith.constant 0 : i32
    %c0_i32_0 = arith.constant 0 : i32
    %c0_i32_1 = arith.constant 0 : i32
    return %c0_i32, %c0_i32_0 : i32, i32
  }
  func.func @transform_6(%arg0: i32, %arg1: i32) -> (i32, i32) {
    %c0_i32 = arith.constant 0 : i32
    %c0_i32_0 = arith.constant 0 : i32
    %c0_i32_1 = arith.constant 0 : i32
    return %c0_i32, %c0_i32_0 : i32, i32
  }
  func.func @transform_7(%arg0: i32, %arg1: i32) -> (i32, i32) {
    %c0_i32 = arith.constant 0 : i32
    %c0_i32_0 = arith.constant 0 : i32
    %c0_i32_1 = arith.constant 0 : i32
    return %c0_i32, %c0_i32_0 : i32, i32
  }
  func.func @transform_8(%arg0: i32, %arg1: i32) -> (i32, i32) {
    %c0_i32 = arith.constant 0 : i32
    %c0_i32_0 = arith.constant 0 : i32
    %c0_i32_1 = arith.constant 0 : i32
    return %c0_i32, %c0_i32_0 : i32, i32
  }
  func.func @transform_9(%arg0: i32, %arg1: i32) -> (i32, i32) {
    %c0_i32 = arith.constant 0 : i32
    %c0_i32_0 = arith.constant 0 : i32
    %c0_i32_1 = arith.constant 0 : i32
    return %c0_i32, %c0_i32_0 : i32, i32
  }
  func.func @transform_10(%arg0: i32, %arg1: i32) -> (i32, i32) {
    %c0_i32 = arith.constant 0 : i32
    %c0_i32_0 = arith.constant 0 : i32
    %c0_i32_1 = arith.constant 0 : i32
    return %c0_i32, %c0_i32_0 : i32, i32
  }
  func.func @transform_11(%arg0: i32, %arg1: i32) -> (i32, i32) {
    %c0_i32 = arith.constant 0 : i32
    %c0_i32_0 = arith.constant 0 : i32
    %c0_i32_1 = arith.constant 0 : i32
    return %c0_i32, %c0_i32_0 : i32, i32
  }
  func.func @transform_12(%arg0: i32, %arg1: i32) -> (i32, i32) {
    %c0_i32 = arith.constant 0 : i32
    %c0_i32_0 = arith.constant 0 : i32
    %c0_i32_1 = arith.constant 0 : i32
    return %c0_i32, %c0_i32_0 : i32, i32
  }
  func.func @transform_13(%arg0: i32, %arg1: i32) -> (i32, i32) {
    %c0_i32 = arith.constant 0 : i32
    %c0_i32_0 = arith.constant 0 : i32
    %c0_i32_1 = arith.constant 0 : i32
    return %c0_i32, %c0_i32_0 : i32, i32
  }
  func.func @transform_14(%arg0: i32, %arg1: i32) -> (i32, i32) {
    %c0_i32 = arith.constant 0 : i32
    %c0_i32_0 = arith.constant 0 : i32
    %c0_i32_1 = arith.constant 0 : i32
    return %c0_i32, %c0_i32_0 : i32, i32
  }
  func.func @transform_15(%arg0: i32, %arg1: i32) -> (i32, i32) {
    %c0_i32 = arith.constant 0 : i32
    %c0_i32_0 = arith.constant 0 : i32
    %c0_i32_1 = arith.constant 0 : i32
    return %c0_i32, %c0_i32_0 : i32, i32
  }
  func.func @transform_16(%arg0: i32, %arg1: i32) -> (i32, i32) {
    %c0_i32 = arith.constant 0 : i32
    %c0_i32_0 = arith.constant 0 : i32
    %c0_i32_1 = arith.constant 0 : i32
    return %c0_i32, %c0_i32_0 : i32, i32
  }
  func.func @transform_17(%arg0: i32, %arg1: i32) -> (i32, i32) {
    %c0_i32 = arith.constant 0 : i32
    %c0_i32_0 = arith.constant 0 : i32
    %c0_i32_1 = arith.constant 0 : i32
    return %c0_i32, %c0_i32_0 : i32, i32
  }
  func.func @transform_18(%arg0: i32, %arg1: i32) -> (i32, i32) {
    %c0_i32 = arith.constant 0 : i32
    %c0_i32_0 = arith.constant 0 : i32
    %c0_i32_1 = arith.constant 0 : i32
    return %c0_i32, %c0_i32_0 : i32, i32
  }
  func.func @transform_19(%arg0: i32, %arg1: i32) -> (i32, i32) {
    %c0_i32 = arith.constant 0 : i32
    %c0_i32_0 = arith.constant 0 : i32
    %c0_i32_1 = arith.constant 0 : i32
    return %c0_i32, %c0_i32_0 : i32, i32
  }
  func.func @transform_20(%arg0: i32, %arg1: i32) -> (i32, i32) {
    %c0_i32 = arith.constant 0 : i32
    %c0_i32_0 = arith.constant 0 : i32
    %c0_i32_1 = arith.constant 0 : i32
    return %c0_i32, %c0_i32_0 : i32, i32
  }
  func.func @transform_21(%arg0: i32, %arg1: i32) -> (i32, i32, i32) {
    %c0_i32 = arith.constant 0 : i32
    %c0_i32_0 = arith.constant 0 : i32
    return %arg0, %arg1, %c0_i32 : i32, i32, i32
  }
}

module attributes {stable_mosaic.version = 11 : i64} {
  func.func @kernel(%arg0: i32, %arg1: i32, %arg2: memref<1x8x32xf32, #tpu.memory_space<vmem>>, %arg3: memref<1x8x32xf32, #tpu.memory_space<vmem>>, %arg4: memref<1x8x32xf32, #tpu.memory_space<vmem>>, %arg5: memref<1x8x32xf32, #tpu.memory_space<vmem>>, %arg6: memref<1x1x8xf32, #tpu.memory_space<vmem>>, %arg7: memref<32x32xbf16, #tpu.memory_space<vmem>>, %arg8: memref<1x32xf32, #tpu.memory_space<vmem>>, %arg9: memref<32x32xbf16, #tpu.memory_space<vmem>>, %arg10: memref<1x32xf32, #tpu.memory_space<vmem>>, %arg11: memref<32x32xbf16, #tpu.memory_space<vmem>>, %arg12: memref<1x32xf32, #tpu.memory_space<vmem>>, %arg13: memref<32x32xbf16, #tpu.memory_space<vmem>>, %arg14: memref<1x32xf32, #tpu.memory_space<vmem>>, %arg15: memref<32x64xbf16, #tpu.memory_space<vmem>>, %arg16: memref<1x64xf32, #tpu.memory_space<vmem>>, %arg17: memref<64x32xbf16, #tpu.memory_space<vmem>>, %arg18: memref<1x32xf32, #tpu.memory_space<vmem>>, %arg19: memref<1x32xf32, #tpu.memory_space<vmem>>, %arg20: memref<1x32xf32, #tpu.memory_space<vmem>>, %arg21: memref<1x32xf32, #tpu.memory_space<vmem>>, %arg22: memref<1x32xf32, #tpu.memory_space<vmem>>, %arg23: memref<1x8x32xf32, #tpu.memory_space<vmem>>) attributes {dimension_semantics = [#tpu.dimension_semantics<parallel>, #tpu.dimension_semantics<parallel>], iteration_bounds = array<i64: 2, 1>, scalar_prefetch = 0 : i64, scratch_operands = 0 : i64, tpu.core_type = #tpu.core_type<tc>, window_params = [{transform_indices = @transform_0, window_bounds = array<i64: 1, 8, 32>}, {transform_indices = @transform_1, window_bounds = array<i64: 1, 8, 32>}, {transform_indices = @transform_2, window_bounds = array<i64: 1, 8, 32>}, {pipeline_mode = #tpu.pipeline_mode<synchronous>, transform_indices = @transform_3, window_bounds = array<i64: 1, 8, 32>}, {transform_indices = @transform_4, window_bounds = array<i64: 1, 1, 8>}, {pipeline_mode = #tpu.pipeline_mode<synchronous>, transform_indices = @transform_5, window_bounds = array<i64: 32, 32>}, {pipeline_mode = #tpu.pipeline_mode<synchronous>, transform_indices = @transform_6, window_bounds = array<i64: 1, 32>}, {pipeline_mode = #tpu.pipeline_mode<synchronous>, transform_indices = @transform_7, window_bounds = array<i64: 32, 32>}, {pipeline_mode = #tpu.pipeline_mode<synchronous>, transform_indices = @transform_8, window_bounds = array<i64: 1, 32>}, {pipeline_mode = #tpu.pipeline_mode<synchronous>, transform_indices = @transform_9, window_bounds = array<i64: 32, 32>}, {pipeline_mode = #tpu.pipeline_mode<synchronous>, transform_indices = @transform_10, window_bounds = array<i64: 1, 32>}, {pipeline_mode = #tpu.pipeline_mode<synchronous>, transform_indices = @transform_11, window_bounds = array<i64: 32, 32>}, {pipeline_mode = #tpu.pipeline_mode<synchronous>, transform_indices = @transform_12, window_bounds = array<i64: 1, 32>}, {pipeline_mode = #tpu.pipeline_mode<synchronous>, transform_indices = @transform_13, window_bounds = array<i64: 32, 64>}, {pipeline_mode = #tpu.pipeline_mode<synchronous>, transform_indices = @transform_14, window_bounds = array<i64: 1, 64>}, {pipeline_mode = #tpu.pipeline_mode<synchronous>, transform_indices = @transform_15, window_bounds = array<i64: 64, 32>}, {pipeline_mode = #tpu.pipeline_mode<synchronous>, transform_indices = @transform_16, window_bounds = array<i64: 1, 32>}, {pipeline_mode = #tpu.pipeline_mode<synchronous>, transform_indices = @transform_17, window_bounds = array<i64: 1, 32>}, {pipeline_mode = #tpu.pipeline_mode<synchronous>, transform_indices = @transform_18, window_bounds = array<i64: 1, 32>}, {pipeline_mode = #tpu.pipeline_mode<synchronous>, transform_indices = @transform_19, window_bounds = array<i64: 1, 32>}, {pipeline_mode = #tpu.pipeline_mode<synchronous>, transform_indices = @transform_20, window_bounds = array<i64: 1, 32>}, {transform_indices = @transform_21, window_bounds = array<i64: 1, 8, 32>}]} {
    %c0 = arith.constant 0 : index
    %c0_0 = arith.constant 0 : index
    %c0_1 = arith.constant 0 : index
    %0 = vector.load %arg2[%c0, %c0_0, %c0_1] : memref<1x8x32xf32, #tpu.memory_space<vmem>>, vector<1x8x32xf32>
    %1 = vector.shape_cast %0 : vector<1x8x32xf32> to vector<8x32xf32>
    %c0_2 = arith.constant 0 : index
    %c0_3 = arith.constant 0 : index
    %c0_4 = arith.constant 0 : index
    %2 = vector.load %arg3[%c0_2, %c0_3, %c0_4] : memref<1x8x32xf32, #tpu.memory_space<vmem>>, vector<1x8x32xf32>
    %3 = vector.shape_cast %2 : vector<1x8x32xf32> to vector<8x32xf32>
    %c0_5 = arith.constant 0 : index
    %c0_6 = arith.constant 0 : index
    %c0_7 = arith.constant 0 : index
    %4 = vector.load %arg6[%c0_5, %c0_6, %c0_7] : memref<1x1x8xf32, #tpu.memory_space<vmem>>, vector<1x1x8xf32>
    %5 = vector.shape_cast %4 : vector<1x1x8xf32> to vector<1x8xf32>
    %c0_8 = arith.constant 0 : index
    %c0_9 = arith.constant 0 : index
    %c0_10 = arith.constant 0 : index
    %6 = vector.load %arg4[%c0_8, %c0_9, %c0_10] : memref<1x8x32xf32, #tpu.memory_space<vmem>>, vector<1x8x32xf32>
    %7 = vector.shape_cast %6 : vector<1x8x32xf32> to vector<8x32xf32>
    %8 = arith.addf %1, %7 : vector<8x32xf32>
    %c0_11 = arith.constant 0 : index
    %c0_12 = arith.constant 0 : index
    %c0_13 = arith.constant 0 : index
    %9 = vector.load %arg5[%c0_11, %c0_12, %c0_13] : memref<1x8x32xf32, #tpu.memory_space<vmem>>, vector<1x8x32xf32>
    %10 = vector.shape_cast %9 : vector<1x8x32xf32> to vector<8x32xf32>
    %11 = arith.addf %3, %10 : vector<8x32xf32>
    %12 = arith.truncf %8 : vector<8x32xf32> to vector<8x32xbf16>
    %c0_14 = arith.constant 0 : index
    %c0_15 = arith.constant 0 : index
    %13 = vector.load %arg7[%c0_14, %c0_15] : memref<32x32xbf16, #tpu.memory_space<vmem>>, vector<32x32xbf16>
    %cst = arith.constant dense<0.000000e+00> : vector<8x32xf32>
    %14 = tpu.matmul %12, %13, %cst {dimension_numbers = #tpu.dot_dimension_numbers<[1], [0], [0], [1], [0, 0, 1, 1], [], []>} : vector<8x32xbf16>, vector<32x32xbf16>, vector<8x32xf32> -> vector<8x32xf32>
    %c0_16 = arith.constant 0 : index
    %c0_17 = arith.constant 0 : index
    %15 = vector.load %arg8[%c0_16, %c0_17] : memref<1x32xf32, #tpu.memory_space<vmem>>, vector<1x32xf32>
    %16 = vector.broadcast %15 : vector<1x32xf32> to vector<8x32xf32>
    %17 = arith.addf %14, %16 : vector<8x32xf32>
    %18 = arith.truncf %11 : vector<8x32xf32> to vector<8x32xbf16>
    %c0_18 = arith.constant 0 : index
    %c0_19 = arith.constant 0 : index
    %19 = vector.load %arg9[%c0_18, %c0_19] : memref<32x32xbf16, #tpu.memory_space<vmem>>, vector<32x32xbf16>
    %cst_20 = arith.constant dense<0.000000e+00> : vector<8x32xf32>
    %20 = tpu.matmul %18, %19, %cst_20 {dimension_numbers = #tpu.dot_dimension_numbers<[1], [0], [0], [1], [0, 0, 1, 1], [], []>} : vector<8x32xbf16>, vector<32x32xbf16>, vector<8x32xf32> -> vector<8x32xf32>
    %c0_21 = arith.constant 0 : index
    %c0_22 = arith.constant 0 : index
    %21 = vector.load %arg10[%c0_21, %c0_22] : memref<1x32xf32, #tpu.memory_space<vmem>>, vector<1x32xf32>
    %22 = vector.broadcast %21 : vector<1x32xf32> to vector<8x32xf32>
    %23 = arith.addf %20, %22 : vector<8x32xf32>
    %24 = arith.truncf %3 : vector<8x32xf32> to vector<8x32xbf16>
    %c0_23 = arith.constant 0 : index
    %c0_24 = arith.constant 0 : index
    %25 = vector.load %arg11[%c0_23, %c0_24] : memref<32x32xbf16, #tpu.memory_space<vmem>>, vector<32x32xbf16>
    %cst_25 = arith.constant dense<0.000000e+00> : vector<8x32xf32>
    %26 = tpu.matmul %24, %25, %cst_25 {dimension_numbers = #tpu.dot_dimension_numbers<[1], [0], [0], [1], [0, 0, 1, 1], [], []>} : vector<8x32xbf16>, vector<32x32xbf16>, vector<8x32xf32> -> vector<8x32xf32>
    %c0_26 = arith.constant 0 : index
    %c0_27 = arith.constant 0 : index
    %27 = vector.load %arg12[%c0_26, %c0_27] : memref<1x32xf32, #tpu.memory_space<vmem>>, vector<1x32xf32>
    %28 = vector.broadcast %27 : vector<1x32xf32> to vector<8x32xf32>
    %29 = arith.addf %26, %28 : vector<8x32xf32>
    %cst_28 = arith.constant 0.353553385 : f32
    %30 = vector.broadcast %cst_28 : f32 to vector<8x32xf32>
    %31 = arith.mulf %17, %30 : vector<8x32xf32>
    %32 = arith.truncf %31 : vector<8x32xf32> to vector<8x32xbf16>
    %33 = arith.truncf %23 : vector<8x32xf32> to vector<8x32xbf16>
    %34 = arith.truncf %29 : vector<8x32xf32> to vector<8x32xbf16>
    %c0_29 = arith.constant 0 : index
    %c0_30 = arith.constant 0 : index
    %35 = vector.load %arg13[%c0_29, %c0_30] : memref<32x32xbf16, #tpu.memory_space<vmem>>, vector<32x32xbf16>
    %36 = vector.shape_cast %5 : vector<1x8xf32> to vector<1x8xf32>
    %37 = vector.broadcast %36 : vector<1x8xf32> to vector<8x8xf32>
    %38 = vector.extract_strided_slice %32 {offsets = [0, 0], sizes = [8, 8], strides = [1, 1]} : vector<8x32xbf16> to vector<8x8xbf16>
    %39 = vector.extract_strided_slice %33 {offsets = [0, 0], sizes = [8, 8], strides = [1, 1]} : vector<8x32xbf16> to vector<8x8xbf16>
    "tpu.trace_start"() <{level = 10 : i32, message = "qd,kd->qk"}> : () -> ()
    %cst_31 = arith.constant dense<0.000000e+00> : vector<8x8xf32>
    %40 = tpu.matmul %38, %39, %cst_31 {dimension_numbers = #tpu.dot_dimension_numbers<[1], [1], [0], [0], [0, 0, 1, 0], [], []>} : vector<8x8xbf16>, vector<8x8xbf16>, vector<8x8xf32> -> vector<8x8xf32>
    "tpu.trace_stop"() : () -> ()
    %41 = arith.addf %40, %37 : vector<8x8xf32>
    %cst_32 = arith.constant dense<0xFF800000> : vector<8xf32>
    %42 = vector.multi_reduction <maximumf>, %41, %cst_32 [1] : vector<8x8xf32> to vector<8xf32>
    %43 = vector.shape_cast %42 : vector<8xf32> to vector<8x1xf32>
    %44 = vector.broadcast %43 : vector<8x1xf32> to vector<8x8xf32>
    %45 = arith.subf %41, %44 : vector<8x8xf32>
    %46 = math.exp %45 : vector<8x8xf32>
    %cst_33 = arith.constant dense<0.000000e+00> : vector<8xf32>
    %47 = vector.multi_reduction <add>, %46, %cst_33 [1] : vector<8x8xf32> to vector<8xf32>
    %48 = vector.shape_cast %47 : vector<8xf32> to vector<8x1xf32>
    %49 = tpu.reciprocal %48 {approx = true} : vector<8x1xf32> -> vector<8x1xf32>
    %50 = vector.broadcast %49 : vector<8x1xf32> to vector<8x8xf32>
    %51 = arith.mulf %46, %50 : vector<8x8xf32>
    %52 = arith.truncf %51 : vector<8x8xf32> to vector<8x8xbf16>
    %53 = vector.extract_strided_slice %34 {offsets = [0, 0], sizes = [8, 8], strides = [1, 1]} : vector<8x32xbf16> to vector<8x8xbf16>
    %cst_34 = arith.constant dense<0.000000e+00> : vector<8x8xf32>
    %54 = tpu.matmul %52, %53, %cst_34 {dimension_numbers = #tpu.dot_dimension_numbers<[1], [0], [0], [1], [0, 0, 1, 1], [], []>} : vector<8x8xbf16>, vector<8x8xbf16>, vector<8x8xf32> -> vector<8x8xf32>
    %55 = arith.truncf %54 : vector<8x8xf32> to vector<8x8xbf16>
    %56 = vector.extract_strided_slice %35 {offsets = [0, 0], sizes = [8, 32], strides = [1, 1]} : vector<32x32xbf16> to vector<8x32xbf16>
    %cst_35 = arith.constant dense<0.000000e+00> : vector<8x32xf32>
    %57 = tpu.matmul %55, %56, %cst_35 {dimension_numbers = #tpu.dot_dimension_numbers<[1], [0], [0], [1], [0, 0, 1, 1], [], []>} : vector<8x8xbf16>, vector<8x32xbf16>, vector<8x32xf32> -> vector<8x32xf32>
    %58 = vector.extract_strided_slice %32 {offsets = [0, 8], sizes = [8, 8], strides = [1, 1]} : vector<8x32xbf16> to vector<8x8xbf16>
    %59 = vector.extract_strided_slice %33 {offsets = [0, 8], sizes = [8, 8], strides = [1, 1]} : vector<8x32xbf16> to vector<8x8xbf16>
    "tpu.trace_start"() <{level = 10 : i32, message = "qd,kd->qk"}> : () -> ()
    %cst_36 = arith.constant dense<0.000000e+00> : vector<8x8xf32>
    %60 = tpu.matmul %58, %59, %cst_36 {dimension_numbers = #tpu.dot_dimension_numbers<[1], [1], [0], [0], [0, 0, 1, 0], [], []>} : vector<8x8xbf16>, vector<8x8xbf16>, vector<8x8xf32> -> vector<8x8xf32>
    "tpu.trace_stop"() : () -> ()
    %61 = arith.addf %60, %37 : vector<8x8xf32>
    %cst_37 = arith.constant dense<0xFF800000> : vector<8xf32>
    %62 = vector.multi_reduction <maximumf>, %61, %cst_37 [1] : vector<8x8xf32> to vector<8xf32>
    %63 = vector.shape_cast %62 : vector<8xf32> to vector<8x1xf32>
    %64 = vector.broadcast %63 : vector<8x1xf32> to vector<8x8xf32>
    %65 = arith.subf %61, %64 : vector<8x8xf32>
    %66 = math.exp %65 : vector<8x8xf32>
    %cst_38 = arith.constant dense<0.000000e+00> : vector<8xf32>
    %67 = vector.multi_reduction <add>, %66, %cst_38 [1] : vector<8x8xf32> to vector<8xf32>
    %68 = vector.shape_cast %67 : vector<8xf32> to vector<8x1xf32>
    %69 = tpu.reciprocal %68 {approx = true} : vector<8x1xf32> -> vector<8x1xf32>
    %70 = vector.broadcast %69 : vector<8x1xf32> to vector<8x8xf32>
    %71 = arith.mulf %66, %70 : vector<8x8xf32>
    %72 = arith.truncf %71 : vector<8x8xf32> to vector<8x8xbf16>
    %73 = vector.extract_strided_slice %34 {offsets = [0, 8], sizes = [8, 8], strides = [1, 1]} : vector<8x32xbf16> to vector<8x8xbf16>
    %cst_39 = arith.constant dense<0.000000e+00> : vector<8x8xf32>
    %74 = tpu.matmul %72, %73, %cst_39 {dimension_numbers = #tpu.dot_dimension_numbers<[1], [0], [0], [1], [0, 0, 1, 1], [], []>} : vector<8x8xbf16>, vector<8x8xbf16>, vector<8x8xf32> -> vector<8x8xf32>
    %75 = arith.truncf %74 : vector<8x8xf32> to vector<8x8xbf16>
    %76 = vector.extract_strided_slice %35 {offsets = [8, 0], sizes = [8, 32], strides = [1, 1]} : vector<32x32xbf16> to vector<8x32xbf16>
    %cst_40 = arith.constant dense<0.000000e+00> : vector<8x32xf32>
    %77 = tpu.matmul %75, %76, %cst_40 {dimension_numbers = #tpu.dot_dimension_numbers<[1], [0], [0], [1], [0, 0, 1, 1], [], []>} : vector<8x8xbf16>, vector<8x32xbf16>, vector<8x32xf32> -> vector<8x32xf32>
    %78 = arith.addf %57, %77 : vector<8x32xf32>
    %79 = vector.extract_strided_slice %32 {offsets = [0, 16], sizes = [8, 8], strides = [1, 1]} : vector<8x32xbf16> to vector<8x8xbf16>
    %80 = vector.extract_strided_slice %33 {offsets = [0, 16], sizes = [8, 8], strides = [1, 1]} : vector<8x32xbf16> to vector<8x8xbf16>
    "tpu.trace_start"() <{level = 10 : i32, message = "qd,kd->qk"}> : () -> ()
    %cst_41 = arith.constant dense<0.000000e+00> : vector<8x8xf32>
    %81 = tpu.matmul %79, %80, %cst_41 {dimension_numbers = #tpu.dot_dimension_numbers<[1], [1], [0], [0], [0, 0, 1, 0], [], []>} : vector<8x8xbf16>, vector<8x8xbf16>, vector<8x8xf32> -> vector<8x8xf32>
    "tpu.trace_stop"() : () -> ()
    %82 = arith.addf %81, %37 : vector<8x8xf32>
    %cst_42 = arith.constant dense<0xFF800000> : vector<8xf32>
    %83 = vector.multi_reduction <maximumf>, %82, %cst_42 [1] : vector<8x8xf32> to vector<8xf32>
    %84 = vector.shape_cast %83 : vector<8xf32> to vector<8x1xf32>
    %85 = vector.broadcast %84 : vector<8x1xf32> to vector<8x8xf32>
    %86 = arith.subf %82, %85 : vector<8x8xf32>
    %87 = math.exp %86 : vector<8x8xf32>
    %cst_43 = arith.constant dense<0.000000e+00> : vector<8xf32>
    %88 = vector.multi_reduction <add>, %87, %cst_43 [1] : vector<8x8xf32> to vector<8xf32>
    %89 = vector.shape_cast %88 : vector<8xf32> to vector<8x1xf32>
    %90 = tpu.reciprocal %89 {approx = true} : vector<8x1xf32> -> vector<8x1xf32>
    %91 = vector.broadcast %90 : vector<8x1xf32> to vector<8x8xf32>
    %92 = arith.mulf %87, %91 : vector<8x8xf32>
    %93 = arith.truncf %92 : vector<8x8xf32> to vector<8x8xbf16>
    %94 = vector.extract_strided_slice %34 {offsets = [0, 16], sizes = [8, 8], strides = [1, 1]} : vector<8x32xbf16> to vector<8x8xbf16>
    %cst_44 = arith.constant dense<0.000000e+00> : vector<8x8xf32>
    %95 = tpu.matmul %93, %94, %cst_44 {dimension_numbers = #tpu.dot_dimension_numbers<[1], [0], [0], [1], [0, 0, 1, 1], [], []>} : vector<8x8xbf16>, vector<8x8xbf16>, vector<8x8xf32> -> vector<8x8xf32>
    %96 = arith.truncf %95 : vector<8x8xf32> to vector<8x8xbf16>
    %97 = vector.extract_strided_slice %35 {offsets = [16, 0], sizes = [8, 32], strides = [1, 1]} : vector<32x32xbf16> to vector<8x32xbf16>
    %cst_45 = arith.constant dense<0.000000e+00> : vector<8x32xf32>
    %98 = tpu.matmul %96, %97, %cst_45 {dimension_numbers = #tpu.dot_dimension_numbers<[1], [0], [0], [1], [0, 0, 1, 1], [], []>} : vector<8x8xbf16>, vector<8x32xbf16>, vector<8x32xf32> -> vector<8x32xf32>
    %99 = arith.addf %78, %98 : vector<8x32xf32>
    %100 = vector.extract_strided_slice %32 {offsets = [0, 24], sizes = [8, 8], strides = [1, 1]} : vector<8x32xbf16> to vector<8x8xbf16>
    %101 = vector.extract_strided_slice %33 {offsets = [0, 24], sizes = [8, 8], strides = [1, 1]} : vector<8x32xbf16> to vector<8x8xbf16>
    "tpu.trace_start"() <{level = 10 : i32, message = "qd,kd->qk"}> : () -> ()
    %cst_46 = arith.constant dense<0.000000e+00> : vector<8x8xf32>
    %102 = tpu.matmul %100, %101, %cst_46 {dimension_numbers = #tpu.dot_dimension_numbers<[1], [1], [0], [0], [0, 0, 1, 0], [], []>} : vector<8x8xbf16>, vector<8x8xbf16>, vector<8x8xf32> -> vector<8x8xf32>
    "tpu.trace_stop"() : () -> ()
    %103 = arith.addf %102, %37 : vector<8x8xf32>
    %cst_47 = arith.constant dense<0xFF800000> : vector<8xf32>
    %104 = vector.multi_reduction <maximumf>, %103, %cst_47 [1] : vector<8x8xf32> to vector<8xf32>
    %105 = vector.shape_cast %104 : vector<8xf32> to vector<8x1xf32>
    %106 = vector.broadcast %105 : vector<8x1xf32> to vector<8x8xf32>
    %107 = arith.subf %103, %106 : vector<8x8xf32>
    %108 = math.exp %107 : vector<8x8xf32>
    %cst_48 = arith.constant dense<0.000000e+00> : vector<8xf32>
    %109 = vector.multi_reduction <add>, %108, %cst_48 [1] : vector<8x8xf32> to vector<8xf32>
    %110 = vector.shape_cast %109 : vector<8xf32> to vector<8x1xf32>
    %111 = tpu.reciprocal %110 {approx = true} : vector<8x1xf32> -> vector<8x1xf32>
    %112 = vector.broadcast %111 : vector<8x1xf32> to vector<8x8xf32>
    %113 = arith.mulf %108, %112 : vector<8x8xf32>
    %114 = arith.truncf %113 : vector<8x8xf32> to vector<8x8xbf16>
    %115 = vector.extract_strided_slice %34 {offsets = [0, 24], sizes = [8, 8], strides = [1, 1]} : vector<8x32xbf16> to vector<8x8xbf16>
    %cst_49 = arith.constant dense<0.000000e+00> : vector<8x8xf32>
    %116 = tpu.matmul %114, %115, %cst_49 {dimension_numbers = #tpu.dot_dimension_numbers<[1], [0], [0], [1], [0, 0, 1, 1], [], []>} : vector<8x8xbf16>, vector<8x8xbf16>, vector<8x8xf32> -> vector<8x8xf32>
    %117 = arith.truncf %116 : vector<8x8xf32> to vector<8x8xbf16>
    %118 = vector.extract_strided_slice %35 {offsets = [24, 0], sizes = [8, 32], strides = [1, 1]} : vector<32x32xbf16> to vector<8x32xbf16>
    %cst_50 = arith.constant dense<0.000000e+00> : vector<8x32xf32>
    %119 = tpu.matmul %117, %118, %cst_50 {dimension_numbers = #tpu.dot_dimension_numbers<[1], [0], [0], [1], [0, 0, 1, 1], [], []>} : vector<8x8xbf16>, vector<8x32xbf16>, vector<8x32xf32> -> vector<8x32xf32>
    %120 = arith.addf %99, %119 : vector<8x32xf32>
    %c0_51 = arith.constant 0 : index
    %c0_52 = arith.constant 0 : index
    %121 = vector.load %arg14[%c0_51, %c0_52] : memref<1x32xf32, #tpu.memory_space<vmem>>, vector<1x32xf32>
    %122 = vector.broadcast %121 : vector<1x32xf32> to vector<8x32xf32>
    %123 = arith.addf %120, %122 : vector<8x32xf32>
    %124 = arith.addf %1, %123 : vector<8x32xf32>
    %c0_53 = arith.constant 0 : index
    %c0_54 = arith.constant 0 : index
    %125 = vector.load %arg19[%c0_53, %c0_54] : memref<1x32xf32, #tpu.memory_space<vmem>>, vector<1x32xf32>
    %c0_55 = arith.constant 0 : index
    %c0_56 = arith.constant 0 : index
    %126 = vector.load %arg20[%c0_55, %c0_56] : memref<1x32xf32, #tpu.memory_space<vmem>>, vector<1x32xf32>
    %cst_57 = arith.constant dense<0.000000e+00> : vector<8xf32>
    %127 = vector.multi_reduction <add>, %124, %cst_57 [1] : vector<8x32xf32> to vector<8xf32>
    %128 = vector.shape_cast %127 : vector<8xf32> to vector<8x1xf32>
    %cst_58 = arith.constant 3.200000e+01 : f32
    %129 = vector.broadcast %cst_58 : f32 to vector<8x1xf32>
    %130 = arith.divf %128, %129 : vector<8x1xf32>
    %131 = vector.broadcast %130 : vector<8x1xf32> to vector<8x32xf32>
    %132 = arith.subf %124, %131 : vector<8x32xf32>
    %133 = arith.mulf %132, %132 : vector<8x32xf32>
    %cst_59 = arith.constant dense<0.000000e+00> : vector<8xf32>
    %134 = vector.multi_reduction <add>, %133, %cst_59 [1] : vector<8x32xf32> to vector<8xf32>
    %135 = vector.shape_cast %134 : vector<8xf32> to vector<8x1xf32>
    %cst_60 = arith.constant 3.200000e+01 : f32
    %136 = vector.broadcast %cst_60 : f32 to vector<8x1xf32>
    %137 = arith.divf %135, %136 : vector<8x1xf32>
    %cst_61 = arith.constant 9.99999974E-6 : f32
    %138 = vector.broadcast %cst_61 : f32 to vector<8x1xf32>
    %139 = arith.addf %137, %138 : vector<8x1xf32>
    %140 = math.rsqrt %139 : vector<8x1xf32>
    %141 = vector.broadcast %140 : vector<8x1xf32> to vector<8x32xf32>
    %142 = arith.mulf %132, %141 : vector<8x32xf32>
    %143 = vector.broadcast %125 : vector<1x32xf32> to vector<8x32xf32>
    %144 = arith.mulf %142, %143 : vector<8x32xf32>
    %145 = vector.broadcast %126 : vector<1x32xf32> to vector<8x32xf32>
    %146 = arith.addf %144, %145 : vector<8x32xf32>
    %147 = arith.truncf %146 : vector<8x32xf32> to vector<8x32xbf16>
    %c0_62 = arith.constant 0 : index
    %c0_63 = arith.constant 0 : index
    %148 = vector.load %arg15[%c0_62, %c0_63] : memref<32x64xbf16, #tpu.memory_space<vmem>>, vector<32x64xbf16>
    %cst_64 = arith.constant dense<0.000000e+00> : vector<8x64xf32>
    %149 = tpu.matmul %147, %148, %cst_64 {dimension_numbers = #tpu.dot_dimension_numbers<[1], [0], [0], [1], [0, 0, 1, 1], [], []>} : vector<8x32xbf16>, vector<32x64xbf16>, vector<8x64xf32> -> vector<8x64xf32>
    %c0_65 = arith.constant 0 : index
    %c0_66 = arith.constant 0 : index
    %150 = vector.load %arg16[%c0_65, %c0_66] : memref<1x64xf32, #tpu.memory_space<vmem>>, vector<1x64xf32>
    %151 = vector.broadcast %150 : vector<1x64xf32> to vector<8x64xf32>
    %152 = arith.addf %149, %151 : vector<8x64xf32>
    %cst_67 = arith.constant 0.000000e+00 : f32
    %153 = vector.broadcast %cst_67 : f32 to vector<8x64xf32>
    %154 = arith.maximumf %152, %153 : vector<8x64xf32>
    %155 = arith.truncf %154 : vector<8x64xf32> to vector<8x64xbf16>
    %c0_68 = arith.constant 0 : index
    %c0_69 = arith.constant 0 : index
    %156 = vector.load %arg17[%c0_68, %c0_69] : memref<64x32xbf16, #tpu.memory_space<vmem>>, vector<64x32xbf16>
    %cst_70 = arith.constant dense<0.000000e+00> : vector<8x32xf32>
    %157 = tpu.matmul %155, %156, %cst_70 {dimension_numbers = #tpu.dot_dimension_numbers<[1], [0], [0], [1], [0, 0, 1, 1], [], []>} : vector<8x64xbf16>, vector<64x32xbf16>, vector<8x32xf32> -> vector<8x32xf32>
    %c0_71 = arith.constant 0 : index
    %c0_72 = arith.constant 0 : index
    %158 = vector.load %arg18[%c0_71, %c0_72] : memref<1x32xf32, #tpu.memory_space<vmem>>, vector<1x32xf32>
    %159 = vector.broadcast %158 : vector<1x32xf32> to vector<8x32xf32>
    %160 = arith.addf %157, %159 : vector<8x32xf32>
    %161 = arith.addf %146, %160 : vector<8x32xf32>
    %c0_73 = arith.constant 0 : index
    %c0_74 = arith.constant 0 : index
    %162 = vector.load %arg21[%c0_73, %c0_74] : memref<1x32xf32, #tpu.memory_space<vmem>>, vector<1x32xf32>
    %c0_75 = arith.constant 0 : index
    %c0_76 = arith.constant 0 : index
    %163 = vector.load %arg22[%c0_75, %c0_76] : memref<1x32xf32, #tpu.memory_space<vmem>>, vector<1x32xf32>
    %cst_77 = arith.constant dense<0.000000e+00> : vector<8xf32>
    %164 = vector.multi_reduction <add>, %161, %cst_77 [1] : vector<8x32xf32> to vector<8xf32>
    %165 = vector.shape_cast %164 : vector<8xf32> to vector<8x1xf32>
    %cst_78 = arith.constant 3.200000e+01 : f32
    %166 = vector.broadcast %cst_78 : f32 to vector<8x1xf32>
    %167 = arith.divf %165, %166 : vector<8x1xf32>
    %168 = vector.broadcast %167 : vector<8x1xf32> to vector<8x32xf32>
    %169 = arith.subf %161, %168 : vector<8x32xf32>
    %170 = arith.mulf %169, %169 : vector<8x32xf32>
    %cst_79 = arith.constant dense<0.000000e+00> : vector<8xf32>
    %171 = vector.multi_reduction <add>, %170, %cst_79 [1] : vector<8x32xf32> to vector<8xf32>
    %172 = vector.shape_cast %171 : vector<8xf32> to vector<8x1xf32>
    %cst_80 = arith.constant 3.200000e+01 : f32
    %173 = vector.broadcast %cst_80 : f32 to vector<8x1xf32>
    %174 = arith.divf %172, %173 : vector<8x1xf32>
    %cst_81 = arith.constant 9.99999974E-6 : f32
    %175 = vector.broadcast %cst_81 : f32 to vector<8x1xf32>
    %176 = arith.addf %174, %175 : vector<8x1xf32>
    %177 = math.rsqrt %176 : vector<8x1xf32>
    %178 = vector.broadcast %177 : vector<8x1xf32> to vector<8x32xf32>
    %179 = arith.mulf %169, %178 : vector<8x32xf32>
    %180 = vector.broadcast %162 : vector<1x32xf32> to vector<8x32xf32>
    %181 = arith.mulf %179, %180 : vector<8x32xf32>
    %182 = vector.broadcast %163 : vector<1x32xf32> to vector<8x32xf32>
    %183 = arith.addf %181, %182 : vector<8x32xf32>
    %c0_82 = arith.constant 0 : index
    %c0_83 = arith.constant 0 : index
    %c0_84 = arith.constant 0 : index
    %184 = vector.load %arg23[%c0_82, %c0_83, %c0_84] : memref<1x8x32xf32, #tpu.memory_space<vmem>>, vector<1x8x32xf32>
    %185 = vector.shape_cast %184 : vector<1x8x32xf32> to vector<8x32xf32>
    %186 = vector.shape_cast %183 : vector<8x32xf32> to vector<1x8x32xf32>
    tpu.vector_store %arg23[%c0_82, %c0_83, %c0_84], %186 {strides = array<i32>} : memref<1x8x32xf32, #tpu.memory_space<vmem>>, vector<1x8x32xf32>,
    return
  }
  func.func @transform_0(%arg0: i32, %arg1: i32) -> (i32, i32, i32) {
    %c0_i32 = arith.constant 0 : i32
    %c0_i32_0 = arith.constant 0 : i32
    return %arg0, %arg1, %c0_i32 : i32, i32, i32
  }
  func.func @transform_1(%arg0: i32, %arg1: i32) -> (i32, i32, i32) {
    %c0_i32 = arith.constant 0 : i32
    %c0_i32_0 = arith.constant 0 : i32
    %c0_i32_1 = arith.constant 0 : i32
    return %arg0, %c0_i32, %c0_i32_0 : i32, i32, i32
  }
  func.func @transform_2(%arg0: i32, %arg1: i32) -> (i32, i32, i32) {
    %c0_i32 = arith.constant 0 : i32
    %c0_i32_0 = arith.constant 0 : i32
    %c0_i32_1 = arith.constant 0 : i32
    return %c0_i32, %arg1, %c0_i32_0 : i32, i32, i32
  }
  func.func @transform_3(%arg0: i32, %arg1: i32) -> (i32, i32, i32) {
    %c0_i32 = arith.constant 0 : i32
    %c0_i32_0 = arith.constant 0 : i32
    %c0_i32_1 = arith.constant 0 : i32
    %c0_i32_2 = arith.constant 0 : i32
    return %c0_i32, %c0_i32_0, %c0_i32_1 : i32, i32, i32
  }
  func.func @transform_4(%arg0: i32, %arg1: i32) -> (i32, i32, i32) {
    %c0_i32 = arith.constant 0 : i32
    %c0_i32_0 = arith.constant 0 : i32
    %c0_i32_1 = arith.constant 0 : i32
    return %arg0, %c0_i32, %c0_i32_0 : i32, i32, i32
  }
  func.func @transform_5(%arg0: i32, %arg1: i32) -> (i32, i32) {
    %c0_i32 = arith.constant 0 : i32
    %c0_i32_0 = arith.constant 0 : i32
    %c0_i32_1 = arith.constant 0 : i32
    return %c0_i32, %c0_i32_0 : i32, i32
  }
  func.func @transform_6(%arg0: i32, %arg1: i32) -> (i32, i32) {
    %c0_i32 = arith.constant 0 : i32
    %c0_i32_0 = arith.constant 0 : i32
    %c0_i32_1 = arith.constant 0 : i32
    return %c0_i32, %c0_i32_0 : i32, i32
  }
  func.func @transform_7(%arg0: i32, %arg1: i32) -> (i32, i32) {
    %c0_i32 = arith.constant 0 : i32
    %c0_i32_0 = arith.constant 0 : i32
    %c0_i32_1 = arith.constant 0 : i32
    return %c0_i32, %c0_i32_0 : i32, i32
  }
  func.func @transform_8(%arg0: i32, %arg1: i32) -> (i32, i32) {
    %c0_i32 = arith.constant 0 : i32
    %c0_i32_0 = arith.constant 0 : i32
    %c0_i32_1 = arith.constant 0 : i32
    return %c0_i32, %c0_i32_0 : i32, i32
  }
  func.func @transform_9(%arg0: i32, %arg1: i32) -> (i32, i32) {
    %c0_i32 = arith.constant 0 : i32
    %c0_i32_0 = arith.constant 0 : i32
    %c0_i32_1 = arith.constant 0 : i32
    return %c0_i32, %c0_i32_0 : i32, i32
  }
  func.func @transform_10(%arg0: i32, %arg1: i32) -> (i32, i32) {
    %c0_i32 = arith.constant 0 : i32
    %c0_i32_0 = arith.constant 0 : i32
    %c0_i32_1 = arith.constant 0 : i32
    return %c0_i32, %c0_i32_0 : i32, i32
  }
  func.func @transform_11(%arg0: i32, %arg1: i32) -> (i32, i32) {
    %c0_i32 = arith.constant 0 : i32
    %c0_i32_0 = arith.constant 0 : i32
    %c0_i32_1 = arith.constant 0 : i32
    return %c0_i32, %c0_i32_0 : i32, i32
  }
  func.func @transform_12(%arg0: i32, %arg1: i32) -> (i32, i32) {
    %c0_i32 = arith.constant 0 : i32
    %c0_i32_0 = arith.constant 0 : i32
    %c0_i32_1 = arith.constant 0 : i32
    return %c0_i32, %c0_i32_0 : i32, i32
  }
  func.func @transform_13(%arg0: i32, %arg1: i32) -> (i32, i32) {
    %c0_i32 = arith.constant 0 : i32
    %c0_i32_0 = arith.constant 0 : i32
    %c0_i32_1 = arith.constant 0 : i32
    return %c0_i32, %c0_i32_0 : i32, i32
  }
  func.func @transform_14(%arg0: i32, %arg1: i32) -> (i32, i32) {
    %c0_i32 = arith.constant 0 : i32
    %c0_i32_0 = arith.constant 0 : i32
    %c0_i32_1 = arith.constant 0 : i32
    return %c0_i32, %c0_i32_0 : i32, i32
  }
  func.func @transform_15(%arg0: i32, %arg1: i32) -> (i32, i32) {
    %c0_i32 = arith.constant 0 : i32
    %c0_i32_0 = arith.constant 0 : i32
    %c0_i32_1 = arith.constant 0 : i32
    return %c0_i32, %c0_i32_0 : i32, i32
  }
  func.func @transform_16(%arg0: i32, %arg1: i32) -> (i32, i32) {
    %c0_i32 = arith.constant 0 : i32
    %c0_i32_0 = arith.constant 0 : i32
    %c0_i32_1 = arith.constant 0 : i32
    return %c0_i32, %c0_i32_0 : i32, i32
  }
  func.func @transform_17(%arg0: i32, %arg1: i32) -> (i32, i32) {
    %c0_i32 = arith.constant 0 : i32
    %c0_i32_0 = arith.constant 0 : i32
    %c0_i32_1 = arith.constant 0 : i32
    return %c0_i32, %c0_i32_0 : i32, i32
  }
  func.func @transform_18(%arg0: i32, %arg1: i32) -> (i32, i32) {
    %c0_i32 = arith.constant 0 : i32
    %c0_i32_0 = arith.constant 0 : i32
    %c0_i32_1 = arith.constant 0 : i32
    return %c0_i32, %c0_i32_0 : i32, i32
  }
  func.func @transform_19(%arg0: i32, %arg1: i32) -> (i32, i32) {
    %c0_i32 = arith.constant 0 : i32
    %c0_i32_0 = arith.constant 0 : i32
    %c0_i32_1 = arith.constant 0 : i32
    return %c0_i32, %c0_i32_0 : i32, i32
  }
  func.func @transform_20(%arg0: i32, %arg1: i32) -> (i32, i32) {
    %c0_i32 = arith.constant 0 : i32
    %c0_i32_0 = arith.constant 0 : i32
    %c0_i32_1 = arith.constant 0 : i32
    return %c0_i32, %c0_i32_0 : i32, i32
  }
  func.func @transform_21(%arg0: i32, %arg1: i32) -> (i32, i32, i32) {
    %c0_i32 = arith.constant 0 : i32
    %c0_i32_0 = arith.constant 0 : i32
    return %arg0, %arg1, %c0_i32 : i32, i32, i32
  }
}

</mosaic_0001>

<llo_original>
// kernel: tpu_custom_call.1
$region0: #{tpu_custom_call.1}
  #allocation0 [shape = 'u32[]', space=smem, size = 0x4, offset = 0x4, fixed_abs, tag = 'smem constant byte address 0x4 - core index']
  #allocation1 [shape = 'u32[72,128]{1,0:T(1,128)}', space=vmem, size = 0x9000, scoped, tag = 'internal scratch']
  %s0 = inlined_call_operand.vmem [shape: f32[2,8,32], index: 0, kind: input, shape index: {}]
  %s1 = inlined_call_operand.vmem [shape: f32[2,8,32], index: 1, kind: input, shape index: {}]
  %s2 = inlined_call_operand.hbm [shape: f32[1,8,32], index: 2, kind: input, shape index: {}]
  %s3 = inlined_call_operand.hbm [shape: f32[1,8,32], index: 3, kind: input, shape index: {}]
  %s4 = inlined_call_operand.vmem [shape: f32[2,1,8], index: 4, kind: input, shape index: {}]
  %s5 = inlined_call_operand.vmem [shape: bf16[32,32], index: 5, kind: input, shape index: {}]
  %s6 = inlined_call_operand.vmem [shape: f32[1,32], index: 6, kind: input, shape index: {}]
  %s7 = inlined_call_operand.hbm [shape: bf16[32,32], index: 7, kind: input, shape index: {}]
  %s8 = inlined_call_operand.vmem [shape: f32[1,32], index: 8, kind: input, shape index: {}]
  %s9 = inlined_call_operand.hbm [shape: bf16[32,32], index: 9, kind: input, shape index: {}]
  %s10 = inlined_call_operand.vmem [shape: f32[1,32], index: 10, kind: input, shape index: {}]
  %s11 = inlined_call_operand.hbm [shape: bf16[32,32], index: 11, kind: input, shape index: {}]
  %s12 = inlined_call_operand.vmem [shape: f32[1,32], index: 12, kind: input, shape index: {}]
  %s13 = inlined_call_operand.hbm [shape: bf16[32,64], index: 13, kind: input, shape index: {}]
  %s14 = inlined_call_operand.vmem [shape: f32[1,64], index: 14, kind: input, shape index: {}]
  %s15 = inlined_call_operand.vmem [shape: bf16[64,32], index: 15, kind: input, shape index: {}]
  %s16 = inlined_call_operand.vmem [shape: f32[1,32], index: 16, kind: input, shape index: {}]
  %s17 = inlined_call_operand.vmem [shape: f32[1,32], index: 17, kind: input, shape index: {}]
  %s18 = inlined_call_operand.vmem [shape: f32[1,32], index: 18, kind: input, shape index: {}]
  %s19 = inlined_call_operand.vmem [shape: f32[1,32], index: 19, kind: input, shape index: {}]
  %s20 = inlined_call_operand.vmem [shape: f32[1,32], index: 20, kind: input, shape index: {}]
  %s21 = inlined_call_operand.hbm [shape: f32[2,8,32], index: 21, kind: output, shape index: {}]
  %s22 = sld [smem:[#allocation0]]
  $region141: #{tpu_custom_call.1} parent=0
    _
  %s24 = ssub.s32 1, %s22
  %s25 = scalar_select 0, %s24, %s22
  $region1: #{tpu_custom_call.1} parent=0
    #allocation2 [shape = 'u8[4096]{0}', space=vmem, size = 0x1000, scoped, tag = 'input window, operand 2, single buffered']
    #allocation3 [shape = 's32[2]{0}', space=sflag, size = 0x8, scoped, tag = 'scoped memory for tpu_custom_call.1']
    #allocation4 [shape = 's32[2]{0}', space=sflag, size = 0x8, scoped, tag = 'scoped memory for tpu_custom_call.1']
    #allocation5 [shape = 'u8[4096]{0}', space=vmem, size = 0x1000, scoped, tag = 'input window, operand 3, single buffered']
    #allocation6 [shape = 's32[1]{0}', space=sflag, size = 0x4, scoped, tag = 'scoped memory for tpu_custom_call.1']
    #allocation7 [shape = 'u8[8192]{0}', space=vmem, size = 0x2000, scoped, tag = 'input window, operand 7, single buffered']
    #allocation8 [shape = 'u8[8192]{0}', space=vmem, size = 0x2000, scoped, tag = 'input window, operand 9, single buffered']
    #allocation9 [shape = 's32[1]{0}', space=sflag, size = 0x4, scoped, tag = 'scoped memory for tpu_custom_call.1']
    #allocation10 [shape = 'u8[8192]{0}', space=vmem, size = 0x2000, scoped, tag = 'input window, operand 11, single buffered']
    #allocation11 [shape = 'u8[8192]{0}', space=vmem, size = 0x2000, scoped, tag = 'input window, operand 13, single buffered']
    #allocation12 [shape = 's32[1]{0}', space=sflag, size = 0x4, scoped, tag = 'scoped memory for tpu_custom_call.1']
    #allocation13 [shape = 'u8[8192]{0}', space=vmem, size = 0x2000, scoped, tag = 'output window, operand 0']
    %26 = vsyncpa [#allocation3], 0
    %27 = vsyncpa [#allocation6], 0
    %28 = vsyncpa [#allocation9], 0
    %29 = vsyncpa [#allocation12], 0
    %30 = vsyncpa [#allocation4], 0
    %s31 = scalar_lea.sflag [#allocation4], 1
    %32 = vsyncpa %s31, 0
    loop: start=0, step=1, limit=4
    $region2: #{tpu_custom_call.1} parent=1 // loop_pre_header
      _
    $region3: #{tpu_custom_call.1} parent=1 // loop_header
      %s34 = sphi 0, %s38
      %p35 = scmp.ge.s32.totalorder %s34, 4
      %s41 = sphi 0, %s53
      %s42 = sphi 0, %s49
      %s43 = sphi 0, %s41
      %s44 = sphi 0, %s42
      %s45 = sphi 0, %s43
      %s46 = sphi 0, %s44
      %s58 = sphi 0, %s60
      %s61 = sphi 0, %s58
      %s62 = sphi 0, %s61
      %s78 = sphi 0, %s62
      %s84 = sphi 0, %s86
      %s87 = sphi 0, %s84
      %s88 = sphi 0, %s87
      %s104 = sphi 0, %s88
      %s110 = sphi 0, %s112
      %s113 = sphi 0, %s110
      %s114 = sphi 0, %s113
      %s130 = sphi 0, %s114
      %s134 = sphi 0, %s134
      %s136 = sphi 0, %s134
      %s137 = sphi 0, %s136
      %s151 = sphi 0, %s137
      %s157 = sphi 0, %s159
      %s160 = sphi 0, %s157
      %s161 = sphi 0, %s160
      %s177 = sphi 0, %s161
      %s181 = sphi 0, %s181
      %s183 = sphi 0, %s181
      %s184 = sphi 0, %s183
      %s198 = sphi 0, %s184
      %s202 = sphi 0, %s202
      %s204 = sphi 0, %s202
      %s205 = sphi 0, %s204
      %s219 = sphi 0, %s205
      %s223 = sphi 0, %s223
      %s225 = sphi 0, %s223
      %s226 = sphi 0, %s225
      %s240 = sphi 0, %s226
      %s244 = sphi 0, %s244
      %s246 = sphi 0, %s244
      %s247 = sphi 0, %s246
      %s261 = sphi 0, %s247
      %s265 = sphi 0, %s265
      %s267 = sphi 0, %s265
      %s268 = sphi 0, %s267
      %s282 = sphi 0, %s268
      %s286 = sphi 0, %s286
      %s288 = sphi 0, %s286
      %s289 = sphi 0, %s288
      %s303 = sphi 0, %s289
      %s307 = sphi 0, %s307
      %s309 = sphi 0, %s307
      %s310 = sphi 0, %s309
      %s324 = sphi 0, %s310
      %s328 = sphi 0, %s328
      %s330 = sphi 0, %s328
      %s331 = sphi 0, %s330
      %s345 = sphi 0, %s331
      %s349 = sphi 0, %s349
      %s351 = sphi 0, %s349
      %s352 = sphi 0, %s351
      %s366 = sphi 0, %s352
      %s370 = sphi 0, %s370
      %s372 = sphi 0, %s370
      %s373 = sphi 0, %s372
      %s387 = sphi 0, %s373
      %s391 = sphi 0, %s391
      %s393 = sphi 0, %s391
      %s394 = sphi 0, %s393
      %s408 = sphi 0, %s394
      %s412 = sphi 0, %s412
      %s414 = sphi 0, %s412
      %s415 = sphi 0, %s414
      %s429 = sphi 0, %s415
      %s433 = sphi 0, %s433
      %s435 = sphi 0, %s433
      %s436 = sphi 0, %s435
      %s450 = sphi 0, %s436
      %s454 = sphi 0, %s454
      %s456 = sphi 0, %s454
      %s457 = sphi 0, %s456
      %s471 = sphi 0, %s457
      %s475 = sphi 0, %s475
      %s477 = sphi 0, %s475
      %s478 = sphi 0, %s477
      %s492 = sphi 0, %s478
      %s496 = sphi 0, %s496
      %s498 = sphi 0, %s496
      %s499 = sphi 0, %s498
      %s513 = sphi 0, %s499
      %s521 = sphi 0, %s523
      %s524 = sphi 0, %s521
      %s525 = sphi 0, %s524
      %s541 = sphi 0, %s525
    $region4: #{tpu_custom_call.1} parent=1 // loop_header_branch
      %37 = sbr.rel (%p35) target = $region8
    $region5: #{tpu_custom_call.1} parent=1 // loop_body
      %s39 = ssub.s32 %s34, 1
      %s40 = ssub.s32 %s34, 2
      %s47 = sadd.s32 1, %s42
      %p48 = scmp.ge.s32.totalorder %s47, 1
      %s49 = scalar_select %p48, 0, %s47
      %s50 = sadd.s32 1, %s41
      %s51 = scalar_select %p48, %s50, %s41
      %p52 = scmp.ge.s32.totalorder %s51, 2
      %s53 = scalar_select %p52, 0, %s51
      %s54 = ssub.s32 %s41, %s53
      %s55 = ssub.s32 %s42, %s49
      %s56 = sor.u32 %s54, %s55
      %p57 = scmp.eq.s32.totalorder %s56, 0
      %s59 = sadd.s32 %s58, 1
      %s60 = scalar_select %p57, %s58, %s59
      %p63 = pneg %p57
      %p64 = scmp.eq.s32.totalorder %s34, 1
      %p65 = por %p63, %p64
      %p66 = scmp.ne.s32.totalorder %s58, %s61
      %p67 = scmp.eq.s32.totalorder %s34, 0
      %p68 = por %p66, %p67
      %p69 = scmp.ne.s32.totalorder %s58, %s61
      %p70 = scmp.eq.s32.totalorder %s39, 1
      %p71 = por %p69, %p70
      %p72 = scmp.ne.s32.totalorder %s61, %s62
      %p73 = scmp.eq.s32.totalorder %s39, 0
      %p74 = por %p72, %p73
      %p75 = scmp.ne.s32.totalorder %s61, %s62
      %p76 = scmp.eq.s32.totalorder %s40, 1
      %p77 = por %p75, %p76
      %p79 = scmp.ne.s32.totalorder %s62, %s78
      %p80 = scmp.eq.s32.totalorder %s40, 0
      %p81 = por %p79, %p80
      %s82 = ssub.s32 %s41, %s53
      %p83 = scmp.eq.s32.totalorder %s82, 0
      %s85 = sadd.s32 %s84, 1
      %s86 = scalar_select %p83, %s84, %s85
      %p89 = pneg %p83
      %p90 = scmp.eq.s32.totalorder %s34, 1
      %p91 = por %p89, %p90
      %p92 = scmp.ne.s32.totalorder %s84, %s87
      %p93 = scmp.eq.s32.totalorder %s34, 0
      %p94 = por %p92, %p93
      %p95 = scmp.ne.s32.totalorder %s84, %s87
      %p96 = scmp.eq.s32.totalorder %s39, 1
      %p97 = por %p95, %p96
      %p98 = scmp.ne.s32.totalorder %s87, %s88
      %p99 = scmp.eq.s32.totalorder %s39, 0
      %p100 = por %p98, %p99
      %p101 = scmp.ne.s32.totalorder %s87, %s88
      %p102 = scmp.eq.s32.totalorder %s40, 1
      %p103 = por %p101, %p102
      %p105 = scmp.ne.s32.totalorder %s88, %s104
      %p106 = scmp.eq.s32.totalorder %s40, 0
      %p107 = por %p105, %p106
      %s108 = ssub.s32 %s42, %s49
      %p109 = scmp.eq.s32.totalorder %s108, 0
      %s111 = sadd.s32 %s110, 1
      %s112 = scalar_select %p109, %s110, %s111
      %p115 = pneg %p109
      %p116 = scmp.eq.s32.totalorder %s34, 1
      %p117 = por %p115, %p116
      %p118 = scmp.ne.s32.totalorder %s110, %s113
      %p119 = scmp.eq.s32.totalorder %s34, 0
      %p120 = por %p118, %p119
      %p121 = scmp.ne.s32.totalorder %s110, %s113
      %p122 = scmp.eq.s32.totalorder %s39, 1
      %p123 = por %p121, %p122
      %p124 = scmp.ne.s32.totalorder %s113, %s114
      %p125 = scmp.eq.s32.totalorder %s39, 0
      %p126 = por %p124, %p125
      %p127 = scmp.ne.s32.totalorder %s113, %s114
      %p128 = scmp.eq.s32.totalorder %s40, 1
      %p129 = por %p127, %p128
      %p131 = scmp.ne.s32.totalorder %s114, %s130
      %p132 = scmp.eq.s32.totalorder %s40, 0
      %p133 = por %p131, %p132
      %s135 = sadd.s32 %s134, 1
      %p138 = scmp.eq.s32.totalorder %s34, 1
      %p139 = scmp.ne.s32.totalorder %s134, %s136
      %p140 = scmp.eq.s32.totalorder %s34, 0
      %p141 = por %p139, %p140
      %p142 = scmp.ne.s32.totalorder %s134, %s136
      %p143 = scmp.eq.s32.totalorder %s39, 1
      %p144 = por %p142, %p143
      %p145 = scmp.ne.s32.totalorder %s136, %s137
      %p146 = scmp.eq.s32.totalorder %s39, 0
      %p147 = por %p145, %p146
      %p148 = scmp.ne.s32.totalorder %s136, %s137
      %p149 = scmp.eq.s32.totalorder %s40, 1
      %p150 = por %p148, %p149
      %p152 = scmp.ne.s32.totalorder %s137, %s151
      %p153 = scmp.eq.s32.totalorder %s40, 0
      %p154 = por %p152, %p153
      %s155 = ssub.s32 %s41, %s53
      %p156 = scmp.eq.s32.totalorder %s155, 0
      %s158 = sadd.s32 %s157, 1
      %s159 = scalar_select %p156, %s157, %s158
      %p162 = pneg %p156
      %p163 = scmp.eq.s32.totalorder %s34, 1
      %p164 = por %p162, %p163
      %p165 = scmp.ne.s32.totalorder %s157, %s160
      %p166 = scmp.eq.s32.totalorder %s34, 0
      %p167 = por %p165, %p166
      %p168 = scmp.ne.s32.totalorder %s157, %s160
      %p169 = scmp.eq.s32.totalorder %s39, 1
      %p170 = por %p168, %p169
      %p171 = scmp.ne.s32.totalorder %s160, %s161
      %p172 = scmp.eq.s32.totalorder %s39, 0
      %p173 = por %p171, %p172
      %p174 = scmp.ne.s32.totalorder %s160, %s161
      %p175 = scmp.eq.s32.totalorder %s40, 1
      %p176 = por %p174, %p175
      %p178 = scmp.ne.s32.totalorder %s161, %s177
      %p179 = scmp.eq.s32.totalorder %s40, 0
      %p180 = por %p178, %p179
      %s182 = sadd.s32 %s181, 1
      %p185 = scmp.eq.s32.totalorder %s34, 1
      %p186 = scmp.ne.s32.totalorder %s181, %s183
      %p187 = scmp.eq.s32.totalorder %s34, 0
      %p188 = por %p186, %p187
      %p189 = scmp.ne.s32.totalorder %s181, %s183
      %p190 = scmp.eq.s32.totalorder %s39, 1
      %p191 = por %p189, %p190
      %p192 = scmp.ne.s32.totalorder %s183, %s184
      %p193 = scmp.eq.s32.totalorder %s39, 0
      %p194 = por %p192, %p193
      %p195 = scmp.ne.s32.totalorder %s183, %s184
      %p196 = scmp.eq.s32.totalorder %s40, 1
      %p197 = por %p195, %p196
      %p199 = scmp.ne.s32.totalorder %s184, %s198
      %p200 = scmp.eq.s32.totalorder %s40, 0
      %p201 = por %p199, %p200
      %s203 = sadd.s32 %s202, 1
      %p206 = scmp.eq.s32.totalorder %s34, 1
      %p207 = scmp.ne.s32.totalorder %s202, %s204
      %p208 = scmp.eq.s32.totalorder %s34, 0
      %p209 = por %p207, %p208
      %p210 = scmp.ne.s32.totalorder %s202, %s204
      %p211 = scmp.eq.s32.totalorder %s39, 1
      %p212 = por %p210, %p211
      %p213 = scmp.ne.s32.totalorder %s204, %s205
      %p214 = scmp.eq.s32.totalorder %s39, 0
      %p215 = por %p213, %p214
      %p216 = scmp.ne.s32.totalorder %s204, %s205
      %p217 = scmp.eq.s32.totalorder %s40, 1
      %p218 = por %p216, %p217
      %p220 = scmp.ne.s32.totalorder %s205, %s219
      %p221 = scmp.eq.s32.totalorder %s40, 0
      %p222 = por %p220, %p221
      %s224 = sadd.s32 %s223, 1
      %p227 = scmp.eq.s32.totalorder %s34, 1
      %p228 = scmp.ne.s32.totalorder %s223, %s225
      %p229 = scmp.eq.s32.totalorder %s34, 0
      %p230 = por %p228, %p229
      %p231 = scmp.ne.s32.totalorder %s223, %s225
      %p232 = scmp.eq.s32.totalorder %s39, 1
      %p233 = por %p231, %p232
      %p234 = scmp.ne.s32.totalorder %s225, %s226
      %p235 = scmp.eq.s32.totalorder %s39, 0
      %p236 = por %p234, %p235
      %p237 = scmp.ne.s32.totalorder %s225, %s226
      %p238 = scmp.eq.s32.totalorder %s40, 1
      %p239 = por %p237, %p238
      %p241 = scmp.ne.s32.totalorder %s226, %s240
      %p242 = scmp.eq.s32.totalorder %s40, 0
      %p243 = por %p241, %p242
      %s245 = sadd.s32 %s244, 1
      %p248 = scmp.eq.s32.totalorder %s34, 1
      %p249 = scmp.ne.s32.totalorder %s244, %s246
      %p250 = scmp.eq.s32.totalorder %s34, 0
      %p251 = por %p249, %p250
      %p252 = scmp.ne.s32.totalorder %s244, %s246
      %p253 = scmp.eq.s32.totalorder %s39, 1
      %p254 = por %p252, %p253
      %p255 = scmp.ne.s32.totalorder %s246, %s247
      %p256 = scmp.eq.s32.totalorder %s39, 0
      %p257 = por %p255, %p256
      %p258 = scmp.ne.s32.totalorder %s246, %s247
      %p259 = scmp.eq.s32.totalorder %s40, 1
      %p260 = por %p258, %p259
      %p262 = scmp.ne.s32.totalorder %s247, %s261
      %p263 = scmp.eq.s32.totalorder %s40, 0
      %p264 = por %p262, %p263
      %s266 = sadd.s32 %s265, 1
      %p269 = scmp.eq.s32.totalorder %s34, 1
      %p270 = scmp.ne.s32.totalorder %s265, %s267
      %p271 = scmp.eq.s32.totalorder %s34, 0
      %p272 = por %p270, %p271
      %p273 = scmp.ne.s32.totalorder %s265, %s267
      %p274 = scmp.eq.s32.totalorder %s39, 1
      %p275 = por %p273, %p274
      %p276 = scmp.ne.s32.totalorder %s267, %s268
      %p277 = scmp.eq.s32.totalorder %s39, 0
      %p278 = por %p276, %p277
      %p279 = scmp.ne.s32.totalorder %s267, %s268
      %p280 = scmp.eq.s32.totalorder %s40, 1
      %p281 = por %p279, %p280
      %p283 = scmp.ne.s32.totalorder %s268, %s282
      %p284 = scmp.eq.s32.totalorder %s40, 0
      %p285 = por %p283, %p284
      %s287 = sadd.s32 %s286, 1
      %p290 = scmp.eq.s32.totalorder %s34, 1
      %p291 = scmp.ne.s32.totalorder %s286, %s288
      %p292 = scmp.eq.s32.totalorder %s34, 0
      %p293 = por %p291, %p292
      %p294 = scmp.ne.s32.totalorder %s286, %s288
      %p295 = scmp.eq.s32.totalorder %s39, 1
      %p296 = por %p294, %p295
      %p297 = scmp.ne.s32.totalorder %s288, %s289
      %p298 = scmp.eq.s32.totalorder %s39, 0
      %p299 = por %p297, %p298
      %p300 = scmp.ne.s32.totalorder %s288, %s289
      %p301 = scmp.eq.s32.totalorder %s40, 1
      %p302 = por %p300, %p301
      %p304 = scmp.ne.s32.totalorder %s289, %s303
      %p305 = scmp.eq.s32.totalorder %s40, 0
      %p306 = por %p304, %p305
      %s308 = sadd.s32 %s307, 1
      %p311 = scmp.eq.s32.totalorder %s34, 1
      %p312 = scmp.ne.s32.totalorder %s307, %s309
      %p313 = scmp.eq.s32.totalorder %s34, 0
      %p314 = por %p312, %p313
      %p315 = scmp.ne.s32.totalorder %s307, %s309
      %p316 = scmp.eq.s32.totalorder %s39, 1
      %p317 = por %p315, %p316
      %p318 = scmp.ne.s32.totalorder %s309, %s310
      %p319 = scmp.eq.s32.totalorder %s39, 0
      %p320 = por %p318, %p319
      %p321 = scmp.ne.s32.totalorder %s309, %s310
      %p322 = scmp.eq.s32.totalorder %s40, 1
      %p323 = por %p321, %p322
      %p325 = scmp.ne.s32.totalorder %s310, %s324
      %p326 = scmp.eq.s32.totalorder %s40, 0
      %p327 = por %p325, %p326
      %s329 = sadd.s32 %s328, 1
      %p332 = scmp.eq.s32.totalorder %s34, 1
      %p333 = scmp.ne.s32.totalorder %s328, %s330
      %p334 = scmp.eq.s32.totalorder %s34, 0
      %p335 = por %p333, %p334
      %p336 = scmp.ne.s32.totalorder %s328, %s330
      %p337 = scmp.eq.s32.totalorder %s39, 1
      %p338 = por %p336, %p337
      %p339 = scmp.ne.s32.totalorder %s330, %s331
      %p340 = scmp.eq.s32.totalorder %s39, 0
      %p341 = por %p339, %p340
      %p342 = scmp.ne.s32.totalorder %s330, %s331
      %p343 = scmp.eq.s32.totalorder %s40, 1
      %p344 = por %p342, %p343
      %p346 = scmp.ne.s32.totalorder %s331, %s345
      %p347 = scmp.eq.s32.totalorder %s40, 0
      %p348 = por %p346, %p347
      %s350 = sadd.s32 %s349, 1
      %p353 = scmp.eq.s32.totalorder %s34, 1
      %p354 = scmp.ne.s32.totalorder %s349, %s351
      %p355 = scmp.eq.s32.totalorder %s34, 0
      %p356 = por %p354, %p355
      %p357 = scmp.ne.s32.totalorder %s349, %s351
      %p358 = scmp.eq.s32.totalorder %s39, 1
      %p359 = por %p357, %p358
      %p360 = scmp.ne.s32.totalorder %s351, %s352
      %p361 = scmp.eq.s32.totalorder %s39, 0
      %p362 = por %p360, %p361
      %p363 = scmp.ne.s32.totalorder %s351, %s352
      %p364 = scmp.eq.s32.totalorder %s40, 1
      %p365 = por %p363, %p364
      %p367 = scmp.ne.s32.totalorder %s352, %s366
      %p368 = scmp.eq.s32.totalorder %s40, 0
      %p369 = por %p367, %p368
      %s371 = sadd.s32 %s370, 1
      %p374 = scmp.eq.s32.totalorder %s34, 1
      %p375 = scmp.ne.s32.totalorder %s370, %s372
      %p376 = scmp.eq.s32.totalorder %s34, 0
      %p377 = por %p375, %p376
      %p378 = scmp.ne.s32.totalorder %s370, %s372
      %p379 = scmp.eq.s32.totalorder %s39, 1
      %p380 = por %p378, %p379
      %p381 = scmp.ne.s32.totalorder %s372, %s373
      %p382 = scmp.eq.s32.totalorder %s39, 0
      %p383 = por %p381, %p382
      %p384 = scmp.ne.s32.totalorder %s372, %s373
      %p385 = scmp.eq.s32.totalorder %s40, 1
      %p386 = por %p384, %p385
      %p388 = scmp.ne.s32.totalorder %s373, %s387
      %p389 = scmp.eq.s32.totalorder %s40, 0
      %p390 = por %p388, %p389
      %s392 = sadd.s32 %s391, 1
      %p395 = scmp.eq.s32.totalorder %s34, 1
      %p396 = scmp.ne.s32.totalorder %s391, %s393
      %p397 = scmp.eq.s32.totalorder %s34, 0
      %p398 = por %p396, %p397
      %p399 = scmp.ne.s32.totalorder %s391, %s393
      %p400 = scmp.eq.s32.totalorder %s39, 1
      %p401 = por %p399, %p400
      %p402 = scmp.ne.s32.totalorder %s393, %s394
      %p403 = scmp.eq.s32.totalorder %s39, 0
      %p404 = por %p402, %p403
      %p405 = scmp.ne.s32.totalorder %s393, %s394
      %p406 = scmp.eq.s32.totalorder %s40, 1
      %p407 = por %p405, %p406
      %p409 = scmp.ne.s32.totalorder %s394, %s408
      %p410 = scmp.eq.s32.totalorder %s40, 0
      %p411 = por %p409, %p410
      %s413 = sadd.s32 %s412, 1
      %p416 = scmp.eq.s32.totalorder %s34, 1
      %p417 = scmp.ne.s32.totalorder %s412, %s414
      %p418 = scmp.eq.s32.totalorder %s34, 0
      %p419 = por %p417, %p418
      %p420 = scmp.ne.s32.totalorder %s412, %s414
      %p421 = scmp.eq.s32.totalorder %s39, 1
      %p422 = por %p420, %p421
      %p423 = scmp.ne.s32.totalorder %s414, %s415
      %p424 = scmp.eq.s32.totalorder %s39, 0
      %p425 = por %p423, %p424
      %p426 = scmp.ne.s32.totalorder %s414, %s415
      %p427 = scmp.eq.s32.totalorder %s40, 1
      %p428 = por %p426, %p427
      %p430 = scmp.ne.s32.totalorder %s415, %s429
      %p431 = scmp.eq.s32.totalorder %s40, 0
      %p432 = por %p430, %p431
      %s434 = sadd.s32 %s433, 1
      %p437 = scmp.eq.s32.totalorder %s34, 1
      %p438 = scmp.ne.s32.totalorder %s433, %s435
      %p439 = scmp.eq.s32.totalorder %s34, 0
      %p440 = por %p438, %p439
      %p441 = scmp.ne.s32.totalorder %s433, %s435
      %p442 = scmp.eq.s32.totalorder %s39, 1
      %p443 = por %p441, %p442
      %p444 = scmp.ne.s32.totalorder %s435, %s436
      %p445 = scmp.eq.s32.totalorder %s39, 0
      %p446 = por %p444, %p445
      %p447 = scmp.ne.s32.totalorder %s435, %s436
      %p448 = scmp.eq.s32.totalorder %s40, 1
      %p449 = por %p447, %p448
      %p451 = scmp.ne.s32.totalorder %s436, %s450
      %p452 = scmp.eq.s32.totalorder %s40, 0
      %p453 = por %p451, %p452
      %s455 = sadd.s32 %s454, 1
      %p458 = scmp.eq.s32.totalorder %s34, 1
      %p459 = scmp.ne.s32.totalorder %s454, %s456
      %p460 = scmp.eq.s32.totalorder %s34, 0
      %p461 = por %p459, %p460
      %p462 = scmp.ne.s32.totalorder %s454, %s456
      %p463 = scmp.eq.s32.totalorder %s39, 1
      %p464 = por %p462, %p463
      %p465 = scmp.ne.s32.totalorder %s456, %s457
      %p466 = scmp.eq.s32.totalorder %s39, 0
      %p467 = por %p465, %p466
      %p468 = scmp.ne.s32.totalorder %s456, %s457
      %p469 = scmp.eq.s32.totalorder %s40, 1
      %p470 = por %p468, %p469
      %p472 = scmp.ne.s32.totalorder %s457, %s471
      %p473 = scmp.eq.s32.totalorder %s40, 0
      %p474 = por %p472, %p473
      %s476 = sadd.s32 %s475, 1
      %p479 = scmp.eq.s32.totalorder %s34, 1
      %p480 = scmp.ne.s32.totalorder %s475, %s477
      %p481 = scmp.eq.s32.totalorder %s34, 0
      %p482 = por %p480, %p481
      %p483 = scmp.ne.s32.totalorder %s475, %s477
      %p484 = scmp.eq.s32.totalorder %s39, 1
      %p485 = por %p483, %p484
      %p486 = scmp.ne.s32.totalorder %s477, %s478
      %p487 = scmp.eq.s32.totalorder %s39, 0
      %p488 = por %p486, %p487
      %p489 = scmp.ne.s32.totalorder %s477, %s478
      %p490 = scmp.eq.s32.totalorder %s40, 1
      %p491 = por %p489, %p490
      %p493 = scmp.ne.s32.totalorder %s478, %s492
      %p494 = scmp.eq.s32.totalorder %s40, 0
      %p495 = por %p493, %p494
      %s497 = sadd.s32 %s496, 1
      %p500 = scmp.eq.s32.totalorder %s34, 1
      %p501 = scmp.ne.s32.totalorder %s496, %s498
      %p502 = scmp.eq.s32.totalorder %s34, 0
      %p503 = por %p501, %p502
      %p504 = scmp.ne.s32.totalorder %s496, %s498
      %p505 = scmp.eq.s32.totalorder %s39, 1
      %p506 = por %p504, %p505
      %p507 = scmp.ne.s32.totalorder %s498, %s499
      %p508 = scmp.eq.s32.totalorder %s39, 0
      %p509 = por %p507, %p508
      %p510 = scmp.ne.s32.totalorder %s498, %s499
      %p511 = scmp.eq.s32.totalorder %s40, 1
      %p512 = por %p510, %p511
      %p514 = scmp.ne.s32.totalorder %s499, %s513
      %p515 = scmp.eq.s32.totalorder %s40, 0
      %p516 = por %p514, %p515
      %s517 = ssub.s32 %s41, %s53
      %s518 = ssub.s32 %s42, %s49
      %s519 = sor.u32 %s517, %s518
      %p520 = scmp.eq.s32.totalorder %s519, 0
      %s522 = sadd.s32 %s521, 1
      %s523 = scalar_select %p520, %s521, %s522
      %p526 = pneg %p520
      %p527 = scmp.eq.s32.totalorder %s34, 1
      %p528 = por %p526, %p527
      %p529 = scmp.ne.s32.totalorder %s521, %s524
      %p530 = scmp.eq.s32.totalorder %s34, 0
      %p531 = por %p529, %p530
      %p532 = scmp.ne.s32.totalorder %s521, %s524
      %p533 = scmp.eq.s32.totalorder %s39, 1
      %p534 = por %p532, %p533
      %p535 = scmp.ne.s32.totalorder %s524, %s525
      %p536 = scmp.eq.s32.totalorder %s39, 0
      %p537 = por %p535, %p536
      %p538 = scmp.ne.s32.totalorder %s524, %s525
      %p539 = scmp.eq.s32.totalorder %s40, 1
      %p540 = por %p538, %p539
      %p542 = scmp.ne.s32.totalorder %s525, %s541
      %p543 = scmp.eq.s32.totalorder %s40, 0
      %p544 = por %p542, %p543
      %p545 = scmp.le.s32.totalorder 1, %s34
      %p546 = scmp.lt.s32.totalorder %s34, 3
      %p547 = pnand %p545, %p546
      %p548 = pneg %p547
      // Predicated region
      $region9: #{tpu_custom_call.1} parent=5 // pred_check
        _
      $region10: #{tpu_custom_call.1} parent=5 // pred_check_branch
        %550 = sbr.rel (%p547) target = $region12
      $region11: #{tpu_custom_call.1} parent=5 // pred_region
        %s551 = ssub.s32 %s34, 1
        // Predicated region
        $region13: #{tpu_custom_call.1} parent=11 // pred_check
          %p552 = pneg %p126
        $region14: #{tpu_custom_call.1} parent=11 // pred_check_branch
          %554 = sbr.rel (%p552) target = $region16
        $region15: #{tpu_custom_call.1} parent=11 // pred_region
          %556 = vsyncadd [#allocation3], 0
          %s557 = smul.addr %s44, 8
          %s558 = scalar_lea.hbm %s2, %s557
          %s560 = sshll.u32 %s558, 4
          %s561 = int_to_ptr.hbm [resolvable:$true] %s560
          %s562 = sshll.u32 [#allocation2], 4
          %s563 = int_to_ptr.vmem [resolvable:$true] %s562
          %565 = dma.hbm_to_vmem [thread:$0]  %s561, 128, %s563, [#allocation3]
        $region16: #{tpu_custom_call.1} parent=11 // pred_fallthru
          _
        // Predicated region
        $region17: #{tpu_custom_call.1} parent=11 // pred_check
          %p566 = pneg %p147
        $region18: #{tpu_custom_call.1} parent=11 // pred_check_branch
          %568 = sbr.rel (%p566) target = $region20
        $region19: #{tpu_custom_call.1} parent=11 // pred_region
          %570 = vsyncadd [#allocation6], 0
          %s572 = sshll.u32 %s3, 4
          %s573 = int_to_ptr.hbm [resolvable:$true] %s572
          %s574 = sshll.u32 [#allocation5], 4
          %s575 = int_to_ptr.vmem [resolvable:$true] %s574
          %577 = dma.hbm_to_vmem [thread:$0]  %s573, 128, %s575, [#allocation6]
        $region20: #{tpu_custom_call.1} parent=11 // pred_fallthru
          _
        // Predicated region
        $region21: #{tpu_custom_call.1} parent=11 // pred_check
          %p578 = pneg %p194
        $region22: #{tpu_custom_call.1} parent=11 // pred_check_branch
          %580 = sbr.rel (%p578) target = $region24
        $region23: #{tpu_custom_call.1} parent=11 // pred_region
          _
        $region24: #{tpu_custom_call.1} parent=11 // pred_fallthru
          _
        // Predicated region
        $region25: #{tpu_custom_call.1} parent=11 // pred_check
          %p581 = pneg %p215
        $region26: #{tpu_custom_call.1} parent=11 // pred_check_branch
          %583 = sbr.rel (%p581) target = $region28
        $region27: #{tpu_custom_call.1} parent=11 // pred_region
          _
        $region28: #{tpu_custom_call.1} parent=11 // pred_fallthru
          _
        // Predicated region
        $region29: #{tpu_custom_call.1} parent=11 // pred_check
          %p584 = pneg %p236
        $region30: #{tpu_custom_call.1} parent=11 // pred_check_branch
          %586 = sbr.rel (%p584) target = $region32
        $region31: #{tpu_custom_call.1} parent=11 // pred_region
          %588 = vsyncadd [#allocation6], 0
          %s589 = sshll.u32 %s7, 4
          %s590 = int_to_ptr.hbm [resolvable:$true] %s589
          %s591 = sshll.u32 [#allocation7], 4
          %s592 = int_to_ptr.vmem [resolvable:$true] %s591
          %597 = dma.hbm_to_vmem [thread:$0]  %s590, 256, %s592, [#allocation6], 64, 64, 4
        $region32: #{tpu_custom_call.1} parent=11 // pred_fallthru
          _
        // Predicated region
        $region33: #{tpu_custom_call.1} parent=11 // pred_check
          %p598 = pneg %p257
        $region34: #{tpu_custom_call.1} parent=11 // pred_check_branch
          %600 = sbr.rel (%p598) target = $region36
        $region35: #{tpu_custom_call.1} parent=11 // pred_region
          _
        $region36: #{tpu_custom_call.1} parent=11 // pred_fallthru
          _
        // Predicated region
        $region37: #{tpu_custom_call.1} parent=11 // pred_check
          %p601 = pneg %p278
        $region38: #{tpu_custom_call.1} parent=11 // pred_check_branch
          %603 = sbr.rel (%p601) target = $region40
        $region39: #{tpu_custom_call.1} parent=11 // pred_region
          %605 = vsyncadd [#allocation9], 0
          %s606 = sshll.u32 %s9, 4
          %s607 = int_to_ptr.hbm [resolvable:$true] %s606
          %s608 = sshll.u32 [#allocation8], 4
          %s609 = int_to_ptr.vmem [resolvable:$true] %s608
          %614 = dma.hbm_to_vmem [thread:$0]  %s607, 256, %s609, [#allocation9], 64, 64, 4
        $region40: #{tpu_custom_call.1} parent=11 // pred_fallthru
          _
        // Predicated region
        $region41: #{tpu_custom_call.1} parent=11 // pred_check
          %p615 = pneg %p299
        $region42: #{tpu_custom_call.1} parent=11 // pred_check_branch
          %617 = sbr.rel (%p615) target = $region44
        $region43: #{tpu_custom_call.1} parent=11 // pred_region
          _
        $region44: #{tpu_custom_call.1} parent=11 // pred_fallthru
          _
        // Predicated region
        $region45: #{tpu_custom_call.1} parent=11 // pred_check
          %p618 = pneg %p320
        $region46: #{tpu_custom_call.1} parent=11 // pred_check_branch
          %620 = sbr.rel (%p618) target = $region48
        $region47: #{tpu_custom_call.1} parent=11 // pred_region
          %622 = vsyncadd [#allocation9], 0
          %s623 = sshll.u32 %s11, 4
          %s624 = int_to_ptr.hbm [resolvable:$true] %s623
          %s625 = sshll.u32 [#allocation10], 4
          %s626 = int_to_ptr.vmem [resolvable:$true] %s625
          %631 = dma.hbm_to_vmem [thread:$0]  %s624, 256, %s626, [#allocation9], 64, 64, 4
        $region48: #{tpu_custom_call.1} parent=11 // pred_fallthru
          _
        // Predicated region
        $region49: #{tpu_custom_call.1} parent=11 // pred_check
          %p632 = pneg %p341
        $region50: #{tpu_custom_call.1} parent=11 // pred_check_branch
          %634 = sbr.rel (%p632) target = $region52
        $region51: #{tpu_custom_call.1} parent=11 // pred_region
          _
        $region52: #{tpu_custom_call.1} parent=11 // pred_fallthru
          _
        // Predicated region
        $region53: #{tpu_custom_call.1} parent=11 // pred_check
          %p635 = pneg %p362
        $region54: #{tpu_custom_call.1} parent=11 // pred_check_branch
          %637 = sbr.rel (%p635) target = $region56
        $region55: #{tpu_custom_call.1} parent=11 // pred_region
          %639 = vsyncadd [#allocation12], 0
          %s640 = sshll.u32 %s13, 4
          %s641 = int_to_ptr.hbm [resolvable:$true] %s640
          %s642 = sshll.u32 [#allocation11], 4
          %s643 = int_to_ptr.vmem [resolvable:$true] %s642
          %648 = dma.hbm_to_vmem [thread:$0]  %s641, 256, %s643, [#allocation12], 64, 64, 4
        $region56: #{tpu_custom_call.1} parent=11 // pred_fallthru
          _
        // Predicated region
        $region57: #{tpu_custom_call.1} parent=11 // pred_check
          %p649 = pneg %p383
        $region58: #{tpu_custom_call.1} parent=11 // pred_check_branch
          %651 = sbr.rel (%p649) target = $region60
        $region59: #{tpu_custom_call.1} parent=11 // pred_region
          _
        $region60: #{tpu_custom_call.1} parent=11 // pred_fallthru
          _
        // Predicated region
        $region61: #{tpu_custom_call.1} parent=11 // pred_check
          %p652 = pneg %p404
        $region62: #{tpu_custom_call.1} parent=11 // pred_check_branch
          %654 = sbr.rel (%p652) target = $region64
        $region63: #{tpu_custom_call.1} parent=11 // pred_region
          _
        $region64: #{tpu_custom_call.1} parent=11 // pred_fallthru
          _
        // Predicated region
        $region65: #{tpu_custom_call.1} parent=11 // pred_check
          %p655 = pneg %p425
        $region66: #{tpu_custom_call.1} parent=11 // pred_check_branch
          %657 = sbr.rel (%p655) target = $region68
        $region67: #{tpu_custom_call.1} parent=11 // pred_region
          _
        $region68: #{tpu_custom_call.1} parent=11 // pred_fallthru
          _
        // Predicated region
        $region69: #{tpu_custom_call.1} parent=11 // pred_check
          %p658 = pneg %p446
        $region70: #{tpu_custom_call.1} parent=11 // pred_check_branch
          %660 = sbr.rel (%p658) target = $region72
        $region71: #{tpu_custom_call.1} parent=11 // pred_region
          _
        $region72: #{tpu_custom_call.1} parent=11 // pred_fallthru
          _
        // Predicated region
        $region73: #{tpu_custom_call.1} parent=11 // pred_check
          %p661 = pneg %p467
        $region74: #{tpu_custom_call.1} parent=11 // pred_check_branch
          %663 = sbr.rel (%p661) target = $region76
        $region75: #{tpu_custom_call.1} parent=11 // pred_region
          _
        $region76: #{tpu_custom_call.1} parent=11 // pred_fallthru
          _
        // Predicated region
        $region77: #{tpu_custom_call.1} parent=11 // pred_check
          %p664 = pneg %p488
        $region78: #{tpu_custom_call.1} parent=11 // pred_check_branch
          %666 = sbr.rel (%p664) target = $region80
        $region79: #{tpu_custom_call.1} parent=11 // pred_region
          _
        $region80: #{tpu_custom_call.1} parent=11 // pred_fallthru
          _
        // Predicated region
        $region81: #{tpu_custom_call.1} parent=11 // pred_check
          %p667 = pneg %p509
        $region82: #{tpu_custom_call.1} parent=11 // pred_check_branch
          %669 = sbr.rel (%p667) target = $region84
        $region83: #{tpu_custom_call.1} parent=11 // pred_region
          _
        $region84: #{tpu_custom_call.1} parent=11 // pred_fallthru
          _
      $region12: #{tpu_custom_call.1} parent=5 // pred_fallthru
        _
      %p670 = scmp.lt.s32.totalorder %s34, 2
      // Predicated region
      $region85: #{tpu_custom_call.1} parent=5 // pred_check
        %p671 = pneg %p670
      $region86: #{tpu_custom_call.1} parent=5 // pred_check_branch
        %673 = sbr.rel (%p671) target = $region88
      $region87: #{tpu_custom_call.1} parent=5 // pred_region
        // Predicated region
        $region89: #{tpu_custom_call.1} parent=87 // pred_check
          %p674 = pneg %p68
        $region90: #{tpu_custom_call.1} parent=87 // pred_check_branch
          %676 = sbr.rel (%p674) target = $region92
        $region91: #{tpu_custom_call.1} parent=87 // pred_region
          %p677 = scmp.lt.s32.totalorder %s41, 1
          %s678 = scalar_select %p677, %s41, 1
          %p679 = scmp.lt.s32.totalorder %s42, 0
          %s680 = scalar_select %p679, %s42, 0
          %s681 = sadd.s32 %s680, %s678
          %s682 = smul.addr %s681, 8
          %s683 = scalar_lea.vmem %s0, %s682
        $region92: #{tpu_custom_call.1} parent=87 // pred_fallthru
          _
        // Predicated region
        $region93: #{tpu_custom_call.1} parent=87 // pred_check
          %p684 = pneg %p94
        $region94: #{tpu_custom_call.1} parent=87 // pred_check_branch
          %686 = sbr.rel (%p684) target = $region96
        $region95: #{tpu_custom_call.1} parent=87 // pred_region
          %p687 = scmp.lt.s32.totalorder %s41, 1
          %s688 = scalar_select %p687, %s41, 1
          %s689 = smul.addr %s688, 8
          %s690 = scalar_lea.vmem %s1, %s689
        $region96: #{tpu_custom_call.1} parent=87 // pred_fallthru
          _
        // Predicated region
        $region97: #{tpu_custom_call.1} parent=87 // pred_check
          %p691 = pneg %p167
        $region98: #{tpu_custom_call.1} parent=87 // pred_check_branch
          %693 = sbr.rel (%p691) target = $region100
        $region99: #{tpu_custom_call.1} parent=87 // pred_region
          %p694 = scmp.lt.s32.totalorder %s41, 1
          %s695 = scalar_select %p694, %s41, 1
          %s696 = scalar_lea.vmem %s4, %s695
        $region100: #{tpu_custom_call.1} parent=87 // pred_fallthru
          _
      $region88: #{tpu_custom_call.1} parent=5 // pred_fallthru
        _
      %p697 = scmp.le.s32.totalorder 1, %s34
      %p698 = scmp.lt.s32.totalorder %s34, 3
      %p699 = pnand %p697, %p698
      %p700 = pneg %p699
      // Predicated region
      $region101: #{tpu_custom_call.1} parent=5 // pred_check
        _
      $region102: #{tpu_custom_call.1} parent=5 // pred_check_branch
        %702 = sbr.rel (%p699) target = $region104
      $region103: #{tpu_custom_call.1} parent=5 // pred_region
        %s703 = ssub.s32 %s34, 1
        // Predicated region
        $region105: #{tpu_custom_call.1} parent=103 // pred_check
          %p704 = pneg %p126
        $region106: #{tpu_custom_call.1} parent=103 // pred_check_branch
          %706 = sbr.rel (%p704) target = $region108
        $region107: #{tpu_custom_call.1} parent=103 // pred_region
          %708 = dma.done [#allocation3], 128
        $region108: #{tpu_custom_call.1} parent=103 // pred_fallthru
          _
        // Predicated region
        $region109: #{tpu_custom_call.1} parent=103 // pred_check
          %p709 = pneg %p147
        $region110: #{tpu_custom_call.1} parent=103 // pred_check_branch
          %711 = sbr.rel (%p709) target = $region112
        $region111: #{tpu_custom_call.1} parent=103 // pred_region
          %713 = dma.done [#allocation6], 128
        $region112: #{tpu_custom_call.1} parent=103 // pred_fallthru
          _
        // Predicated region
        $region113: #{tpu_custom_call.1} parent=103 // pred_check
          %p714 = pneg %p236
        $region114: #{tpu_custom_call.1} parent=103 // pred_check_branch
          %716 = sbr.rel (%p714) target = $region116
        $region115: #{tpu_custom_call.1} parent=103 // pred_region
          %718 = dma.done [#allocation6], 256
        $region116: #{tpu_custom_call.1} parent=103 // pred_fallthru
          _
        // Predicated region
        $region117: #{tpu_custom_call.1} parent=103 // pred_check
          %p719 = pneg %p278
        $region118: #{tpu_custom_call.1} parent=103 // pred_check_branch
          %721 = sbr.rel (%p719) target = $region120
        $region119: #{tpu_custom_call.1} parent=103 // pred_region
          %723 = dma.done [#allocation9], 256
        $region120: #{tpu_custom_call.1} parent=103 // pred_fallthru
          _
        // Predicated region
        $region121: #{tpu_custom_call.1} parent=103 // pred_check
          %p724 = pneg %p320
        $region122: #{tpu_custom_call.1} parent=103 // pred_check_branch
          %726 = sbr.rel (%p724) target = $region124
        $region123: #{tpu_custom_call.1} parent=103 // pred_region
          %728 = dma.done [#allocation9], 256
        $region124: #{tpu_custom_call.1} parent=103 // pred_fallthru
          _
        // Predicated region
        $region125: #{tpu_custom_call.1} parent=103 // pred_check
          %p729 = pneg %p362
        $region126: #{tpu_custom_call.1} parent=103 // pred_check_branch
          %731 = sbr.rel (%p729) target = $region128
        $region127: #{tpu_custom_call.1} parent=103 // pred_region
          %733 = dma.done [#allocation12], 256
        $region128: #{tpu_custom_call.1} parent=103 // pred_fallthru
          _
        %p734 = scmp.lt.s32.totalorder %s43, 1
        %s735 = scalar_select %p734, %s43, 1
        %p736 = scmp.lt.s32.totalorder %s44, 0
        %s737 = scalar_select %p736, %s44, 0
        %s738 = sadd.s32 %s737, %s735
        %s739 = smul.addr %s738, 8
        %s740 = scalar_lea.vmem %s0, %s739
        %p741 = pneg %p74
        %p742 = pneg %p71
        %p743 = scmp.lt.s32.totalorder %s43, 1
        %s744 = scalar_select %p743, %s43, 1
        %s745 = smul.addr %s744, 8
        %s746 = scalar_lea.vmem %s1, %s745
        %p747 = pneg %p100
        %p748 = pneg %p97
        %p749 = pneg %p126
        %p750 = pneg %p123
        %p751 = pneg %p147
        %p752 = pneg %p144
        %p753 = scmp.lt.s32.totalorder %s43, 1
        %s754 = scalar_select %p753, %s43, 1
        %s755 = scalar_lea.vmem %s4, %s754
        %p756 = pneg %p173
        %p757 = pneg %p170
        %p758 = pneg %p194
        %p759 = pneg %p191
        %p760 = pneg %p215
        %p761 = pneg %p212
        %p762 = pneg %p236
        %p763 = pneg %p233
        %p764 = pneg %p257
        %p765 = pneg %p254
        %p766 = pneg %p278
        %p767 = pneg %p275
        %p768 = pneg %p299
        %p769 = pneg %p296
        %p770 = pneg %p320
        %p771 = pneg %p317
        %p772 = pneg %p341
        %p773 = pneg %p338
        %p774 = pneg %p362
        %p775 = pneg %p359
        %p776 = pneg %p383
        %p777 = pneg %p380
        %p778 = pneg %p404
        %p779 = pneg %p401
        %p780 = pneg %p425
        %p781 = pneg %p422
        %p782 = pneg %p446
        %p783 = pneg %p443
        %p784 = pneg %p467
        %p785 = pneg %p464
        %p786 = pneg %p488
        %p787 = pneg %p485
        %p788 = pneg %p509
        %p789 = pneg %p506
        %p790 = pneg %p537
        %p791 = pneg %p534
        %s792 = sand.u32 %s524, 1
        %s793 = scalar_lea.sflag [#allocation4], %s792
        %s794 = sand.u32 %s524, 1
        %s795 = smul.addr %s794, 8
        %s796 = scalar_lea.vmem [#allocation13], %s795
        %p797 = scmp.lt.s32.totalorder %s43, 1
        %s798 = scalar_select %p797, %s43, 1
        %p799 = scmp.lt.s32.totalorder %s44, 0
        %s800 = scalar_select %p799, %s44, 0
        %s801 = sadd.s32 %s800, %s798
        %s802 = smul.addr %s801, 8
        %s803 = scalar_lea.vmem %s0, %s802
        %p804 = scmp.lt.s32.totalorder %s43, 1
        %s805 = scalar_select %p804, %s43, 1
        %s806 = smul.addr %s805, 8
        %s807 = scalar_lea.vmem %s1, %s806
        %p808 = scmp.lt.s32.totalorder %s43, 1
        %s809 = scalar_select %p808, %s43, 1
        %s810 = scalar_lea.vmem %s4, %s809
        %v812 = vld [vmem:[%s803] sm:$0xff]
        %v813 = vld [vmem:[%s807] sm:$0xff]
        %v814 = vld [vmem:[%s810] sm:$0x1]
        %v815 = vld [vmem:[#allocation2] sm:$0xff]
        %v816 = vadd.f32 %v812, %v815
        %v817 = vld [vmem:[#allocation5] sm:$0xff]
        %v818 = vadd.f32 %v813, %v817
        %v819 = vpack.c.bf16 %v816, %v816
        %v820 = vld [vmem:[%s5] sm:$0xf]
        %v821 = vld [vmem:[%s5 + $0x4] sm:$0xf]
        %v822 = vld [vmem:[%s5 + $0x8] sm:$0xf]
        %v823 = vld [vmem:[%s5 + $0xc] sm:$0xf]
        %v824 = vld [vmem:[%s6] sm:$0x1]
        %v826 = vperm.slane %v824, 0
        %v832 = vunpack.c.l.b16 %v820
        %v833 = vunpack.c.l.b16 %v821
        %v834 = vunpack.c.l.b16 %v822
        %v835 = vunpack.c.l.b16 %v823
        %v836 = vpack.c.b16 %v833, %v832
        %v837 = vpack.c.b16 %v835, %v834
        %vm840 = vcmask 261120
        %v842 = vsel %vm840, %v819, 0
        %844 = vmatpush.bf16.msra.mxu0 0
        %845 = vmatpush.bf16.msra.mxu0 0
        %846 = vmatpush.bf16.msra.mxu0 0
        %847 = vmatpush.bf16.msra.mxu0 0
        %848 = vmatpush.bf16.msra.mxu0 0
        %849 = vmatpush.bf16.msra.mxu0 0
        %850 = vmatpush.bf16.msra.mxu0 %v837
        %851 = vmatpush.bf16.msra.mxu0 %v836
        %852 = vmatmul.bf16.gmra.mxu0 %v842
        %v853 = vpop.f32.mrf.mxu0
        %v854 = vadd.f32 %v826, %v853
        %v855 = vpop.f32.mrf.mxu0
        %856 = vdwg.mxu0
        %v857 = vpack.c.bf16 %v818, %v818
        %v858 = vld [vmem:[#allocation7] sm:$0xf]
        %v859 = vld [vmem:[#allocation7 + $0x4] sm:$0xf]
        %v860 = vld [vmem:[#allocation7 + $0x8] sm:$0xf]
        %v861 = vld [vmem:[#allocation7 + $0xc] sm:$0xf]
        %v862 = vld [vmem:[%s8] sm:$0x1]
        %v864 = vperm.slane %v862, 0
        %v870 = vunpack.c.l.b16 %v858
        %v871 = vunpack.c.l.b16 %v859
        %v872 = vunpack.c.l.b16 %v860
        %v873 = vunpack.c.l.b16 %v861
        %v874 = vpack.c.b16 %v871, %v870
        %v875 = vpack.c.b16 %v873, %v872
        %v879 = vsel %vm840, %v857, 0
        %881 = vmatpush.bf16.msra.mxu0 0
        %882 = vmatpush.bf16.msra.mxu0 0
        %883 = vmatpush.bf16.msra.mxu0 0
        %884 = vmatpush.bf16.msra.mxu0 0
        %885 = vmatpush.bf16.msra.mxu0 0
        %886 = vmatpush.bf16.msra.mxu0 0
        %887 = vmatpush.bf16.msra.mxu0 %v875
        %888 = vmatpush.bf16.msra.mxu0 %v874
        %889 = vmatmul.bf16.gmra.mxu0 %v879
        %v890 = vpop.f32.mrf.mxu0
        %v891 = vadd.f32 %v864, %v890
        %v892 = vpop.f32.mrf.mxu0
        %893 = vdwg.mxu0
        %v894 = vpack.c.bf16 %v813, %v813
        %v895 = vld [vmem:[#allocation8] sm:$0xf]
        %v896 = vld [vmem:[#allocation8 + $0x4] sm:$0xf]
        %v897 = vld [vmem:[#allocation8 + $0x8] sm:$0xf]
        %v898 = vld [vmem:[#allocation8 + $0xc] sm:$0xf]
        %v899 = vld [vmem:[%s10] sm:$0x1]
        %v901 = vperm.slane %v899, 0
        %v907 = vunpack.c.l.b16 %v895
        %v908 = vunpack.c.l.b16 %v896
        %v909 = vunpack.c.l.b16 %v897
        %v910 = vunpack.c.l.b16 %v898
        %v911 = vpack.c.b16 %v908, %v907
        %v912 = vpack.c.b16 %v910, %v909
        %v916 = vsel %vm840, %v894, 0
        %918 = vmatpush.bf16.msra.mxu0 0
        %919 = vmatpush.bf16.msra.mxu0 0
        %920 = vmatpush.bf16.msra.mxu0 0
        %921 = vmatpush.bf16.msra.mxu0 0
        %922 = vmatpush.bf16.msra.mxu0 0
        %923 = vmatpush.bf16.msra.mxu0 0
        %924 = vmatpush.bf16.msra.mxu0 %v912
        %925 = vmatpush.bf16.msra.mxu0 %v911
        %926 = vmatmul.bf16.gmra.mxu0 %v916
        %v927 = vpop.f32.mrf.mxu0
        %v928 = vadd.f32 %v901, %v927
        %v929 = vpop.f32.mrf.mxu0
        %930 = vdwg.mxu0
        %v931 = vmul.f32 %v854, 0.35355338
        %v932 = vpack.c.bf16 %v931, %v931
        %v933 = vpack.c.bf16 %v891, %v891
        %v934 = vpack.c.bf16 %v928, %v928
        %v935 = vld [vmem:[#allocation10] sm:$0xf]
        %v936 = vld [vmem:[#allocation10 + $0x4] sm:$0xf]
        %v937 = vld [vmem:[#allocation10 + $0x8] sm:$0xf]
        %v938 = vld [vmem:[#allocation10 + $0xc] sm:$0xf]
        %v940 = vperm.slane %v814, 0
        %vm942 = vcmask 64512
        %v944 = vsel %vm942, %v932, 0
        %v947 = vsel %vm942, %v933, 0
        %949 = vmatpush.bf16.xpose.msra.mxu0 0
        %950 = vmatpush.bf16.xpose.msra.mxu0 0
        %951 = vmatpush.bf16.xpose.msra.mxu0 0
        %952 = vmatpush.bf16.xpose.msra.mxu0 0
        %953 = vmatpush.bf16.xpose.msra.mxu0 0
        %954 = vmatpush.bf16.xpose.msra.mxu0 0
        %955 = vmatpush.bf16.xpose.msra.mxu0 0
        %956 = vmatpush.bf16.xpose.msra.mxu0 %v947
        %957 = vmatmul.bf16.gmra.mxu0 %v944
        %v958 = vpop.f32.mrf.mxu0
        %v959 = vadd.f32 %v940, %v958
        %v960 = vpop.f32.mrf.mxu0
        %961 = vdwg.mxu0
        %v962 = vsel %vm942, %v959, -inf
        %963 = vmax.xlane.f32.xlu0 %v962
        %v964 = vpop.xlane.xlu0 %963
        %v965 = vsub.f32 %v959, %v964
        %v966 = vmul.f32 %v965, 1.442695
        %v967 = vpow.pop %v966
        %v968 = vsel %vm942, %v967, 0.0
        %969 = vadd.xlane.f32.xlu0 %v968
        %v970 = vpop.xlane.xlu0 %969
        %v971 = vrcp.pop %v970
        %v972 = vmul.f32 %v967, %v971
        %v973 = vpack.c.bf16 %v972, %v972
        %v975 = vsel %vm942, %v973, 0
        %vm977 = vcmask 1043456
        %v979 = vsel %vm977, %v934, 0
        %981 = vmatpush.bf16.msra.mxu0 0
        %982 = vmatpush.bf16.msra.mxu0 0
        %983 = vmatpush.bf16.msra.mxu0 0
        %984 = vmatpush.bf16.msra.mxu0 0
        %985 = vmatpush.bf16.msra.mxu0 0
        %986 = vmatpush.bf16.msra.mxu0 0
        %987 = vmatpush.bf16.msra.mxu0 0
        %988 = vmatpush.bf16.msra.mxu0 %v979
        %989 = vmatmul.bf16.gmra.mxu0 %v975
        %v990 = vpop.f32.mrf.mxu0
        %v991 = vadd.f32 0.0, %v990
        %v992 = vpop.f32.mrf.mxu0
        %993 = vdwg.mxu0
        %v994 = vpack.c.bf16 %v991, %v991
        %v996 = vunpack.c.l.b16 %v932
        %v997 = vpack.c.b16 %v996, %v996
        %998 = vrot.lane.b32.xlu0 %v997, 120
        %v999 = vpop.permute.xlu0 %998
        %v1001 = vunpack.c.l.b16 %v933
        %v1002 = vpack.c.b16 %v1001, %v1001
        %1003 = vrot.lane.b32.xlu0 %v1002, 120
        %v1004 = vpop.permute.xlu0 %1003
        %v1006 = vsel %vm942, %v999, 0
        %v1009 = vsel %vm942, %v1004, 0
        %1011 = vmatpush.bf16.xpose.msra.mxu0 0
        %1012 = vmatpush.bf16.xpose.msra.mxu0 0
        %1013 = vmatpush.bf16.xpose.msra.mxu0 0
        %1014 = vmatpush.bf16.xpose.msra.mxu0 0
        %1015 = vmatpush.bf16.xpose.msra.mxu0 0
        %1016 = vmatpush.bf16.xpose.msra.mxu0 0
        %1017 = vmatpush.bf16.xpose.msra.mxu0 0
        %1018 = vmatpush.bf16.xpose.msra.mxu0 %v1009
        %1019 = vmatmul.bf16.gmra.mxu0 %v1006
        %v1020 = vpop.f32.mrf.mxu0
        %v1021 = vadd.f32 %v940, %v1020
        %v1022 = vpop.f32.mrf.mxu0
        %1023 = vdwg.mxu0
        %v1024 = vsel %vm942, %v1021, -inf
        %1025 = vmax.xlane.f32.xlu0 %v1024
        %v1026 = vpop.xlane.xlu0 %1025
        %v1027 = vsub.f32 %v1021, %v1026
        %v1028 = vmul.f32 %v1027, 1.442695
        %v1029 = vpow.pop %v1028
        %v1030 = vsel %vm942, %v1029, 0.0
        %1031 = vadd.xlane.f32.xlu0 %v1030
        %v1032 = vpop.xlane.xlu0 %1031
        %v1033 = vrcp.pop %v1032
        %v1034 = vmul.f32 %v1029, %v1033
        %v1035 = vpack.c.bf16 %v1034, %v1034
        %v1037 = vunpack.c.l.b16 %v934
        %v1038 = vpack.c.b16 %v1037, %v1037
        %1039 = vrot.lane.b32.xlu0 %v1038, 120
        %v1040 = vpop.permute.xlu0 %1039
        %v1042 = vsel %vm942, %v1035, 0
        %v1045 = vsel %vm977, %v1040, 0
        %1047 = vmatpush.bf16.msra.mxu0 0
        %1048 = vmatpush.bf16.msra.mxu0 0
        %1049 = vmatpush.bf16.msra.mxu0 0
        %1050 = vmatpush.bf16.msra.mxu0 0
        %1051 = vmatpush.bf16.msra.mxu0 0
        %1052 = vmatpush.bf16.msra.mxu0 0
        %1053 = vmatpush.bf16.msra.mxu0 0
        %1054 = vmatpush.bf16.msra.mxu0 %v1045
        %1055 = vmatmul.bf16.gmra.mxu0 %v1042
        %v1056 = vpop.f32.mrf.mxu0
        %v1057 = vadd.f32 0.0, %v1056
        %v1058 = vpop.f32.mrf.mxu0
        %1059 = vdwg.mxu0
        %v1060 = vpack.c.bf16 %v1057, %v1057
        %v1062 = vsel %vm942, %v1060, 0
        %v1065 = vsel %vm977, %v936, 0
        %1067 = vmatpush.bf16.msra.mxu0 0
        %1068 = vmatpush.bf16.msra.mxu0 0
        %1069 = vmatpush.bf16.msra.mxu0 0
        %1070 = vmatpush.bf16.msra.mxu0 0
        %1071 = vmatpush.bf16.msra.mxu0 0
        %1072 = vmatpush.bf16.msra.mxu0 0
        %1073 = vmatpush.bf16.msra.mxu0 0
        %1074 = vmatpush.bf16.msra.mxu0 %v1065
        %1075 = vmatmul.bf16.gmra.mxu0 %v1062
        %v1076 = vpop.f32.mrf.mxu0
        %v1077 = vadd.f32 0.0, %v1076
        %v1078 = vpop.f32.mrf.mxu0
        %1079 = vdwg.mxu0
        %v1081 = vsel %vm942, %v994, 0
        %v1084 = vsel %vm977, %v935, 0
        %1086 = vmatpush.bf16.msra.mxu0 0
        %1087 = vmatpush.bf16.msra.mxu0 0
        %1088 = vmatpush.bf16.msra.mxu0 0
        %1089 = vmatpush.bf16.msra.mxu0 0
        %1090 = vmatpush.bf16.msra.mxu0 0
        %1091 = vmatpush.bf16.msra.mxu0 0
        %1092 = vmatpush.bf16.msra.mxu0 0
        %1093 = vmatpush.bf16.msra.mxu0 %v1084
        %1094 = vmatmul.bf16.gmra.mxu0 %v1081
        %v1095 = vpop.f32.mrf.mxu0
        %v1096 = vadd.f32 %v1077, %v1095
        %v1097 = vpop.f32.mrf.mxu0
        %1098 = vdwg.mxu0
        %1099 = vrot.lane.b32.xlu0 %v997, 112
        %v1100 = vpop.permute.xlu0 %1099
        %1101 = vrot.lane.b32.xlu0 %v1002, 112
        %v1102 = vpop.permute.xlu0 %1101
        %v1104 = vsel %vm942, %v1100, 0
        %v1107 = vsel %vm942, %v1102, 0
        %1109 = vmatpush.bf16.xpose.msra.mxu0 0
        %1110 = vmatpush.bf16.xpose.msra.mxu0 0
        %1111 = vmatpush.bf16.xpose.msra.mxu0 0
        %1112 = vmatpush.bf16.xpose.msra.mxu0 0
        %1113 = vmatpush.bf16.xpose.msra.mxu0 0
        %1114 = vmatpush.bf16.xpose.msra.mxu0 0
        %1115 = vmatpush.bf16.xpose.msra.mxu0 0
        %1116 = vmatpush.bf16.xpose.msra.mxu0 %v1107
        %1117 = vmatmul.bf16.gmra.mxu0 %v1104
        %v1118 = vpop.f32.mrf.mxu0
        %v1119 = vadd.f32 %v940, %v1118
        %v1120 = vpop.f32.mrf.mxu0
        %1121 = vdwg.mxu0
        %v1122 = vsel %vm942, %v1119, -inf
        %1123 = vmax.xlane.f32.xlu0 %v1122
        %v1124 = vpop.xlane.xlu0 %1123
        %v1125 = vsub.f32 %v1119, %v1124
        %v1126 = vmul.f32 %v1125, 1.442695
        %v1127 = vpow.pop %v1126
        %v1128 = vsel %vm942, %v1127, 0.0
        %1129 = vadd.xlane.f32.xlu0 %v1128
        %v1130 = vpop.xlane.xlu0 %1129
        %v1131 = vrcp.pop %v1130
        %v1132 = vmul.f32 %v1127, %v1131
        %v1133 = vpack.c.bf16 %v1132, %v1132
        %1134 = vrot.lane.b32.xlu0 %v1038, 112
        %v1135 = vpop.permute.xlu0 %1134
        %v1137 = vsel %vm942, %v1133, 0
        %v1140 = vsel %vm977, %v1135, 0
        %1142 = vmatpush.bf16.msra.mxu0 0
        %1143 = vmatpush.bf16.msra.mxu0 0
        %1144 = vmatpush.bf16.msra.mxu0 0
        %1145 = vmatpush.bf16.msra.mxu0 0
        %1146 = vmatpush.bf16.msra.mxu0 0
        %1147 = vmatpush.bf16.msra.mxu0 0
        %1148 = vmatpush.bf16.msra.mxu0 0
        %1149 = vmatpush.bf16.msra.mxu0 %v1140
        %1150 = vmatmul.bf16.gmra.mxu0 %v1137
        %v1151 = vpop.f32.mrf.mxu0
        %v1152 = vadd.f32 0.0, %v1151
        %v1153 = vpop.f32.mrf.mxu0
        %1154 = vdwg.mxu0
        %v1155 = vpack.c.bf16 %v1152, %v1152
        %v1157 = vsel %vm942, %v1155, 0
        %v1160 = vsel %vm977, %v937, 0
        %1162 = vmatpush.bf16.msra.mxu0 0
        %1163 = vmatpush.bf16.msra.mxu0 0
        %1164 = vmatpush.bf16.msra.mxu0 0
        %1165 = vmatpush.bf16.msra.mxu0 0
        %1166 = vmatpush.bf16.msra.mxu0 0
        %1167 = vmatpush.bf16.msra.mxu0 0
        %1168 = vmatpush.bf16.msra.mxu0 0
        %1169 = vmatpush.bf16.msra.mxu0 %v1160
        %1170 = vmatmul.bf16.gmra.mxu0 %v1157
        %v1171 = vpop.f32.mrf.mxu0
        %v1172 = vadd.f32 0.0, %v1171
        %v1173 = vpop.f32.mrf.mxu0
        %1174 = vdwg.mxu0
        %v1175 = vadd.f32 %v1096, %v1172
        %1176 = vrot.lane.b32.xlu0 %v997, 104
        %v1177 = vpop.permute.xlu0 %1176
        %1178 = vrot.lane.b32.xlu0 %v1002, 104
        %v1179 = vpop.permute.xlu0 %1178
        %v1181 = vsel %vm942, %v1177, 0
        %v1184 = vsel %vm942, %v1179, 0
        %1186 = vmatpush.bf16.xpose.msra.mxu0 0
        %1187 = vmatpush.bf16.xpose.msra.mxu0 0
        %1188 = vmatpush.bf16.xpose.msra.mxu0 0
        %1189 = vmatpush.bf16.xpose.msra.mxu0 0
        %1190 = vmatpush.bf16.xpose.msra.mxu0 0
        %1191 = vmatpush.bf16.xpose.msra.mxu0 0
        %1192 = vmatpush.bf16.xpose.msra.mxu0 0
        %1193 = vmatpush.bf16.xpose.msra.mxu0 %v1184
        %1194 = vmatmul.bf16.gmra.mxu0 %v1181
        %v1195 = vpop.f32.mrf.mxu0
        %v1196 = vadd.f32 %v940, %v1195
        %v1197 = vpop.f32.mrf.mxu0
        %1198 = vdwg.mxu0
        %v1199 = vsel %vm942, %v1196, -inf
        %1200 = vmax.xlane.f32.xlu0 %v1199
        %v1201 = vpop.xlane.xlu0 %1200
        %v1202 = vsub.f32 %v1196, %v1201
        %v1203 = vmul.f32 %v1202, 1.442695
        %v1204 = vpow.pop %v1203
        %v1205 = vsel %vm942, %v1204, 0.0
        %1206 = vadd.xlane.f32.xlu0 %v1205
        %v1207 = vpop.xlane.xlu0 %1206
        %v1208 = vrcp.pop %v1207
        %v1209 = vmul.f32 %v1204, %v1208
        %v1210 = vpack.c.bf16 %v1209, %v1209
        %1211 = vrot.lane.b32.xlu0 %v1038, 104
        %v1212 = vpop.permute.xlu0 %1211
        %v1214 = vsel %vm942, %v1210, 0
        %v1217 = vsel %vm977, %v1212, 0
        %1219 = vmatpush.bf16.msra.mxu0 0
        %1220 = vmatpush.bf16.msra.mxu0 0
        %1221 = vmatpush.bf16.msra.mxu0 0
        %1222 = vmatpush.bf16.msra.mxu0 0
        %1223 = vmatpush.bf16.msra.mxu0 0
        %1224 = vmatpush.bf16.msra.mxu0 0
        %1225 = vmatpush.bf16.msra.mxu0 0
        %1226 = vmatpush.bf16.msra.mxu0 %v1217
        %1227 = vmatmul.bf16.gmra.mxu0 %v1214
        %v1228 = vpop.f32.mrf.mxu0
        %v1229 = vadd.f32 0.0, %v1228
        %v1230 = vpop.f32.mrf.mxu0
        %1231 = vdwg.mxu0
        %v1232 = vpack.c.bf16 %v1229, %v1229
        %v1234 = vsel %vm942, %v1232, 0
        %v1237 = vsel %vm977, %v938, 0
        %1239 = vmatpush.bf16.msra.mxu0 0
        %1240 = vmatpush.bf16.msra.mxu0 0
        %1241 = vmatpush.bf16.msra.mxu0 0
        %1242 = vmatpush.bf16.msra.mxu0 0
        %1243 = vmatpush.bf16.msra.mxu0 0
        %1244 = vmatpush.bf16.msra.mxu0 0
        %1245 = vmatpush.bf16.msra.mxu0 0
        %1246 = vmatpush.bf16.msra.mxu0 %v1237
        %1247 = vmatmul.bf16.gmra.mxu0 %v1234
        %v1248 = vpop.f32.mrf.mxu0
        %v1249 = vadd.f32 0.0, %v1248
        %v1250 = vpop.f32.mrf.mxu0
        %1251 = vdwg.mxu0
        %v1252 = vadd.f32 %v1175, %v1249
        %v1253 = vld [vmem:[%s12] sm:$0x1]
        %v1255 = vperm.slane %v1253, 0
        %v1257 = vadd.f32 %v1252, %v1255
        %v1258 = vadd.f32 %v812, %v1257
        %v1259 = vld [vmem:[%s17] sm:$0x1]
        %v1260 = vld [vmem:[%s18] sm:$0x1]
        %v1261 = vsel %vm840, %v1258, 0.0
        %1262 = vadd.xlane.f32.xlu0 %v1261
        %v1263 = vpop.xlane.xlu0 %1262
        %v1264 = vrcp.pop 32.0
        %v1265 = vmul.f32 32.0, %v1264
        %v1266 = vsub.f32 1.0, %v1265
        %v1267 = vmul.f32 %v1264, %v1266
        %v1268 = vadd.f32 %v1264, %v1267
        %vm1269 = vweird.f32 %v1264
        %v1270 = vsel %vm1269, %v1264, %v1268
        %v1271 = vmul.f32 %v1263, %v1270
        %v1272 = vsub.f32 %v1258, %v1271
        %v1273 = vmul.f32 %v1272, %v1272
        %v1274 = vsel %vm840, %v1273, 0.0
        %1275 = vadd.xlane.f32.xlu0 %v1274
        %v1276 = vpop.xlane.xlu0 %1275
        %v1277 = vmul.f32 %v1276, %v1270
        %v1278 = vadd.f32 %v1277, 1e-05
        %v1279 = vrsqrt.pop %v1278
        %v1280 = vmul.f32 %v1279, %v1278
        %v1281 = vmul.f32 %v1280, %v1279
        %v1282 = vmul.f32 0.5, %v1281
        %v1283 = vsub.f32 1.5, %v1282
        %v1284 = vmul.f32 %v1279, %v1283
        %vm1285 = vweird.f32 %v1278
        %vm1286 = vweird.f32 %v1279
        %vm1287 = vmor %vm1285, %vm1286
        %v1288 = vsel %vm1287, %v1279, %v1284
        %v1289 = vmul.f32 %v1272, %v1288
        %v1291 = vperm.slane %v1259, 0
        %v1293 = vmul.f32 %v1289, %v1291
        %v1295 = vperm.slane %v1260, 0
        %v1297 = vadd.f32 %v1293, %v1295
        %v1298 = vpack.c.bf16 %v1297, %v1297
        %v1299 = vld [vmem:[#allocation11] sm:$0xf]
        %v1300 = vld [vmem:[#allocation11 + $0x4] sm:$0xf]
        %v1301 = vld [vmem:[#allocation11 + $0x8] sm:$0xf]
        %v1302 = vld [vmem:[#allocation11 + $0xc] sm:$0xf]
        %v1303 = vld [vmem:[%s14] sm:$0x1]
        %v1305 = vperm.slane %v1303, 0
        %v1311 = vunpack.c.l.b16 %v1299
        %v1312 = vunpack.c.l.b16 %v1300
        %v1313 = vunpack.c.l.b16 %v1301
        %v1314 = vunpack.c.l.b16 %v1302
        %v1315 = vpack.c.b16 %v1312, %v1311
        %v1316 = vpack.c.b16 %v1314, %v1313
        %v1320 = vsel %vm840, %v1298, 0
        %1322 = vmatpush.bf16.msra.mxu0 0
        %1323 = vmatpush.bf16.msra.mxu0 0
        %1324 = vmatpush.bf16.msra.mxu0 0
        %1325 = vmatpush.bf16.msra.mxu0 0
        %1326 = vmatpush.bf16.msra.mxu0 0
        %1327 = vmatpush.bf16.msra.mxu0 0
        %1328 = vmatpush.bf16.msra.mxu0 %v1316
        %1329 = vmatpush.bf16.msra.mxu0 %v1315
        %1330 = vmatmul.bf16.gmra.mxu0 %v1320
        %v1331 = vpop.f32.mrf.mxu0
        %v1332 = vadd.f32 %v1305, %v1331
        %v1333 = vpop.f32.mrf.mxu0
        %1334 = vdwg.mxu0
        %v1335 = vmax.f32 %v1332, 0.0
        %v1336 = vpack.c.bf16 %v1335, %v1335
        %v1337 = vld [vmem:[%s15] sm:$0xf]
        %v1338 = vld [vmem:[%s15 + $0x4] sm:$0xf]
        %v1339 = vld [vmem:[%s15 + $0x8] sm:$0xf]
        %v1340 = vld [vmem:[%s15 + $0xc] sm:$0xf]
        %v1341 = vld [vmem:[%s15 + $0x10] sm:$0xf]
        %v1342 = vld [vmem:[%s15 + $0x14] sm:$0xf]
        %v1343 = vld [vmem:[%s15 + $0x18] sm:$0xf]
        %v1344 = vld [vmem:[%s15 + $0x1c] sm:$0xf]
        %v1345 = vld [vmem:[%s16] sm:$0x1]
        %v1347 = vperm.slane %v1345, 0
        %v1357 = vunpack.c.l.b16 %v1337
        %v1358 = vunpack.c.l.b16 %v1338
        %v1359 = vunpack.c.l.b16 %v1339
        %v1360 = vunpack.c.l.b16 %v1340
        %v1361 = vunpack.c.l.b16 %v1341
        %v1362 = vunpack.c.l.b16 %v1342
        %v1363 = vunpack.c.l.b16 %v1343
        %v1364 = vunpack.c.l.b16 %v1344
        %v1365 = vpack.c.b16 %v1358, %v1357
        %v1366 = vpack.c.b16 %v1360, %v1359
        %v1367 = vpack.c.b16 %v1362, %v1361
        %v1368 = vpack.c.b16 %v1364, %v1363
        %vm1373 = vcmask 523264
        %v1375 = vsel %vm1373, %v1336, 0
        %1377 = vmatpush.bf16.msra.mxu0 0
        %1378 = vmatpush.bf16.msra.mxu0 0
        %1379 = vmatpush.bf16.msra.mxu0 0
        %1380 = vmatpush.bf16.msra.mxu0 0
        %1381 = vmatpush.bf16.msra.mxu0 %v1368
        %1382 = vmatpush.bf16.msra.mxu0 %v1367
        %1383 = vmatpush.bf16.msra.mxu0 %v1366
        %1384 = vmatpush.bf16.msra.mxu0 %v1365
        %1385 = vmatmul.bf16.gmra.mxu0 %v1375
        %v1386 = vpop.f32.mrf.mxu0
        %v1387 = vadd.f32 %v1347, %v1386
        %v1388 = vpop.f32.mrf.mxu0
        %1389 = vdwg.mxu0
        %v1390 = vadd.f32 %v1297, %v1387
        %v1391 = vld [vmem:[%s19] sm:$0x1]
        %v1392 = vld [vmem:[%s20] sm:$0x1]
        %v1393 = vsel %vm840, %v1390, 0.0
        %1394 = vadd.xlane.f32.xlu0 %v1393
        %v1395 = vpop.xlane.xlu0 %1394
        %v1396 = vmul.f32 %v1395, %v1270
        %v1397 = vsub.f32 %v1390, %v1396
        %v1398 = vmul.f32 %v1397, %v1397
        %v1399 = vsel %vm840, %v1398, 0.0
        %1400 = vadd.xlane.f32.xlu0 %v1399
        %v1401 = vpop.xlane.xlu0 %1400
        %v1402 = vmul.f32 %v1401, %v1270
        %v1403 = vadd.f32 %v1402, 1e-05
        %v1404 = vrsqrt.pop %v1403
        %v1405 = vmul.f32 %v1404, %v1403
        %v1406 = vmul.f32 %v1405, %v1404
        %v1407 = vmul.f32 0.5, %v1406
        %v1408 = vsub.f32 1.5, %v1407
        %v1409 = vmul.f32 %v1404, %v1408
        %vm1410 = vweird.f32 %v1403
        %vm1411 = vweird.f32 %v1404
        %vm1412 = vmor %vm1410, %vm1411
        %v1413 = vsel %vm1412, %v1404, %v1409
        %v1414 = vmul.f32 %v1397, %v1413
        %v1416 = vperm.slane %v1391, 0
        %v1418 = vmul.f32 %v1414, %v1416
        %v1420 = vperm.slane %v1392, 0
        %v1422 = vadd.f32 %v1418, %v1420
        %1423 = vst.msk [vmem:[%s796] sm:$0xff] %vm840, %v1422
        %s1424 = sand.u32 %s524, 1
        %s1425 = scalar_lea.sflag [#allocation4], %s1424
        %s1426 = sand.u32 %s524, 1
        %s1427 = smul.addr %s1426, 8
        %s1428 = scalar_lea.vmem [#allocation13], %s1427
        // Predicated region
        $region129: #{tpu_custom_call.1} parent=103 // pred_check
          %p1429 = pneg %p534
        $region130: #{tpu_custom_call.1} parent=103 // pred_check_branch
          %1431 = sbr.rel (%p1429) target = $region132
        $region131: #{tpu_custom_call.1} parent=103 // pred_region
          %1433 = vsyncadd %s1425, 0
          %s1434 = sadd.s32 %s44, %s43
          %s1435 = smul.addr %s1434, 8
          %s1436 = scalar_lea.hbm %s21, %s1435
          %s1438 = sshll.u32 %s1428, 4
          %s1439 = int_to_ptr.vmem [resolvable:$true] %s1438
          %s1440 = sshll.u32 %s1436, 4
          %s1441 = int_to_ptr.hbm [resolvable:$true] %s1440
          %1443 = dma.vmem_to_hbm [thread:$0]  %s1439, 128, %s1441, %s1425
        $region132: #{tpu_custom_call.1} parent=103 // pred_fallthru
          _
      $region104: #{tpu_custom_call.1} parent=5 // pred_fallthru
        _
      %p1444 = scmp.le.s32.totalorder 2, %s34
      // Predicated region
      $region133: #{tpu_custom_call.1} parent=5 // pred_check
        %p1445 = pneg %p1444
      $region134: #{tpu_custom_call.1} parent=5 // pred_check_branch
        %1447 = sbr.rel (%p1445) target = $region136
      $region135: #{tpu_custom_call.1} parent=5 // pred_region
        %s1448 = ssub.s32 %s34, 2
        // Predicated region
        $region137: #{tpu_custom_call.1} parent=135 // pred_check
          %p1449 = pneg %p540
        $region138: #{tpu_custom_call.1} parent=135 // pred_check_branch
          %1451 = sbr.rel (%p1449) target = $region140
        $region139: #{tpu_custom_call.1} parent=135 // pred_region
          %s1452 = sand.u32 %s525, 1
          %s1453 = scalar_lea.sflag [#allocation4], %s1452
          %s1454 = sand.u32 %s525, 1
          %s1455 = smul.addr %s1454, 8
          %s1456 = scalar_lea.vmem [#allocation13], %s1455
          %1458 = dma.done %s1453, 128
        $region140: #{tpu_custom_call.1} parent=135 // pred_fallthru
          _
      $region136: #{tpu_custom_call.1} parent=5 // pred_fallthru
        _
    $region6: #{tpu_custom_call.1} parent=1 // loop_footer
      %s38 = sadd.s32 1, %s34
    $region7: #{tpu_custom_call.1} parent=1 // loop_footer_branch
      %33 = sbr.rel target = $region3
    $region8: #{tpu_custom_call.1} parent=1 // loop_exit
      _
    %1459 = vsyncpa [#allocation3], 1
    %s1460 = scalar_lea.sflag [#allocation3], 1
    %1461 = vsyncpa %s1460, 1
    %1462 = vsyncpa [#allocation6], 1
    %1463 = vsyncpa [#allocation9], 1
    %1464 = vsyncpa [#allocation12], 1
    %1465 = vsyncpa [#allocation4], 1
    %s1466 = scalar_lea.sflag [#allocation4], 1
    %1467 = vsyncpa %s1466, 1

// kernel: tpu_custom_call.1
$region0: #{tpu_custom_call.1}
  #allocation0 [shape = 'u32[]', space=smem, size = 0x4, offset = 0x4, fixed_abs, tag = 'smem constant byte address 0x4 - core index']
  #allocation1 [shape = 'u32[72,128]{1,0:T(1,128)}', space=vmem, size = 0x9000, scoped, tag = 'internal scratch']
  %s0 = inlined_call_operand.vmem [shape: f32[2,8,32], index: 0, kind: input, shape index: {}]
  %s1 = inlined_call_operand.vmem [shape: f32[2,8,32], index: 1, kind: input, shape index: {}]
  %s2 = inlined_call_operand.hbm [shape: f32[1,8,32], index: 2, kind: input, shape index: {}]
  %s3 = inlined_call_operand.hbm [shape: f32[1,8,32], index: 3, kind: input, shape index: {}]
  %s4 = inlined_call_operand.vmem [shape: f32[2,1,8], index: 4, kind: input, shape index: {}]
  %s5 = inlined_call_operand.vmem [shape: bf16[32,32], index: 5, kind: input, shape index: {}]
  %s6 = inlined_call_operand.vmem [shape: f32[1,32], index: 6, kind: input, shape index: {}]
  %s7 = inlined_call_operand.hbm [shape: bf16[32,32], index: 7, kind: input, shape index: {}]
  %s8 = inlined_call_operand.vmem [shape: f32[1,32], index: 8, kind: input, shape index: {}]
  %s9 = inlined_call_operand.hbm [shape: bf16[32,32], index: 9, kind: input, shape index: {}]
  %s10 = inlined_call_operand.vmem [shape: f32[1,32], index: 10, kind: input, shape index: {}]
  %s11 = inlined_call_operand.hbm [shape: bf16[32,32], index: 11, kind: input, shape index: {}]
  %s12 = inlined_call_operand.vmem [shape: f32[1,32], index: 12, kind: input, shape index: {}]
  %s13 = inlined_call_operand.hbm [shape: bf16[32,64], index: 13, kind: input, shape index: {}]
  %s14 = inlined_call_operand.vmem [shape: f32[1,64], index: 14, kind: input, shape index: {}]
  %s15 = inlined_call_operand.vmem [shape: bf16[64,32], index: 15, kind: input, shape index: {}]
  %s16 = inlined_call_operand.vmem [shape: f32[1,32], index: 16, kind: input, shape index: {}]
  %s17 = inlined_call_operand.vmem [shape: f32[1,32], index: 17, kind: input, shape index: {}]
  %s18 = inlined_call_operand.vmem [shape: f32[1,32], index: 18, kind: input, shape index: {}]
  %s19 = inlined_call_operand.vmem [shape: f32[1,32], index: 19, kind: input, shape index: {}]
  %s20 = inlined_call_operand.vmem [shape: f32[1,32], index: 20, kind: input, shape index: {}]
  %s21 = inlined_call_operand.hbm [shape: f32[2,8,32], index: 21, kind: output, shape index: {}]
  %s22 = sld [smem:[#allocation0]]
  $region141: #{tpu_custom_call.1} parent=0
    _
  %s24 = ssub.s32 1, %s22
  %s25 = scalar_select 0, %s24, %s22
  $region1: #{tpu_custom_call.1} parent=0
    #allocation2 [shape = 'u8[4096]{0}', space=vmem, size = 0x1000, scoped, tag = 'input window, operand 2, single buffered']
    #allocation3 [shape = 's32[2]{0}', space=sflag, size = 0x8, scoped, tag = 'scoped memory for tpu_custom_call.1']
    #allocation4 [shape = 's32[2]{0}', space=sflag, size = 0x8, scoped, tag = 'scoped memory for tpu_custom_call.1']
    #allocation5 [shape = 'u8[4096]{0}', space=vmem, size = 0x1000, scoped, tag = 'input window, operand 3, single buffered']
    #allocation6 [shape = 's32[1]{0}', space=sflag, size = 0x4, scoped, tag = 'scoped memory for tpu_custom_call.1']
    #allocation7 [shape = 'u8[8192]{0}', space=vmem, size = 0x2000, scoped, tag = 'input window, operand 7, single buffered']
    #allocation8 [shape = 'u8[8192]{0}', space=vmem, size = 0x2000, scoped, tag = 'input window, operand 9, single buffered']
    #allocation9 [shape = 's32[1]{0}', space=sflag, size = 0x4, scoped, tag = 'scoped memory for tpu_custom_call.1']
    #allocation10 [shape = 'u8[8192]{0}', space=vmem, size = 0x2000, scoped, tag = 'input window, operand 11, single buffered']
    #allocation11 [shape = 'u8[8192]{0}', space=vmem, size = 0x2000, scoped, tag = 'input window, operand 13, single buffered']
    #allocation12 [shape = 's32[1]{0}', space=sflag, size = 0x4, scoped, tag = 'scoped memory for tpu_custom_call.1']
    #allocation13 [shape = 'u8[8192]{0}', space=vmem, size = 0x2000, scoped, tag = 'output window, operand 0']
    %26 = vsyncpa [#allocation3], 0
    %27 = vsyncpa [#allocation6], 0
    %28 = vsyncpa [#allocation9], 0
    %29 = vsyncpa [#allocation12], 0
    %30 = vsyncpa [#allocation4], 0
    %s31 = scalar_lea.sflag [#allocation4], 1
    %32 = vsyncpa %s31, 0
    loop: start=0, step=1, limit=4
    $region2: #{tpu_custom_call.1} parent=1 // loop_pre_header
      _
    $region3: #{tpu_custom_call.1} parent=1 // loop_header
      %s34 = sphi 0, %s38
      %p35 = scmp.ge.s32.totalorder %s34, 4
      %s41 = sphi 0, %s53
      %s42 = sphi 0, %s49
      %s43 = sphi 0, %s41
      %s44 = sphi 0, %s42
      %s45 = sphi 0, %s43
      %s46 = sphi 0, %s44
      %s58 = sphi 0, %s60
      %s61 = sphi 0, %s58
      %s62 = sphi 0, %s61
      %s78 = sphi 0, %s62
      %s84 = sphi 0, %s86
      %s87 = sphi 0, %s84
      %s88 = sphi 0, %s87
      %s104 = sphi 0, %s88
      %s110 = sphi 0, %s112
      %s113 = sphi 0, %s110
      %s114 = sphi 0, %s113
      %s130 = sphi 0, %s114
      %s134 = sphi 0, %s134
      %s136 = sphi 0, %s134
      %s137 = sphi 0, %s136
      %s151 = sphi 0, %s137
      %s157 = sphi 0, %s159
      %s160 = sphi 0, %s157
      %s161 = sphi 0, %s160
      %s177 = sphi 0, %s161
      %s181 = sphi 0, %s181
      %s183 = sphi 0, %s181
      %s184 = sphi 0, %s183
      %s198 = sphi 0, %s184
      %s202 = sphi 0, %s202
      %s204 = sphi 0, %s202
      %s205 = sphi 0, %s204
      %s219 = sphi 0, %s205
      %s223 = sphi 0, %s223
      %s225 = sphi 0, %s223
      %s226 = sphi 0, %s225
      %s240 = sphi 0, %s226
      %s244 = sphi 0, %s244
      %s246 = sphi 0, %s244
      %s247 = sphi 0, %s246
      %s261 = sphi 0, %s247
      %s265 = sphi 0, %s265
      %s267 = sphi 0, %s265
      %s268 = sphi 0, %s267
      %s282 = sphi 0, %s268
      %s286 = sphi 0, %s286
      %s288 = sphi 0, %s286
      %s289 = sphi 0, %s288
      %s303 = sphi 0, %s289
      %s307 = sphi 0, %s307
      %s309 = sphi 0, %s307
      %s310 = sphi 0, %s309
      %s324 = sphi 0, %s310
      %s328 = sphi 0, %s328
      %s330 = sphi 0, %s328
      %s331 = sphi 0, %s330
      %s345 = sphi 0, %s331
      %s349 = sphi 0, %s349
      %s351 = sphi 0, %s349
      %s352 = sphi 0, %s351
      %s366 = sphi 0, %s352
      %s370 = sphi 0, %s370
      %s372 = sphi 0, %s370
      %s373 = sphi 0, %s372
      %s387 = sphi 0, %s373
      %s391 = sphi 0, %s391
      %s393 = sphi 0, %s391
      %s394 = sphi 0, %s393
      %s408 = sphi 0, %s394
      %s412 = sphi 0, %s412
      %s414 = sphi 0, %s412
      %s415 = sphi 0, %s414
      %s429 = sphi 0, %s415
      %s433 = sphi 0, %s433
      %s435 = sphi 0, %s433
      %s436 = sphi 0, %s435
      %s450 = sphi 0, %s436
      %s454 = sphi 0, %s454
      %s456 = sphi 0, %s454
      %s457 = sphi 0, %s456
      %s471 = sphi 0, %s457
      %s475 = sphi 0, %s475
      %s477 = sphi 0, %s475
      %s478 = sphi 0, %s477
      %s492 = sphi 0, %s478
      %s496 = sphi 0, %s496
      %s498 = sphi 0, %s496
      %s499 = sphi 0, %s498
      %s513 = sphi 0, %s499
      %s521 = sphi 0, %s523
      %s524 = sphi 0, %s521
      %s525 = sphi 0, %s524
      %s541 = sphi 0, %s525
    $region4: #{tpu_custom_call.1} parent=1 // loop_header_branch
      %37 = sbr.rel (%p35) target = $region8
    $region5: #{tpu_custom_call.1} parent=1 // loop_body
      %s39 = ssub.s32 %s34, 1
      %s40 = ssub.s32 %s34, 2
      %s47 = sadd.s32 1, %s42
      %p48 = scmp.ge.s32.totalorder %s47, 1
      %s49 = scalar_select %p48, 0, %s47
      %s50 = sadd.s32 1, %s41
      %s51 = scalar_select %p48, %s50, %s41
      %p52 = scmp.ge.s32.totalorder %s51, 2
      %s53 = scalar_select %p52, 0, %s51
      %s54 = ssub.s32 %s41, %s53
      %s55 = ssub.s32 %s42, %s49
      %s56 = sor.u32 %s54, %s55
      %p57 = scmp.eq.s32.totalorder %s56, 0
      %s59 = sadd.s32 %s58, 1
      %s60 = scalar_select %p57, %s58, %s59
      %p63 = pneg %p57
      %p64 = scmp.eq.s32.totalorder %s34, 1
      %p65 = por %p63, %p64
      %p66 = scmp.ne.s32.totalorder %s58, %s61
      %p67 = scmp.eq.s32.totalorder %s34, 0
      %p68 = por %p66, %p67
      %p69 = scmp.ne.s32.totalorder %s58, %s61
      %p70 = scmp.eq.s32.totalorder %s39, 1
      %p71 = por %p69, %p70
      %p72 = scmp.ne.s32.totalorder %s61, %s62
      %p73 = scmp.eq.s32.totalorder %s39, 0
      %p74 = por %p72, %p73
      %p75 = scmp.ne.s32.totalorder %s61, %s62
      %p76 = scmp.eq.s32.totalorder %s40, 1
      %p77 = por %p75, %p76
      %p79 = scmp.ne.s32.totalorder %s62, %s78
      %p80 = scmp.eq.s32.totalorder %s40, 0
      %p81 = por %p79, %p80
      %s82 = ssub.s32 %s41, %s53
      %p83 = scmp.eq.s32.totalorder %s82, 0
      %s85 = sadd.s32 %s84, 1
      %s86 = scalar_select %p83, %s84, %s85
      %p89 = pneg %p83
      %p90 = scmp.eq.s32.totalorder %s34, 1
      %p91 = por %p89, %p90
      %p92 = scmp.ne.s32.totalorder %s84, %s87
      %p93 = scmp.eq.s32.totalorder %s34, 0
      %p94 = por %p92, %p93
      %p95 = scmp.ne.s32.totalorder %s84, %s87
      %p96 = scmp.eq.s32.totalorder %s39, 1
      %p97 = por %p95, %p96
      %p98 = scmp.ne.s32.totalorder %s87, %s88
      %p99 = scmp.eq.s32.totalorder %s39, 0
      %p100 = por %p98, %p99
      %p101 = scmp.ne.s32.totalorder %s87, %s88
      %p102 = scmp.eq.s32.totalorder %s40, 1
      %p103 = por %p101, %p102
      %p105 = scmp.ne.s32.totalorder %s88, %s104
      %p106 = scmp.eq.s32.totalorder %s40, 0
      %p107 = por %p105, %p106
      %s108 = ssub.s32 %s42, %s49
      %p109 = scmp.eq.s32.totalorder %s108, 0
      %s111 = sadd.s32 %s110, 1
      %s112 = scalar_select %p109, %s110, %s111
      %p115 = pneg %p109
      %p116 = scmp.eq.s32.totalorder %s34, 1
      %p117 = por %p115, %p116
      %p118 = scmp.ne.s32.totalorder %s110, %s113
      %p119 = scmp.eq.s32.totalorder %s34, 0
      %p120 = por %p118, %p119
      %p121 = scmp.ne.s32.totalorder %s110, %s113
      %p122 = scmp.eq.s32.totalorder %s39, 1
      %p123 = por %p121, %p122
      %p124 = scmp.ne.s32.totalorder %s113, %s114
      %p125 = scmp.eq.s32.totalorder %s39, 0
      %p126 = por %p124, %p125
      %p127 = scmp.ne.s32.totalorder %s113, %s114
      %p128 = scmp.eq.s32.totalorder %s40, 1
      %p129 = por %p127, %p128
      %p131 = scmp.ne.s32.totalorder %s114, %s130
      %p132 = scmp.eq.s32.totalorder %s40, 0
      %p133 = por %p131, %p132
      %s135 = sadd.s32 %s134, 1
      %p138 = scmp.eq.s32.totalorder %s34, 1
      %p139 = scmp.ne.s32.totalorder %s134, %s136
      %p140 = scmp.eq.s32.totalorder %s34, 0
      %p141 = por %p139, %p140
      %p142 = scmp.ne.s32.totalorder %s134, %s136
      %p143 = scmp.eq.s32.totalorder %s39, 1
      %p144 = por %p142, %p143
      %p145 = scmp.ne.s32.totalorder %s136, %s137
      %p146 = scmp.eq.s32.totalorder %s39, 0
      %p147 = por %p145, %p146
      %p148 = scmp.ne.s32.totalorder %s136, %s137
      %p149 = scmp.eq.s32.totalorder %s40, 1
      %p150 = por %p148, %p149
      %p152 = scmp.ne.s32.totalorder %s137, %s151
      %p153 = scmp.eq.s32.totalorder %s40, 0
      %p154 = por %p152, %p153
      %s155 = ssub.s32 %s41, %s53
      %p156 = scmp.eq.s32.totalorder %s155, 0
      %s158 = sadd.s32 %s157, 1
      %s159 = scalar_select %p156, %s157, %s158
      %p162 = pneg %p156
      %p163 = scmp.eq.s32.totalorder %s34, 1
      %p164 = por %p162, %p163
      %p165 = scmp.ne.s32.totalorder %s157, %s160
      %p166 = scmp.eq.s32.totalorder %s34, 0
      %p167 = por %p165, %p166
      %p168 = scmp.ne.s32.totalorder %s157, %s160
      %p169 = scmp.eq.s32.totalorder %s39, 1
      %p170 = por %p168, %p169
      %p171 = scmp.ne.s32.totalorder %s160, %s161
      %p172 = scmp.eq.s32.totalorder %s39, 0
      %p173 = por %p171, %p172
      %p174 = scmp.ne.s32.totalorder %s160, %s161
      %p175 = scmp.eq.s32.totalorder %s40, 1
      %p176 = por %p174, %p175
      %p178 = scmp.ne.s32.totalorder %s161, %s177
      %p179 = scmp.eq.s32.totalorder %s40, 0
      %p180 = por %p178, %p179
      %s182 = sadd.s32 %s181, 1
      %p185 = scmp.eq.s32.totalorder %s34, 1
      %p186 = scmp.ne.s32.totalorder %s181, %s183
      %p187 = scmp.eq.s32.totalorder %s34, 0
      %p188 = por %p186, %p187
      %p189 = scmp.ne.s32.totalorder %s181, %s183
      %p190 = scmp.eq.s32.totalorder %s39, 1
      %p191 = por %p189, %p190
      %p192 = scmp.ne.s32.totalorder %s183, %s184
      %p193 = scmp.eq.s32.totalorder %s39, 0
      %p194 = por %p192, %p193
      %p195 = scmp.ne.s32.totalorder %s183, %s184
      %p196 = scmp.eq.s32.totalorder %s40, 1
      %p197 = por %p195, %p196
      %p199 = scmp.ne.s32.totalorder %s184, %s198
      %p200 = scmp.eq.s32.totalorder %s40, 0
      %p201 = por %p199, %p200
      %s203 = sadd.s32 %s202, 1
      %p206 = scmp.eq.s32.totalorder %s34, 1
      %p207 = scmp.ne.s32.totalorder %s202, %s204
      %p208 = scmp.eq.s32.totalorder %s34, 0
      %p209 = por %p207, %p208
      %p210 = scmp.ne.s32.totalorder %s202, %s204
      %p211 = scmp.eq.s32.totalorder %s39, 1
      %p212 = por %p210, %p211
      %p213 = scmp.ne.s32.totalorder %s204, %s205
      %p214 = scmp.eq.s32.totalorder %s39, 0
      %p215 = por %p213, %p214
      %p216 = scmp.ne.s32.totalorder %s204, %s205
      %p217 = scmp.eq.s32.totalorder %s40, 1
      %p218 = por %p216, %p217
      %p220 = scmp.ne.s32.totalorder %s205, %s219
      %p221 = scmp.eq.s32.totalorder %s40, 0
      %p222 = por %p220, %p221
      %s224 = sadd.s32 %s223, 1
      %p227 = scmp.eq.s32.totalorder %s34, 1
      %p228 = scmp.ne.s32.totalorder %s223, %s225
      %p229 = scmp.eq.s32.totalorder %s34, 0
      %p230 = por %p228, %p229
      %p231 = scmp.ne.s32.totalorder %s223, %s225
      %p232 = scmp.eq.s32.totalorder %s39, 1
      %p233 = por %p231, %p232
      %p234 = scmp.ne.s32.totalorder %s225, %s226
      %p235 = scmp.eq.s32.totalorder %s39, 0
      %p236 = por %p234, %p235
      %p237 = scmp.ne.s32.totalorder %s225, %s226
      %p238 = scmp.eq.s32.totalorder %s40, 1
      %p239 = por %p237, %p238
      %p241 = scmp.ne.s32.totalorder %s226, %s240
      %p242 = scmp.eq.s32.totalorder %s40, 0
      %p243 = por %p241, %p242
      %s245 = sadd.s32 %s244, 1
      %p248 = scmp.eq.s32.totalorder %s34, 1
      %p249 = scmp.ne.s32.totalorder %s244, %s246
      %p250 = scmp.eq.s32.totalorder %s34, 0
      %p251 = por %p249, %p250
      %p252 = scmp.ne.s32.totalorder %s244, %s246
      %p253 = scmp.eq.s32.totalorder %s39, 1
      %p254 = por %p252, %p253
      %p255 = scmp.ne.s32.totalorder %s246, %s247
      %p256 = scmp.eq.s32.totalorder %s39, 0
      %p257 = por %p255, %p256
      %p258 = scmp.ne.s32.totalorder %s246, %s247
      %p259 = scmp.eq.s32.totalorder %s40, 1
      %p260 = por %p258, %p259
      %p262 = scmp.ne.s32.totalorder %s247, %s261
      %p263 = scmp.eq.s32.totalorder %s40, 0
      %p264 = por %p262, %p263
      %s266 = sadd.s32 %s265, 1
      %p269 = scmp.eq.s32.totalorder %s34, 1
      %p270 = scmp.ne.s32.totalorder %s265, %s267
      %p271 = scmp.eq.s32.totalorder %s34, 0
      %p272 = por %p270, %p271
      %p273 = scmp.ne.s32.totalorder %s265, %s267
      %p274 = scmp.eq.s32.totalorder %s39, 1
      %p275 = por %p273, %p274
      %p276 = scmp.ne.s32.totalorder %s267, %s268
      %p277 = scmp.eq.s32.totalorder %s39, 0
      %p278 = por %p276, %p277
      %p279 = scmp.ne.s32.totalorder %s267, %s268
      %p280 = scmp.eq.s32.totalorder %s40, 1
      %p281 = por %p279, %p280
      %p283 = scmp.ne.s32.totalorder %s268, %s282
      %p284 = scmp.eq.s32.totalorder %s40, 0
      %p285 = por %p283, %p284
      %s287 = sadd.s32 %s286, 1
      %p290 = scmp.eq.s32.totalorder %s34, 1
      %p291 = scmp.ne.s32.totalorder %s286, %s288
      %p292 = scmp.eq.s32.totalorder %s34, 0
      %p293 = por %p291, %p292
      %p294 = scmp.ne.s32.totalorder %s286, %s288
      %p295 = scmp.eq.s32.totalorder %s39, 1
      %p296 = por %p294, %p295
      %p297 = scmp.ne.s32.totalorder %s288, %s289
      %p298 = scmp.eq.s32.totalorder %s39, 0
      %p299 = por %p297, %p298
      %p300 = scmp.ne.s32.totalorder %s288, %s289
      %p301 = scmp.eq.s32.totalorder %s40, 1
      %p302 = por %p300, %p301
      %p304 = scmp.ne.s32.totalorder %s289, %s303
      %p305 = scmp.eq.s32.totalorder %s40, 0
      %p306 = por %p304, %p305
      %s308 = sadd.s32 %s307, 1
      %p311 = scmp.eq.s32.totalorder %s34, 1
      %p312 = scmp.ne.s32.totalorder %s307, %s309
      %p313 = scmp.eq.s32.totalorder %s34, 0
      %p314 = por %p312, %p313
      %p315 = scmp.ne.s32.totalorder %s307, %s309
      %p316 = scmp.eq.s32.totalorder %s39, 1
      %p317 = por %p315, %p316
      %p318 = scmp.ne.s32.totalorder %s309, %s310
      %p319 = scmp.eq.s32.totalorder %s39, 0
      %p320 = por %p318, %p319
      %p321 = scmp.ne.s32.totalorder %s309, %s310
      %p322 = scmp.eq.s32.totalorder %s40, 1
      %p323 = por %p321, %p322
      %p325 = scmp.ne.s32.totalorder %s310, %s324
      %p326 = scmp.eq.s32.totalorder %s40, 0
      %p327 = por %p325, %p326
      %s329 = sadd.s32 %s328, 1
      %p332 = scmp.eq.s32.totalorder %s34, 1
      %p333 = scmp.ne.s32.totalorder %s328, %s330
      %p334 = scmp.eq.s32.totalorder %s34, 0
      %p335 = por %p333, %p334
      %p336 = scmp.ne.s32.totalorder %s328, %s330
      %p337 = scmp.eq.s32.totalorder %s39, 1
      %p338 = por %p336, %p337
      %p339 = scmp.ne.s32.totalorder %s330, %s331
      %p340 = scmp.eq.s32.totalorder %s39, 0
      %p341 = por %p339, %p340
      %p342 = scmp.ne.s32.totalorder %s330, %s331
      %p343 = scmp.eq.s32.totalorder %s40, 1
      %p344 = por %p342, %p343
      %p346 = scmp.ne.s32.totalorder %s331, %s345
      %p347 = scmp.eq.s32.totalorder %s40, 0
      %p348 = por %p346, %p347
      %s350 = sadd.s32 %s349, 1
      %p353 = scmp.eq.s32.totalorder %s34, 1
      %p354 = scmp.ne.s32.totalorder %s349, %s351
      %p355 = scmp.eq.s32.totalorder %s34, 0
      %p356 = por %p354, %p355
      %p357 = scmp.ne.s32.totalorder %s349, %s351
      %p358 = scmp.eq.s32.totalorder %s39, 1
      %p359 = por %p357, %p358
      %p360 = scmp.ne.s32.totalorder %s351, %s352
      %p361 = scmp.eq.s32.totalorder %s39, 0
      %p362 = por %p360, %p361
      %p363 = scmp.ne.s32.totalorder %s351, %s352
      %p364 = scmp.eq.s32.totalorder %s40, 1
      %p365 = por %p363, %p364
      %p367 = scmp.ne.s32.totalorder %s352, %s366
      %p368 = scmp.eq.s32.totalorder %s40, 0
      %p369 = por %p367, %p368
      %s371 = sadd.s32 %s370, 1
      %p374 = scmp.eq.s32.totalorder %s34, 1
      %p375 = scmp.ne.s32.totalorder %s370, %s372
      %p376 = scmp.eq.s32.totalorder %s34, 0
      %p377 = por %p375, %p376
      %p378 = scmp.ne.s32.totalorder %s370, %s372
      %p379 = scmp.eq.s32.totalorder %s39, 1
      %p380 = por %p378, %p379
      %p381 = scmp.ne.s32.totalorder %s372, %s373
      %p382 = scmp.eq.s32.totalorder %s39, 0
      %p383 = por %p381, %p382
      %p384 = scmp.ne.s32.totalorder %s372, %s373
      %p385 = scmp.eq.s32.totalorder %s40, 1
      %p386 = por %p384, %p385
      %p388 = scmp.ne.s32.totalorder %s373, %s387
      %p389 = scmp.eq.s32.totalorder %s40, 0
      %p390 = por %p388, %p389
      %s392 = sadd.s32 %s391, 1
      %p395 = scmp.eq.s32.totalorder %s34, 1
      %p396 = scmp.ne.s32.totalorder %s391, %s393
      %p397 = scmp.eq.s32.totalorder %s34, 0
      %p398 = por %p396, %p397
      %p399 = scmp.ne.s32.totalorder %s391, %s393
      %p400 = scmp.eq.s32.totalorder %s39, 1
      %p401 = por %p399, %p400
      %p402 = scmp.ne.s32.totalorder %s393, %s394
      %p403 = scmp.eq.s32.totalorder %s39, 0
      %p404 = por %p402, %p403
      %p405 = scmp.ne.s32.totalorder %s393, %s394
      %p406 = scmp.eq.s32.totalorder %s40, 1
      %p407 = por %p405, %p406
      %p409 = scmp.ne.s32.totalorder %s394, %s408
      %p410 = scmp.eq.s32.totalorder %s40, 0
      %p411 = por %p409, %p410
      %s413 = sadd.s32 %s412, 1
      %p416 = scmp.eq.s32.totalorder %s34, 1
      %p417 = scmp.ne.s32.totalorder %s412, %s414
      %p418 = scmp.eq.s32.totalorder %s34, 0
      %p419 = por %p417, %p418
      %p420 = scmp.ne.s32.totalorder %s412, %s414
      %p421 = scmp.eq.s32.totalorder %s39, 1
      %p422 = por %p420, %p421
      %p423 = scmp.ne.s32.totalorder %s414, %s415
      %p424 = scmp.eq.s32.totalorder %s39, 0
      %p425 = por %p423, %p424
      %p426 = scmp.ne.s32.totalorder %s414, %s415
      %p427 = scmp.eq.s32.totalorder %s40, 1
      %p428 = por %p426, %p427
      %p430 = scmp.ne.s32.totalorder %s415, %s429
      %p431 = scmp.eq.s32.totalorder %s40, 0
      %p432 = por %p430, %p431
      %s434 = sadd.s32 %s433, 1
      %p437 = scmp.eq.s32.totalorder %s34, 1
      %p438 = scmp.ne.s32.totalorder %s433, %s435
      %p439 = scmp.eq.s32.totalorder %s34, 0
      %p440 = por %p438, %p439
      %p441 = scmp.ne.s32.totalorder %s433, %s435
      %p442 = scmp.eq.s32.totalorder %s39, 1
      %p443 = por %p441, %p442
      %p444 = scmp.ne.s32.totalorder %s435, %s436
      %p445 = scmp.eq.s32.totalorder %s39, 0
      %p446 = por %p444, %p445
      %p447 = scmp.ne.s32.totalorder %s435, %s436
      %p448 = scmp.eq.s32.totalorder %s40, 1
      %p449 = por %p447, %p448
      %p451 = scmp.ne.s32.totalorder %s436, %s450
      %p452 = scmp.eq.s32.totalorder %s40, 0
      %p453 = por %p451, %p452
      %s455 = sadd.s32 %s454, 1
      %p458 = scmp.eq.s32.totalorder %s34, 1
      %p459 = scmp.ne.s32.totalorder %s454, %s456
      %p460 = scmp.eq.s32.totalorder %s34, 0
      %p461 = por %p459, %p460
      %p462 = scmp.ne.s32.totalorder %s454, %s456
      %p463 = scmp.eq.s32.totalorder %s39, 1
      %p464 = por %p462, %p463
      %p465 = scmp.ne.s32.totalorder %s456, %s457
      %p466 = scmp.eq.s32.totalorder %s39, 0
      %p467 = por %p465, %p466
      %p468 = scmp.ne.s32.totalorder %s456, %s457
      %p469 = scmp.eq.s32.totalorder %s40, 1
      %p470 = por %p468, %p469
      %p472 = scmp.ne.s32.totalorder %s457, %s471
      %p473 = scmp.eq.s32.totalorder %s40, 0
      %p474 = por %p472, %p473
      %s476 = sadd.s32 %s475, 1
      %p479 = scmp.eq.s32.totalorder %s34, 1
      %p480 = scmp.ne.s32.totalorder %s475, %s477
      %p481 = scmp.eq.s32.totalorder %s34, 0
      %p482 = por %p480, %p481
      %p483 = scmp.ne.s32.totalorder %s475, %s477
      %p484 = scmp.eq.s32.totalorder %s39, 1
      %p485 = por %p483, %p484
      %p486 = scmp.ne.s32.totalorder %s477, %s478
      %p487 = scmp.eq.s32.totalorder %s39, 0
      %p488 = por %p486, %p487
      %p489 = scmp.ne.s32.totalorder %s477, %s478
      %p490 = scmp.eq.s32.totalorder %s40, 1
      %p491 = por %p489, %p490
      %p493 = scmp.ne.s32.totalorder %s478, %s492
      %p494 = scmp.eq.s32.totalorder %s40, 0
      %p495 = por %p493, %p494
      %s497 = sadd.s32 %s496, 1
      %p500 = scmp.eq.s32.totalorder %s34, 1
      %p501 = scmp.ne.s32.totalorder %s496, %s498
      %p502 = scmp.eq.s32.totalorder %s34, 0
      %p503 = por %p501, %p502
      %p504 = scmp.ne.s32.totalorder %s496, %s498
      %p505 = scmp.eq.s32.totalorder %s39, 1
      %p506 = por %p504, %p505
      %p507 = scmp.ne.s32.totalorder %s498, %s499
      %p508 = scmp.eq.s32.totalorder %s39, 0
      %p509 = por %p507, %p508
      %p510 = scmp.ne.s32.totalorder %s498, %s499
      %p511 = scmp.eq.s32.totalorder %s40, 1
      %p512 = por %p510, %p511
      %p514 = scmp.ne.s32.totalorder %s499, %s513
      %p515 = scmp.eq.s32.totalorder %s40, 0
      %p516 = por %p514, %p515
      %s517 = ssub.s32 %s41, %s53
      %s518 = ssub.s32 %s42, %s49
      %s519 = sor.u32 %s517, %s518
      %p520 = scmp.eq.s32.totalorder %s519, 0
      %s522 = sadd.s32 %s521, 1
      %s523 = scalar_select %p520, %s521, %s522
      %p526 = pneg %p520
      %p527 = scmp.eq.s32.totalorder %s34, 1
      %p528 = por %p526, %p527
      %p529 = scmp.ne.s32.totalorder %s521, %s524
      %p530 = scmp.eq.s32.totalorder %s34, 0
      %p531 = por %p529, %p530
      %p532 = scmp.ne.s32.totalorder %s521, %s524
      %p533 = scmp.eq.s32.totalorder %s39, 1
      %p534 = por %p532, %p533
      %p535 = scmp.ne.s32.totalorder %s524, %s525
      %p536 = scmp.eq.s32.totalorder %s39, 0
      %p537 = por %p535, %p536
      %p538 = scmp.ne.s32.totalorder %s524, %s525
      %p539 = scmp.eq.s32.totalorder %s40, 1
      %p540 = por %p538, %p539
      %p542 = scmp.ne.s32.totalorder %s525, %s541
      %p543 = scmp.eq.s32.totalorder %s40, 0
      %p544 = por %p542, %p543
      %p545 = scmp.le.s32.totalorder 1, %s34
      %p546 = scmp.lt.s32.totalorder %s34, 3
      %p547 = pnand %p545, %p546
      %p548 = pneg %p547
      // Predicated region
      $region9: #{tpu_custom_call.1} parent=5 // pred_check
        _
      $region10: #{tpu_custom_call.1} parent=5 // pred_check_branch
        %550 = sbr.rel (%p547) target = $region12
      $region11: #{tpu_custom_call.1} parent=5 // pred_region
        %s551 = ssub.s32 %s34, 1
        // Predicated region
        $region13: #{tpu_custom_call.1} parent=11 // pred_check
          %p552 = pneg %p126
        $region14: #{tpu_custom_call.1} parent=11 // pred_check_branch
          %554 = sbr.rel (%p552) target = $region16
        $region15: #{tpu_custom_call.1} parent=11 // pred_region
          %556 = vsyncadd [#allocation3], 0
          %s557 = smul.addr %s44, 8
          %s558 = scalar_lea.hbm %s2, %s557
          %s560 = sshll.u32 %s558, 4
          %s561 = int_to_ptr.hbm [resolvable:$true] %s560
          %s562 = sshll.u32 [#allocation2], 4
          %s563 = int_to_ptr.vmem [resolvable:$true] %s562
          %565 = dma.hbm_to_vmem [thread:$0]  %s561, 128, %s563, [#allocation3]
        $region16: #{tpu_custom_call.1} parent=11 // pred_fallthru
          _
        // Predicated region
        $region17: #{tpu_custom_call.1} parent=11 // pred_check
          %p566 = pneg %p147
        $region18: #{tpu_custom_call.1} parent=11 // pred_check_branch
          %568 = sbr.rel (%p566) target = $region20
        $region19: #{tpu_custom_call.1} parent=11 // pred_region
          %570 = vsyncadd [#allocation6], 0
          %s572 = sshll.u32 %s3, 4
          %s573 = int_to_ptr.hbm [resolvable:$true] %s572
          %s574 = sshll.u32 [#allocation5], 4
          %s575 = int_to_ptr.vmem [resolvable:$true] %s574
          %577 = dma.hbm_to_vmem [thread:$0]  %s573, 128, %s575, [#allocation6]
        $region20: #{tpu_custom_call.1} parent=11 // pred_fallthru
          _
        // Predicated region
        $region21: #{tpu_custom_call.1} parent=11 // pred_check
          %p578 = pneg %p194
        $region22: #{tpu_custom_call.1} parent=11 // pred_check_branch
          %580 = sbr.rel (%p578) target = $region24
        $region23: #{tpu_custom_call.1} parent=11 // pred_region
          _
        $region24: #{tpu_custom_call.1} parent=11 // pred_fallthru
          _
        // Predicated region
        $region25: #{tpu_custom_call.1} parent=11 // pred_check
          %p581 = pneg %p215
        $region26: #{tpu_custom_call.1} parent=11 // pred_check_branch
          %583 = sbr.rel (%p581) target = $region28
        $region27: #{tpu_custom_call.1} parent=11 // pred_region
          _
        $region28: #{tpu_custom_call.1} parent=11 // pred_fallthru
          _
        // Predicated region
        $region29: #{tpu_custom_call.1} parent=11 // pred_check
          %p584 = pneg %p236
        $region30: #{tpu_custom_call.1} parent=11 // pred_check_branch
          %586 = sbr.rel (%p584) target = $region32
        $region31: #{tpu_custom_call.1} parent=11 // pred_region
          %588 = vsyncadd [#allocation6], 0
          %s589 = sshll.u32 %s7, 4
          %s590 = int_to_ptr.hbm [resolvable:$true] %s589
          %s591 = sshll.u32 [#allocation7], 4
          %s592 = int_to_ptr.vmem [resolvable:$true] %s591
          %597 = dma.hbm_to_vmem [thread:$0]  %s590, 256, %s592, [#allocation6], 64, 64, 4
        $region32: #{tpu_custom_call.1} parent=11 // pred_fallthru
          _
        // Predicated region
        $region33: #{tpu_custom_call.1} parent=11 // pred_check
          %p598 = pneg %p257
        $region34: #{tpu_custom_call.1} parent=11 // pred_check_branch
          %600 = sbr.rel (%p598) target = $region36
        $region35: #{tpu_custom_call.1} parent=11 // pred_region
          _
        $region36: #{tpu_custom_call.1} parent=11 // pred_fallthru
          _
        // Predicated region
        $region37: #{tpu_custom_call.1} parent=11 // pred_check
          %p601 = pneg %p278
        $region38: #{tpu_custom_call.1} parent=11 // pred_check_branch
          %603 = sbr.rel (%p601) target = $region40
        $region39: #{tpu_custom_call.1} parent=11 // pred_region
          %605 = vsyncadd [#allocation9], 0
          %s606 = sshll.u32 %s9, 4
          %s607 = int_to_ptr.hbm [resolvable:$true] %s606
          %s608 = sshll.u32 [#allocation8], 4
          %s609 = int_to_ptr.vmem [resolvable:$true] %s608
          %614 = dma.hbm_to_vmem [thread:$0]  %s607, 256, %s609, [#allocation9], 64, 64, 4
        $region40: #{tpu_custom_call.1} parent=11 // pred_fallthru
          _
        // Predicated region
        $region41: #{tpu_custom_call.1} parent=11 // pred_check
          %p615 = pneg %p299
        $region42: #{tpu_custom_call.1} parent=11 // pred_check_branch
          %617 = sbr.rel (%p615) target = $region44
        $region43: #{tpu_custom_call.1} parent=11 // pred_region
          _
        $region44: #{tpu_custom_call.1} parent=11 // pred_fallthru
          _
        // Predicated region
        $region45: #{tpu_custom_call.1} parent=11 // pred_check
          %p618 = pneg %p320
        $region46: #{tpu_custom_call.1} parent=11 // pred_check_branch
          %620 = sbr.rel (%p618) target = $region48
        $region47: #{tpu_custom_call.1} parent=11 // pred_region
          %622 = vsyncadd [#allocation9], 0
          %s623 = sshll.u32 %s11, 4
          %s624 = int_to_ptr.hbm [resolvable:$true] %s623
          %s625 = sshll.u32 [#allocation10], 4
          %s626 = int_to_ptr.vmem [resolvable:$true] %s625
          %631 = dma.hbm_to_vmem [thread:$0]  %s624, 256, %s626, [#allocation9], 64, 64, 4
        $region48: #{tpu_custom_call.1} parent=11 // pred_fallthru
          _
        // Predicated region
        $region49: #{tpu_custom_call.1} parent=11 // pred_check
          %p632 = pneg %p341
        $region50: #{tpu_custom_call.1} parent=11 // pred_check_branch
          %634 = sbr.rel (%p632) target = $region52
        $region51: #{tpu_custom_call.1} parent=11 // pred_region
          _
        $region52: #{tpu_custom_call.1} parent=11 // pred_fallthru
          _
        // Predicated region
        $region53: #{tpu_custom_call.1} parent=11 // pred_check
          %p635 = pneg %p362
        $region54: #{tpu_custom_call.1} parent=11 // pred_check_branch
          %637 = sbr.rel (%p635) target = $region56
        $region55: #{tpu_custom_call.1} parent=11 // pred_region
          %639 = vsyncadd [#allocation12], 0
          %s640 = sshll.u32 %s13, 4
          %s641 = int_to_ptr.hbm [resolvable:$true] %s640
          %s642 = sshll.u32 [#allocation11], 4
          %s643 = int_to_ptr.vmem [resolvable:$true] %s642
          %648 = dma.hbm_to_vmem [thread:$0]  %s641, 256, %s643, [#allocation12], 64, 64, 4
        $region56: #{tpu_custom_call.1} parent=11 // pred_fallthru
          _
        // Predicated region
        $region57: #{tpu_custom_call.1} parent=11 // pred_check
          %p649 = pneg %p383
        $region58: #{tpu_custom_call.1} parent=11 // pred_check_branch
          %651 = sbr.rel (%p649) target = $region60
        $region59: #{tpu_custom_call.1} parent=11 // pred_region
          _
        $region60: #{tpu_custom_call.1} parent=11 // pred_fallthru
          _
        // Predicated region
        $region61: #{tpu_custom_call.1} parent=11 // pred_check
          %p652 = pneg %p404
        $region62: #{tpu_custom_call.1} parent=11 // pred_check_branch
          %654 = sbr.rel (%p652) target = $region64
        $region63: #{tpu_custom_call.1} parent=11 // pred_region
          _
        $region64: #{tpu_custom_call.1} parent=11 // pred_fallthru
          _
        // Predicated region
        $region65: #{tpu_custom_call.1} parent=11 // pred_check
          %p655 = pneg %p425
        $region66: #{tpu_custom_call.1} parent=11 // pred_check_branch
          %657 = sbr.rel (%p655) target = $region68
        $region67: #{tpu_custom_call.1} parent=11 // pred_region
          _
        $region68: #{tpu_custom_call.1} parent=11 // pred_fallthru
          _
        // Predicated region
        $region69: #{tpu_custom_call.1} parent=11 // pred_check
          %p658 = pneg %p446
        $region70: #{tpu_custom_call.1} parent=11 // pred_check_branch
          %660 = sbr.rel (%p658) target = $region72
        $region71: #{tpu_custom_call.1} parent=11 // pred_region
          _
        $region72: #{tpu_custom_call.1} parent=11 // pred_fallthru
          _
        // Predicated region
        $region73: #{tpu_custom_call.1} parent=11 // pred_check
          %p661 = pneg %p467
        $region74: #{tpu_custom_call.1} parent=11 // pred_check_branch
          %663 = sbr.rel (%p661) target = $region76
        $region75: #{tpu_custom_call.1} parent=11 // pred_region
          _
        $region76: #{tpu_custom_call.1} parent=11 // pred_fallthru
          _
        // Predicated region
        $region77: #{tpu_custom_call.1} parent=11 // pred_check
          %p664 = pneg %p488
        $region78: #{tpu_custom_call.1} parent=11 // pred_check_branch
          %666 = sbr.rel (%p664) target = $region80
        $region79: #{tpu_custom_call.1} parent=11 // pred_region
          _
        $region80: #{tpu_custom_call.1} parent=11 // pred_fallthru
          _
        // Predicated region
        $region81: #{tpu_custom_call.1} parent=11 // pred_check
          %p667 = pneg %p509
        $region82: #{tpu_custom_call.1} parent=11 // pred_check_branch
          %669 = sbr.rel (%p667) target = $region84
        $region83: #{tpu_custom_call.1} parent=11 // pred_region
          _
        $region84: #{tpu_custom_call.1} parent=11 // pred_fallthru
          _
      $region12: #{tpu_custom_call.1} parent=5 // pred_fallthru
        _
      %p670 = scmp.lt.s32.totalorder %s34, 2
      // Predicated region
      $region85: #{tpu_custom_call.1} parent=5 // pred_check
        %p671 = pneg %p670
      $region86: #{tpu_custom_call.1} parent=5 // pred_check_branch
        %673 = sbr.rel (%p671) target = $region88
      $region87: #{tpu_custom_call.1} parent=5 // pred_region
        // Predicated region
        $region89: #{tpu_custom_call.1} parent=87 // pred_check
          %p674 = pneg %p68
        $region90: #{tpu_custom_call.1} parent=87 // pred_check_branch
          %676 = sbr.rel (%p674) target = $region92
        $region91: #{tpu_custom_call.1} parent=87 // pred_region
          %p677 = scmp.lt.s32.totalorder %s41, 1
          %s678 = scalar_select %p677, %s41, 1
          %p679 = scmp.lt.s32.totalorder %s42, 0
          %s680 = scalar_select %p679, %s42, 0
          %s681 = sadd.s32 %s680, %s678
          %s682 = smul.addr %s681, 8
          %s683 = scalar_lea.vmem %s0, %s682
        $region92: #{tpu_custom_call.1} parent=87 // pred_fallthru
          _
        // Predicated region
        $region93: #{tpu_custom_call.1} parent=87 // pred_check
          %p684 = pneg %p94
        $region94: #{tpu_custom_call.1} parent=87 // pred_check_branch
          %686 = sbr.rel (%p684) target = $region96
        $region95: #{tpu_custom_call.1} parent=87 // pred_region
          %p687 = scmp.lt.s32.totalorder %s41, 1
          %s688 = scalar_select %p687, %s41, 1
          %s689 = smul.addr %s688, 8
          %s690 = scalar_lea.vmem %s1, %s689
        $region96: #{tpu_custom_call.1} parent=87 // pred_fallthru
          _
        // Predicated region
        $region97: #{tpu_custom_call.1} parent=87 // pred_check
          %p691 = pneg %p167
        $region98: #{tpu_custom_call.1} parent=87 // pred_check_branch
          %693 = sbr.rel (%p691) target = $region100
        $region99: #{tpu_custom_call.1} parent=87 // pred_region
          %p694 = scmp.lt.s32.totalorder %s41, 1
          %s695 = scalar_select %p694, %s41, 1
          %s696 = scalar_lea.vmem %s4, %s695
        $region100: #{tpu_custom_call.1} parent=87 // pred_fallthru
          _
      $region88: #{tpu_custom_call.1} parent=5 // pred_fallthru
        _
      %p697 = scmp.le.s32.totalorder 1, %s34
      %p698 = scmp.lt.s32.totalorder %s34, 3
      %p699 = pnand %p697, %p698
      %p700 = pneg %p699
      // Predicated region
      $region101: #{tpu_custom_call.1} parent=5 // pred_check
        _
      $region102: #{tpu_custom_call.1} parent=5 // pred_check_branch
        %702 = sbr.rel (%p699) target = $region104
      $region103: #{tpu_custom_call.1} parent=5 // pred_region
        %s703 = ssub.s32 %s34, 1
        // Predicated region
        $region105: #{tpu_custom_call.1} parent=103 // pred_check
          %p704 = pneg %p126
        $region106: #{tpu_custom_call.1} parent=103 // pred_check_branch
          %706 = sbr.rel (%p704) target = $region108
        $region107: #{tpu_custom_call.1} parent=103 // pred_region
          %708 = dma.done [#allocation3], 128
        $region108: #{tpu_custom_call.1} parent=103 // pred_fallthru
          _
        // Predicated region
        $region109: #{tpu_custom_call.1} parent=103 // pred_check
          %p709 = pneg %p147
        $region110: #{tpu_custom_call.1} parent=103 // pred_check_branch
          %711 = sbr.rel (%p709) target = $region112
        $region111: #{tpu_custom_call.1} parent=103 // pred_region
          %713 = dma.done [#allocation6], 128
        $region112: #{tpu_custom_call.1} parent=103 // pred_fallthru
          _
        // Predicated region
        $region113: #{tpu_custom_call.1} parent=103 // pred_check
          %p714 = pneg %p236
        $region114: #{tpu_custom_call.1} parent=103 // pred_check_branch
          %716 = sbr.rel (%p714) target = $region116
        $region115: #{tpu_custom_call.1} parent=103 // pred_region
          %718 = dma.done [#allocation6], 256
        $region116: #{tpu_custom_call.1} parent=103 // pred_fallthru
          _
        // Predicated region
        $region117: #{tpu_custom_call.1} parent=103 // pred_check
          %p719 = pneg %p278
        $region118: #{tpu_custom_call.1} parent=103 // pred_check_branch
          %721 = sbr.rel (%p719) target = $region120
        $region119: #{tpu_custom_call.1} parent=103 // pred_region
          %723 = dma.done [#allocation9], 256
        $region120: #{tpu_custom_call.1} parent=103 // pred_fallthru
          _
        // Predicated region
        $region121: #{tpu_custom_call.1} parent=103 // pred_check
          %p724 = pneg %p320
        $region122: #{tpu_custom_call.1} parent=103 // pred_check_branch
          %726 = sbr.rel (%p724) target = $region124
        $region123: #{tpu_custom_call.1} parent=103 // pred_region
          %728 = dma.done [#allocation9], 256
        $region124: #{tpu_custom_call.1} parent=103 // pred_fallthru
          _
        // Predicated region
        $region125: #{tpu_custom_call.1} parent=103 // pred_check
          %p729 = pneg %p362
        $region126: #{tpu_custom_call.1} parent=103 // pred_check_branch
          %731 = sbr.rel (%p729) target = $region128
        $region127: #{tpu_custom_call.1} parent=103 // pred_region
          %733 = dma.done [#allocation12], 256
        $region128: #{tpu_custom_call.1} parent=103 // pred_fallthru
          _
        %p734 = scmp.lt.s32.totalorder %s43, 1
        %s735 = scalar_select %p734, %s43, 1
        %p736 = scmp.lt.s32.totalorder %s44, 0
        %s737 = scalar_select %p736, %s44, 0
        %s738 = sadd.s32 %s737, %s735
        %s739 = smul.addr %s738, 8
        %s740 = scalar_lea.vmem %s0, %s739
        %p741 = pneg %p74
        %p742 = pneg %p71
        %p743 = scmp.lt.s32.totalorder %s43, 1
        %s744 = scalar_select %p743, %s43, 1
        %s745 = smul.addr %s744, 8
        %s746 = scalar_lea.vmem %s1, %s745
        %p747 = pneg %p100
        %p748 = pneg %p97
        %p749 = pneg %p126
        %p750 = pneg %p123
        %p751 = pneg %p147
        %p752 = pneg %p144
        %p753 = scmp.lt.s32.totalorder %s43, 1
        %s754 = scalar_select %p753, %s43, 1
        %s755 = scalar_lea.vmem %s4, %s754
        %p756 = pneg %p173
        %p757 = pneg %p170
        %p758 = pneg %p194
        %p759 = pneg %p191
        %p760 = pneg %p215
        %p761 = pneg %p212
        %p762 = pneg %p236
        %p763 = pneg %p233
        %p764 = pneg %p257
        %p765 = pneg %p254
        %p766 = pneg %p278
        %p767 = pneg %p275
        %p768 = pneg %p299
        %p769 = pneg %p296
        %p770 = pneg %p320
        %p771 = pneg %p317
        %p772 = pneg %p341
        %p773 = pneg %p338
        %p774 = pneg %p362
        %p775 = pneg %p359
        %p776 = pneg %p383
        %p777 = pneg %p380
        %p778 = pneg %p404
        %p779 = pneg %p401
        %p780 = pneg %p425
        %p781 = pneg %p422
        %p782 = pneg %p446
        %p783 = pneg %p443
        %p784 = pneg %p467
        %p785 = pneg %p464
        %p786 = pneg %p488
        %p787 = pneg %p485
        %p788 = pneg %p509
        %p789 = pneg %p506
        %p790 = pneg %p537
        %p791 = pneg %p534
        %s792 = sand.u32 %s524, 1
        %s793 = scalar_lea.sflag [#allocation4], %s792
        %s794 = sand.u32 %s524, 1
        %s795 = smul.addr %s794, 8
        %s796 = scalar_lea.vmem [#allocation13], %s795
        %p797 = scmp.lt.s32.totalorder %s43, 1
        %s798 = scalar_select %p797, %s43, 1
        %p799 = scmp.lt.s32.totalorder %s44, 0
        %s800 = scalar_select %p799, %s44, 0
        %s801 = sadd.s32 %s800, %s798
        %s802 = smul.addr %s801, 8
        %s803 = scalar_lea.vmem %s0, %s802
        %p804 = scmp.lt.s32.totalorder %s43, 1
        %s805 = scalar_select %p804, %s43, 1
        %s806 = smul.addr %s805, 8
        %s807 = scalar_lea.vmem %s1, %s806
        %p808 = scmp.lt.s32.totalorder %s43, 1
        %s809 = scalar_select %p808, %s43, 1
        %s810 = scalar_lea.vmem %s4, %s809
        %v812 = vld [vmem:[%s803] sm:$0xff]
        %v813 = vld [vmem:[%s807] sm:$0xff]
        %v814 = vld [vmem:[%s810] sm:$0x1]
        %v815 = vld [vmem:[#allocation2] sm:$0xff]
        %v816 = vadd.f32 %v812, %v815
        %v817 = vld [vmem:[#allocation5] sm:$0xff]
        %v818 = vadd.f32 %v813, %v817
        %v819 = vpack.c.bf16 %v816, %v816
        %v820 = vld [vmem:[%s5] sm:$0xf]
        %v821 = vld [vmem:[%s5 + $0x4] sm:$0xf]
        %v822 = vld [vmem:[%s5 + $0x8] sm:$0xf]
        %v823 = vld [vmem:[%s5 + $0xc] sm:$0xf]
        %v824 = vld [vmem:[%s6] sm:$0x1]
        %v826 = vperm.slane %v824, 0
        %v832 = vunpack.c.l.b16 %v820
        %v833 = vunpack.c.l.b16 %v821
        %v834 = vunpack.c.l.b16 %v822
        %v835 = vunpack.c.l.b16 %v823
        %v836 = vpack.c.b16 %v833, %v832
        %v837 = vpack.c.b16 %v835, %v834
        %vm840 = vcmask 261120
        %v842 = vsel %vm840, %v819, 0
        %844 = vmatpush.bf16.msra.mxu0 0
        %845 = vmatpush.bf16.msra.mxu0 0
        %846 = vmatpush.bf16.msra.mxu0 0
        %847 = vmatpush.bf16.msra.mxu0 0
        %848 = vmatpush.bf16.msra.mxu0 0
        %849 = vmatpush.bf16.msra.mxu0 0
        %850 = vmatpush.bf16.msra.mxu0 %v837
        %851 = vmatpush.bf16.msra.mxu0 %v836
        %852 = vmatmul.bf16.gmra.mxu0 %v842
        %v853 = vpop.f32.mrf.mxu0
        %v854 = vadd.f32 %v826, %v853
        %v855 = vpop.f32.mrf.mxu0
        %856 = vdwg.mxu0
        %v857 = vpack.c.bf16 %v818, %v818
        %v858 = vld [vmem:[#allocation7] sm:$0xf]
        %v859 = vld [vmem:[#allocation7 + $0x4] sm:$0xf]
        %v860 = vld [vmem:[#allocation7 + $0x8] sm:$0xf]
        %v861 = vld [vmem:[#allocation7 + $0xc] sm:$0xf]
        %v862 = vld [vmem:[%s8] sm:$0x1]
        %v864 = vperm.slane %v862, 0
        %v870 = vunpack.c.l.b16 %v858
        %v871 = vunpack.c.l.b16 %v859
        %v872 = vunpack.c.l.b16 %v860
        %v873 = vunpack.c.l.b16 %v861
        %v874 = vpack.c.b16 %v871, %v870
        %v875 = vpack.c.b16 %v873, %v872
        %v879 = vsel %vm840, %v857, 0
        %881 = vmatpush.bf16.msra.mxu0 0
        %882 = vmatpush.bf16.msra.mxu0 0
        %883 = vmatpush.bf16.msra.mxu0 0
        %884 = vmatpush.bf16.msra.mxu0 0
        %885 = vmatpush.bf16.msra.mxu0 0
        %886 = vmatpush.bf16.msra.mxu0 0
        %887 = vmatpush.bf16.msra.mxu0 %v875
        %888 = vmatpush.bf16.msra.mxu0 %v874
        %889 = vmatmul.bf16.gmra.mxu0 %v879
        %v890 = vpop.f32.mrf.mxu0
        %v891 = vadd.f32 %v864, %v890
        %v892 = vpop.f32.mrf.mxu0
        %893 = vdwg.mxu0
        %v894 = vpack.c.bf16 %v813, %v813
        %v895 = vld [vmem:[#allocation8] sm:$0xf]
        %v896 = vld [vmem:[#allocation8 + $0x4] sm:$0xf]
        %v897 = vld [vmem:[#allocation8 + $0x8] sm:$0xf]
        %v898 = vld [vmem:[#allocation8 + $0xc] sm:$0xf]
        %v899 = vld [vmem:[%s10] sm:$0x1]
        %v901 = vperm.slane %v899, 0
        %v907 = vunpack.c.l.b16 %v895
        %v908 = vunpack.c.l.b16 %v896
        %v909 = vunpack.c.l.b16 %v897
        %v910 = vunpack.c.l.b16 %v898
        %v911 = vpack.c.b16 %v908, %v907
        %v912 = vpack.c.b16 %v910, %v909
        %v916 = vsel %vm840, %v894, 0
        %918 = vmatpush.bf16.msra.mxu0 0
        %919 = vmatpush.bf16.msra.mxu0 0
        %920 = vmatpush.bf16.msra.mxu0 0
        %921 = vmatpush.bf16.msra.mxu0 0
        %922 = vmatpush.bf16.msra.mxu0 0
        %923 = vmatpush.bf16.msra.mxu0 0
        %924 = vmatpush.bf16.msra.mxu0 %v912
        %925 = vmatpush.bf16.msra.mxu0 %v911
        %926 = vmatmul.bf16.gmra.mxu0 %v916
        %v927 = vpop.f32.mrf.mxu0
        %v928 = vadd.f32 %v901, %v927
        %v929 = vpop.f32.mrf.mxu0
        %930 = vdwg.mxu0
        %v931 = vmul.f32 %v854, 0.35355338
        %v932 = vpack.c.bf16 %v931, %v931
        %v933 = vpack.c.bf16 %v891, %v891
        %v934 = vpack.c.bf16 %v928, %v928
        %v935 = vld [vmem:[#allocation10] sm:$0xf]
        %v936 = vld [vmem:[#allocation10 + $0x4] sm:$0xf]
        %v937 = vld [vmem:[#allocation10 + $0x8] sm:$0xf]
        %v938 = vld [vmem:[#allocation10 + $0xc] sm:$0xf]
        %v940 = vperm.slane %v814, 0
        %vm942 = vcmask 64512
        %v944 = vsel %vm942, %v932, 0
        %v947 = vsel %vm942, %v933, 0
        %949 = vmatpush.bf16.xpose.msra.mxu0 0
        %950 = vmatpush.bf16.xpose.msra.mxu0 0
        %951 = vmatpush.bf16.xpose.msra.mxu0 0
        %952 = vmatpush.bf16.xpose.msra.mxu0 0
        %953 = vmatpush.bf16.xpose.msra.mxu0 0
        %954 = vmatpush.bf16.xpose.msra.mxu0 0
        %955 = vmatpush.bf16.xpose.msra.mxu0 0
        %956 = vmatpush.bf16.xpose.msra.mxu0 %v947
        %957 = vmatmul.bf16.gmra.mxu0 %v944
        %v958 = vpop.f32.mrf.mxu0
        %v959 = vadd.f32 %v940, %v958
        %v960 = vpop.f32.mrf.mxu0
        %961 = vdwg.mxu0
        %v962 = vsel %vm942, %v959, -inf
        %963 = vmax.xlane.f32.xlu0 %v962
        %v964 = vpop.xlane.xlu0 %963
        %v965 = vsub.f32 %v959, %v964
        %v966 = vmul.f32 %v965, 1.442695
        %v967 = vpow.pop %v966
        %v968 = vsel %vm942, %v967, 0.0
        %969 = vadd.xlane.f32.xlu0 %v968
        %v970 = vpop.xlane.xlu0 %969
        %v971 = vrcp.pop %v970
        %v972 = vmul.f32 %v967, %v971
        %v973 = vpack.c.bf16 %v972, %v972
        %v975 = vsel %vm942, %v973, 0
        %vm977 = vcmask 1043456
        %v979 = vsel %vm977, %v934, 0
        %981 = vmatpush.bf16.msra.mxu0 0
        %982 = vmatpush.bf16.msra.mxu0 0
        %983 = vmatpush.bf16.msra.mxu0 0
        %984 = vmatpush.bf16.msra.mxu0 0
        %985 = vmatpush.bf16.msra.mxu0 0
        %986 = vmatpush.bf16.msra.mxu0 0
        %987 = vmatpush.bf16.msra.mxu0 0
        %988 = vmatpush.bf16.msra.mxu0 %v979
        %989 = vmatmul.bf16.gmra.mxu0 %v975
        %v990 = vpop.f32.mrf.mxu0
        %v991 = vadd.f32 0.0, %v990
        %v992 = vpop.f32.mrf.mxu0
        %993 = vdwg.mxu0
        %v994 = vpack.c.bf16 %v991, %v991
        %v996 = vunpack.c.l.b16 %v932
        %v997 = vpack.c.b16 %v996, %v996
        %998 = vrot.lane.b32.xlu0 %v997, 120
        %v999 = vpop.permute.xlu0 %998
        %v1001 = vunpack.c.l.b16 %v933
        %v1002 = vpack.c.b16 %v1001, %v1001
        %1003 = vrot.lane.b32.xlu0 %v1002, 120
        %v1004 = vpop.permute.xlu0 %1003
        %v1006 = vsel %vm942, %v999, 0
        %v1009 = vsel %vm942, %v1004, 0
        %1011 = vmatpush.bf16.xpose.msra.mxu0 0
        %1012 = vmatpush.bf16.xpose.msra.mxu0 0
        %1013 = vmatpush.bf16.xpose.msra.mxu0 0
        %1014 = vmatpush.bf16.xpose.msra.mxu0 0
        %1015 = vmatpush.bf16.xpose.msra.mxu0 0
        %1016 = vmatpush.bf16.xpose.msra.mxu0 0
        %1017 = vmatpush.bf16.xpose.msra.mxu0 0
        %1018 = vmatpush.bf16.xpose.msra.mxu0 %v1009
        %1019 = vmatmul.bf16.gmra.mxu0 %v1006
        %v1020 = vpop.f32.mrf.mxu0
        %v1021 = vadd.f32 %v940, %v1020
        %v1022 = vpop.f32.mrf.mxu0
        %1023 = vdwg.mxu0
        %v1024 = vsel %vm942, %v1021, -inf
        %1025 = vmax.xlane.f32.xlu0 %v1024
        %v1026 = vpop.xlane.xlu0 %1025
        %v1027 = vsub.f32 %v1021, %v1026
        %v1028 = vmul.f32 %v1027, 1.442695
        %v1029 = vpow.pop %v1028
        %v1030 = vsel %vm942, %v1029, 0.0
        %1031 = vadd.xlane.f32.xlu0 %v1030
        %v1032 = vpop.xlane.xlu0 %1031
        %v1033 = vrcp.pop %v1032
        %v1034 = vmul.f32 %v1029, %v1033
        %v1035 = vpack.c.bf16 %v1034, %v1034
        %v1037 = vunpack.c.l.b16 %v934
        %v1038 = vpack.c.b16 %v1037, %v1037
        %1039 = vrot.lane.b32.xlu0 %v1038, 120
        %v1040 = vpop.permute.xlu0 %1039
        %v1042 = vsel %vm942, %v1035, 0
        %v1045 = vsel %vm977, %v1040, 0
        %1047 = vmatpush.bf16.msra.mxu0 0
        %1048 = vmatpush.bf16.msra.mxu0 0
        %1049 = vmatpush.bf16.msra.mxu0 0
        %1050 = vmatpush.bf16.msra.mxu0 0
        %1051 = vmatpush.bf16.msra.mxu0 0
        %1052 = vmatpush.bf16.msra.mxu0 0
        %1053 = vmatpush.bf16.msra.mxu0 0
        %1054 = vmatpush.bf16.msra.mxu0 %v1045
        %1055 = vmatmul.bf16.gmra.mxu0 %v1042
        %v1056 = vpop.f32.mrf.mxu0
        %v1057 = vadd.f32 0.0, %v1056
        %v1058 = vpop.f32.mrf.mxu0
        %1059 = vdwg.mxu0
        %v1060 = vpack.c.bf16 %v1057, %v1057
        %v1062 = vsel %vm942, %v1060, 0
        %v1065 = vsel %vm977, %v936, 0
        %1067 = vmatpush.bf16.msra.mxu0 0
        %1068 = vmatpush.bf16.msra.mxu0 0
        %1069 = vmatpush.bf16.msra.mxu0 0
        %1070 = vmatpush.bf16.msra.mxu0 0
        %1071 = vmatpush.bf16.msra.mxu0 0
        %1072 = vmatpush.bf16.msra.mxu0 0
        %1073 = vmatpush.bf16.msra.mxu0 0
        %1074 = vmatpush.bf16.msra.mxu0 %v1065
        %1075 = vmatmul.bf16.gmra.mxu0 %v1062
        %v1076 = vpop.f32.mrf.mxu0
        %v1077 = vadd.f32 0.0, %v1076
        %v1078 = vpop.f32.mrf.mxu0
        %1079 = vdwg.mxu0
        %v1081 = vsel %vm942, %v994, 0
        %v1084 = vsel %vm977, %v935, 0
        %1086 = vmatpush.bf16.msra.mxu0 0
        %1087 = vmatpush.bf16.msra.mxu0 0
        %1088 = vmatpush.bf16.msra.mxu0 0
        %1089 = vmatpush.bf16.msra.mxu0 0
        %1090 = vmatpush.bf16.msra.mxu0 0
        %1091 = vmatpush.bf16.msra.mxu0 0
        %1092 = vmatpush.bf16.msra.mxu0 0
        %1093 = vmatpush.bf16.msra.mxu0 %v1084
        %1094 = vmatmul.bf16.gmra.mxu0 %v1081
        %v1095 = vpop.f32.mrf.mxu0
        %v1096 = vadd.f32 %v1077, %v1095
        %v1097 = vpop.f32.mrf.mxu0
        %1098 = vdwg.mxu0
        %1099 = vrot.lane.b32.xlu0 %v997, 112
        %v1100 = vpop.permute.xlu0 %1099
        %1101 = vrot.lane.b32.xlu0 %v1002, 112
        %v1102 = vpop.permute.xlu0 %1101
        %v1104 = vsel %vm942, %v1100, 0
        %v1107 = vsel %vm942, %v1102, 0
        %1109 = vmatpush.bf16.xpose.msra.mxu0 0
        %1110 = vmatpush.bf16.xpose.msra.mxu0 0
        %1111 = vmatpush.bf16.xpose.msra.mxu0 0
        %1112 = vmatpush.bf16.xpose.msra.mxu0 0
        %1113 = vmatpush.bf16.xpose.msra.mxu0 0
        %1114 = vmatpush.bf16.xpose.msra.mxu0 0
        %1115 = vmatpush.bf16.xpose.msra.mxu0 0
        %1116 = vmatpush.bf16.xpose.msra.mxu0 %v1107
        %1117 = vmatmul.bf16.gmra.mxu0 %v1104
        %v1118 = vpop.f32.mrf.mxu0
        %v1119 = vadd.f32 %v940, %v1118
        %v1120 = vpop.f32.mrf.mxu0
        %1121 = vdwg.mxu0
        %v1122 = vsel %vm942, %v1119, -inf
        %1123 = vmax.xlane.f32.xlu0 %v1122
        %v1124 = vpop.xlane.xlu0 %1123
        %v1125 = vsub.f32 %v1119, %v1124
        %v1126 = vmul.f32 %v1125, 1.442695
        %v1127 = vpow.pop %v1126
        %v1128 = vsel %vm942, %v1127, 0.0
        %1129 = vadd.xlane.f32.xlu0 %v1128
        %v1130 = vpop.xlane.xlu0 %1129
        %v1131 = vrcp.pop %v1130
        %v1132 = vmul.f32 %v1127, %v1131
        %v1133 = vpack.c.bf16 %v1132, %v1132
        %1134 = vrot.lane.b32.xlu0 %v1038, 112
        %v1135 = vpop.permute.xlu0 %1134
        %v1137 = vsel %vm942, %v1133, 0
        %v1140 = vsel %vm977, %v1135, 0
        %1142 = vmatpush.bf16.msra.mxu0 0
        %1143 = vmatpush.bf16.msra.mxu0 0
        %1144 = vmatpush.bf16.msra.mxu0 0
        %1145 = vmatpush.bf16.msra.mxu0 0
        %1146 = vmatpush.bf16.msra.mxu0 0
        %1147 = vmatpush.bf16.msra.mxu0 0
        %1148 = vmatpush.bf16.msra.mxu0 0
        %1149 = vmatpush.bf16.msra.mxu0 %v1140
        %1150 = vmatmul.bf16.gmra.mxu0 %v1137
        %v1151 = vpop.f32.mrf.mxu0
        %v1152 = vadd.f32 0.0, %v1151
        %v1153 = vpop.f32.mrf.mxu0
        %1154 = vdwg.mxu0
        %v1155 = vpack.c.bf16 %v1152, %v1152
        %v1157 = vsel %vm942, %v1155, 0
        %v1160 = vsel %vm977, %v937, 0
        %1162 = vmatpush.bf16.msra.mxu0 0
        %1163 = vmatpush.bf16.msra.mxu0 0
        %1164 = vmatpush.bf16.msra.mxu0 0
        %1165 = vmatpush.bf16.msra.mxu0 0
        %1166 = vmatpush.bf16.msra.mxu0 0
        %1167 = vmatpush.bf16.msra.mxu0 0
        %1168 = vmatpush.bf16.msra.mxu0 0
        %1169 = vmatpush.bf16.msra.mxu0 %v1160
        %1170 = vmatmul.bf16.gmra.mxu0 %v1157
        %v1171 = vpop.f32.mrf.mxu0
        %v1172 = vadd.f32 0.0, %v1171
        %v1173 = vpop.f32.mrf.mxu0
        %1174 = vdwg.mxu0
        %v1175 = vadd.f32 %v1096, %v1172
        %1176 = vrot.lane.b32.xlu0 %v997, 104
        %v1177 = vpop.permute.xlu0 %1176
        %1178 = vrot.lane.b32.xlu0 %v1002, 104
        %v1179 = vpop.permute.xlu0 %1178
        %v1181 = vsel %vm942, %v1177, 0
        %v1184 = vsel %vm942, %v1179, 0
        %1186 = vmatpush.bf16.xpose.msra.mxu0 0
        %1187 = vmatpush.bf16.xpose.msra.mxu0 0
        %1188 = vmatpush.bf16.xpose.msra.mxu0 0
        %1189 = vmatpush.bf16.xpose.msra.mxu0 0
        %1190 = vmatpush.bf16.xpose.msra.mxu0 0
        %1191 = vmatpush.bf16.xpose.msra.mxu0 0
        %1192 = vmatpush.bf16.xpose.msra.mxu0 0
        %1193 = vmatpush.bf16.xpose.msra.mxu0 %v1184
        %1194 = vmatmul.bf16.gmra.mxu0 %v1181
        %v1195 = vpop.f32.mrf.mxu0
        %v1196 = vadd.f32 %v940, %v1195
        %v1197 = vpop.f32.mrf.mxu0
        %1198 = vdwg.mxu0
        %v1199 = vsel %vm942, %v1196, -inf
        %1200 = vmax.xlane.f32.xlu0 %v1199
        %v1201 = vpop.xlane.xlu0 %1200
        %v1202 = vsub.f32 %v1196, %v1201
        %v1203 = vmul.f32 %v1202, 1.442695
        %v1204 = vpow.pop %v1203
        %v1205 = vsel %vm942, %v1204, 0.0
        %1206 = vadd.xlane.f32.xlu0 %v1205
        %v1207 = vpop.xlane.xlu0 %1206
        %v1208 = vrcp.pop %v1207
        %v1209 = vmul.f32 %v1204, %v1208
        %v1210 = vpack.c.bf16 %v1209, %v1209
        %1211 = vrot.lane.b32.xlu0 %v1038, 104
        %v1212 = vpop.permute.xlu0 %1211
        %v1214 = vsel %vm942, %v1210, 0
        %v1217 = vsel %vm977, %v1212, 0
        %1219 = vmatpush.bf16.msra.mxu0 0
        %1220 = vmatpush.bf16.msra.mxu0 0
        %1221 = vmatpush.bf16.msra.mxu0 0
        %1222 = vmatpush.bf16.msra.mxu0 0
        %1223 = vmatpush.bf16.msra.mxu0 0
        %1224 = vmatpush.bf16.msra.mxu0 0
        %1225 = vmatpush.bf16.msra.mxu0 0
        %1226 = vmatpush.bf16.msra.mxu0 %v1217
        %1227 = vmatmul.bf16.gmra.mxu0 %v1214
        %v1228 = vpop.f32.mrf.mxu0
        %v1229 = vadd.f32 0.0, %v1228
        %v1230 = vpop.f32.mrf.mxu0
        %1231 = vdwg.mxu0
        %v1232 = vpack.c.bf16 %v1229, %v1229
        %v1234 = vsel %vm942, %v1232, 0
        %v1237 = vsel %vm977, %v938, 0
        %1239 = vmatpush.bf16.msra.mxu0 0
        %1240 = vmatpush.bf16.msra.mxu0 0
        %1241 = vmatpush.bf16.msra.mxu0 0
        %1242 = vmatpush.bf16.msra.mxu0 0
        %1243 = vmatpush.bf16.msra.mxu0 0
        %1244 = vmatpush.bf16.msra.mxu0 0
        %1245 = vmatpush.bf16.msra.mxu0 0
        %1246 = vmatpush.bf16.msra.mxu0 %v1237
        %1247 = vmatmul.bf16.gmra.mxu0 %v1234
        %v1248 = vpop.f32.mrf.mxu0
        %v1249 = vadd.f32 0.0, %v1248
        %v1250 = vpop.f32.mrf.mxu0
        %1251 = vdwg.mxu0
        %v1252 = vadd.f32 %v1175, %v1249
        %v1253 = vld [vmem:[%s12] sm:$0x1]
        %v1255 = vperm.slane %v1253, 0
        %v1257 = vadd.f32 %v1252, %v1255
        %v1258 = vadd.f32 %v812, %v1257
        %v1259 = vld [vmem:[%s17] sm:$0x1]
        %v1260 = vld [vmem:[%s18] sm:$0x1]
        %v1261 = vsel %vm840, %v1258, 0.0
        %1262 = vadd.xlane.f32.xlu0 %v1261
        %v1263 = vpop.xlane.xlu0 %1262
        %v1264 = vrcp.pop 32.0
        %v1265 = vmul.f32 32.0, %v1264
        %v1266 = vsub.f32 1.0, %v1265
        %v1267 = vmul.f32 %v1264, %v1266
        %v1268 = vadd.f32 %v1264, %v1267
        %vm1269 = vweird.f32 %v1264
        %v1270 = vsel %vm1269, %v1264, %v1268
        %v1271 = vmul.f32 %v1263, %v1270
        %v1272 = vsub.f32 %v1258, %v1271
        %v1273 = vmul.f32 %v1272, %v1272
        %v1274 = vsel %vm840, %v1273, 0.0
        %1275 = vadd.xlane.f32.xlu0 %v1274
        %v1276 = vpop.xlane.xlu0 %1275
        %v1277 = vmul.f32 %v1276, %v1270
        %v1278 = vadd.f32 %v1277, 1e-05
        %v1279 = vrsqrt.pop %v1278
        %v1280 = vmul.f32 %v1279, %v1278
        %v1281 = vmul.f32 %v1280, %v1279
        %v1282 = vmul.f32 0.5, %v1281
        %v1283 = vsub.f32 1.5, %v1282
        %v1284 = vmul.f32 %v1279, %v1283
        %vm1285 = vweird.f32 %v1278
        %vm1286 = vweird.f32 %v1279
        %vm1287 = vmor %vm1285, %vm1286
        %v1288 = vsel %vm1287, %v1279, %v1284
        %v1289 = vmul.f32 %v1272, %v1288
        %v1291 = vperm.slane %v1259, 0
        %v1293 = vmul.f32 %v1289, %v1291
        %v1295 = vperm.slane %v1260, 0
        %v1297 = vadd.f32 %v1293, %v1295
        %v1298 = vpack.c.bf16 %v1297, %v1297
        %v1299 = vld [vmem:[#allocation11] sm:$0xf]
        %v1300 = vld [vmem:[#allocation11 + $0x4] sm:$0xf]
        %v1301 = vld [vmem:[#allocation11 + $0x8] sm:$0xf]
        %v1302 = vld [vmem:[#allocation11 + $0xc] sm:$0xf]
        %v1303 = vld [vmem:[%s14] sm:$0x1]
        %v1305 = vperm.slane %v1303, 0
        %v1311 = vunpack.c.l.b16 %v1299
        %v1312 = vunpack.c.l.b16 %v1300
        %v1313 = vunpack.c.l.b16 %v1301
        %v1314 = vunpack.c.l.b16 %v1302
        %v1315 = vpack.c.b16 %v1312, %v1311
        %v1316 = vpack.c.b16 %v1314, %v1313
        %v1320 = vsel %vm840, %v1298, 0
        %1322 = vmatpush.bf16.msra.mxu0 0
        %1323 = vmatpush.bf16.msra.mxu0 0
        %1324 = vmatpush.bf16.msra.mxu0 0
        %1325 = vmatpush.bf16.msra.mxu0 0
        %1326 = vmatpush.bf16.msra.mxu0 0
        %1327 = vmatpush.bf16.msra.mxu0 0
        %1328 = vmatpush.bf16.msra.mxu0 %v1316
        %1329 = vmatpush.bf16.msra.mxu0 %v1315
        %1330 = vmatmul.bf16.gmra.mxu0 %v1320
        %v1331 = vpop.f32.mrf.mxu0
        %v1332 = vadd.f32 %v1305, %v1331
        %v1333 = vpop.f32.mrf.mxu0
        %1334 = vdwg.mxu0
        %v1335 = vmax.f32 %v1332, 0.0
        %v1336 = vpack.c.bf16 %v1335, %v1335
        %v1337 = vld [vmem:[%s15] sm:$0xf]
        %v1338 = vld [vmem:[%s15 + $0x4] sm:$0xf]
        %v1339 = vld [vmem:[%s15 + $0x8] sm:$0xf]
        %v1340 = vld [vmem:[%s15 + $0xc] sm:$0xf]
        %v1341 = vld [vmem:[%s15 + $0x10] sm:$0xf]
        %v1342 = vld [vmem:[%s15 + $0x14] sm:$0xf]
        %v1343 = vld [vmem:[%s15 + $0x18] sm:$0xf]
        %v1344 = vld [vmem:[%s15 + $0x1c] sm:$0xf]
        %v1345 = vld [vmem:[%s16] sm:$0x1]
        %v1347 = vperm.slane %v1345, 0
        %v1357 = vunpack.c.l.b16 %v1337
        %v1358 = vunpack.c.l.b16 %v1338
        %v1359 = vunpack.c.l.b16 %v1339
        %v1360 = vunpack.c.l.b16 %v1340
        %v1361 = vunpack.c.l.b16 %v1341
        %v1362 = vunpack.c.l.b16 %v1342
        %v1363 = vunpack.c.l.b16 %v1343
        %v1364 = vunpack.c.l.b16 %v1344
        %v1365 = vpack.c.b16 %v1358, %v1357
        %v1366 = vpack.c.b16 %v1360, %v1359
        %v1367 = vpack.c.b16 %v1362, %v1361
        %v1368 = vpack.c.b16 %v1364, %v1363
        %vm1373 = vcmask 523264
        %v1375 = vsel %vm1373, %v1336, 0
        %1377 = vmatpush.bf16.msra.mxu0 0
        %1378 = vmatpush.bf16.msra.mxu0 0
        %1379 = vmatpush.bf16.msra.mxu0 0
        %1380 = vmatpush.bf16.msra.mxu0 0
        %1381 = vmatpush.bf16.msra.mxu0 %v1368
        %1382 = vmatpush.bf16.msra.mxu0 %v1367
        %1383 = vmatpush.bf16.msra.mxu0 %v1366
        %1384 = vmatpush.bf16.msra.mxu0 %v1365
        %1385 = vmatmul.bf16.gmra.mxu0 %v1375
        %v1386 = vpop.f32.mrf.mxu0
        %v1387 = vadd.f32 %v1347, %v1386
        %v1388 = vpop.f32.mrf.mxu0
        %1389 = vdwg.mxu0
        %v1390 = vadd.f32 %v1297, %v1387
        %v1391 = vld [vmem:[%s19] sm:$0x1]
        %v1392 = vld [vmem:[%s20] sm:$0x1]
        %v1393 = vsel %vm840, %v1390, 0.0
        %1394 = vadd.xlane.f32.xlu0 %v1393
        %v1395 = vpop.xlane.xlu0 %1394
        %v1396 = vmul.f32 %v1395, %v1270
        %v1397 = vsub.f32 %v1390, %v1396
        %v1398 = vmul.f32 %v1397, %v1397
        %v1399 = vsel %vm840, %v1398, 0.0
        %1400 = vadd.xlane.f32.xlu0 %v1399
        %v1401 = vpop.xlane.xlu0 %1400
        %v1402 = vmul.f32 %v1401, %v1270
        %v1403 = vadd.f32 %v1402, 1e-05
        %v1404 = vrsqrt.pop %v1403
        %v1405 = vmul.f32 %v1404, %v1403
        %v1406 = vmul.f32 %v1405, %v1404
        %v1407 = vmul.f32 0.5, %v1406
        %v1408 = vsub.f32 1.5, %v1407
        %v1409 = vmul.f32 %v1404, %v1408
        %vm1410 = vweird.f32 %v1403
        %vm1411 = vweird.f32 %v1404
        %vm1412 = vmor %vm1410, %vm1411
        %v1413 = vsel %vm1412, %v1404, %v1409
        %v1414 = vmul.f32 %v1397, %v1413
        %v1416 = vperm.slane %v1391, 0
        %v1418 = vmul.f32 %v1414, %v1416
        %v1420 = vperm.slane %v1392, 0
        %v1422 = vadd.f32 %v1418, %v1420
        %1423 = vst.msk [vmem:[%s796] sm:$0xff] %vm840, %v1422
        %s1424 = sand.u32 %s524, 1
        %s1425 = scalar_lea.sflag [#allocation4], %s1424
        %s1426 = sand.u32 %s524, 1
        %s1427 = smul.addr %s1426, 8
        %s1428 = scalar_lea.vmem [#allocation13], %s1427
        // Predicated region
        $region129: #{tpu_custom_call.1} parent=103 // pred_check
          %p1429 = pneg %p534
        $region130: #{tpu_custom_call.1} parent=103 // pred_check_branch
          %1431 = sbr.rel (%p1429) target = $region132
        $region131: #{tpu_custom_call.1} parent=103 // pred_region
          %1433 = vsyncadd %s1425, 0
          %s1434 = sadd.s32 %s44, %s43
          %s1435 = smul.addr %s1434, 8
          %s1436 = scalar_lea.hbm %s21, %s1435
          %s1438 = sshll.u32 %s1428, 4
          %s1439 = int_to_ptr.vmem [resolvable:$true] %s1438
          %s1440 = sshll.u32 %s1436, 4
          %s1441 = int_to_ptr.hbm [resolvable:$true] %s1440
          %1443 = dma.vmem_to_hbm [thread:$0]  %s1439, 128, %s1441, %s1425
        $region132: #{tpu_custom_call.1} parent=103 // pred_fallthru
          _
      $region104: #{tpu_custom_call.1} parent=5 // pred_fallthru
        _
      %p1444 = scmp.le.s32.totalorder 2, %s34
      // Predicated region
      $region133: #{tpu_custom_call.1} parent=5 // pred_check
        %p1445 = pneg %p1444
      $region134: #{tpu_custom_call.1} parent=5 // pred_check_branch
        %1447 = sbr.rel (%p1445) target = $region136
      $region135: #{tpu_custom_call.1} parent=5 // pred_region
        %s1448 = ssub.s32 %s34, 2
        // Predicated region
        $region137: #{tpu_custom_call.1} parent=135 // pred_check
          %p1449 = pneg %p540
        $region138: #{tpu_custom_call.1} parent=135 // pred_check_branch
          %1451 = sbr.rel (%p1449) target = $region140
        $region139: #{tpu_custom_call.1} parent=135 // pred_region
          %s1452 = sand.u32 %s525, 1
          %s1453 = scalar_lea.sflag [#allocation4], %s1452
          %s1454 = sand.u32 %s525, 1
          %s1455 = smul.addr %s1454, 8
          %s1456 = scalar_lea.vmem [#allocation13], %s1455
          %1458 = dma.done %s1453, 128
        $region140: #{tpu_custom_call.1} parent=135 // pred_fallthru
          _
      $region136: #{tpu_custom_call.1} parent=5 // pred_fallthru
        _
    $region6: #{tpu_custom_call.1} parent=1 // loop_footer
      %s38 = sadd.s32 1, %s34
    $region7: #{tpu_custom_call.1} parent=1 // loop_footer_branch
      %33 = sbr.rel target = $region3
    $region8: #{tpu_custom_call.1} parent=1 // loop_exit
      _
    %1459 = vsyncpa [#allocation3], 1
    %s1460 = scalar_lea.sflag [#allocation3], 1
    %1461 = vsyncpa %s1460, 1
    %1462 = vsyncpa [#allocation6], 1
    %1463 = vsyncpa [#allocation9], 1
    %1464 = vsyncpa [#allocation12], 1
    %1465 = vsyncpa [#allocation4], 1
    %s1466 = scalar_lea.sflag [#allocation4], 1
    %1467 = vsyncpa %s1466, 1

</llo_original>
